<compile_context>
chip_gen: v6e
topology: v6e:2x2x1
jax: 0.10.0
libtpu: 0.0.40
codegen_flags: <defaults>
</compile_context>

<pallas_src>
import math

import jax
import jax.numpy as jnp
from jax.experimental import pallas as pl
from jax.experimental.pallas import tpu as pltpu

# ----------------------------- neuron constants -----------------------------
ALPHA = 0.2          # fractional order (flif_hidden.alpha)
DT = 0.1
GL = 0.2             # leak conductance
E_L = 0.0            # resting potential
V_TH = 1.0           # spike threshold
V_RESET = 0.0
V_INIT = 0.0
DT_GAMMA = (DT ** ALPHA) * math.gamma(2.0 - ALPHA)
LEAK = 1.0 - DT_GAMMA * GL   # folded leak; E_L == 0 so the rest term vanishes


def _gl_memory_coeffs(num_steps: int, alpha: float):
    """1-D GL difference table: W[t, k] = c[t - k], c[j] = (j+1)^(1-a) - j^(1-a).

    c[0] is never used (the memory sum only covers k < t).
    """
    return tuple(
        0.0 if j == 0 else float((j + 1) ** (1.0 - alpha) - j ** (1.0 - alpha))
        for j in range(num_steps))


# --------------------------------- kernel -----------------------------------
def make_snn_kernel(num_steps: int, block_b: int, coeffs):
    """Fused SNN kernel, one batch tile per grid step (batch on lanes)."""

    def kernel(ih_ref, wo_ref,                 # inputs: hidden currents, Wo
               spk_ref, mem_ref,               # outputs: output-layer traces
               spkh_scr, io_scr,               # VMEM: hidden spikes / out currents
               dvh_ref, dvo_ref):              # VMEM: dv histories (GL memory)
        h = dvh_ref.shape[1]
        o = dvo_ref.shape[1]
        bt = block_b

        # ---- Phase 1: hidden fractional-LIF recurrence (fully unrolled).
        # Hidden current was precomputed (Wh @ x, all steps) in the wrapper.
        v_h = jnp.full((h, bt), V_INIT, jnp.float32)
        for t in range(num_steps):
            v_new = v_h * LEAK + ih_ref[t]
            for k in range(t):                           # GL memory, k < t only
                v_new = v_new - dvh_ref[k] * coeffs[t - k]
            fired = v_new > V_TH
            v_post = jnp.where(fired, V_RESET, v_new)
            dvh_ref[t] = v_post - v_h
            # Lane-aligned static slice: column block t of the (H, T*B) scratch.
            spkh_scr[:, t * bt:(t + 1) * bt] = fired.astype(spkh_scr.dtype)
            v_h = v_post

        # ---- Phase 2: output currents for ALL steps in one MXU matmul.
        io_scr[...] = jnp.dot(wo_ref[...], spkh_scr[...],
                              preferred_element_type=jnp.float32)   # (O_pad, T*B)

        # ---- Phase 3: output fractional-LIF recurrence (fully unrolled).
        v_o = jnp.full((o, bt), V_INIT, jnp.float32)
        for t in range(num_steps):
            v_new = v_o * LEAK + io_scr[:, t * bt:(t + 1) * bt]
            for k in range(t):
                v_new = v_new - dvo_ref[k] * coeffs[t - k]
            fired = v_new > V_TH
            v_post = jnp.where(fired, V_RESET, v_new)
            dvo_ref[t] = v_post - v_o
            spk_ref[t] = fired.astype(jnp.float32)       # (O_pad, B) unmasked store
            mem_ref[t] = v_post
            v_o = v_post

    return kernel


# -------------------------------- wrapper ------------------------------------
def snn_forward(data, w_hidden, w_output, *, num_steps, block_b=128,
                matmul_dtype=jnp.float32):
    """data: (B, T, num_input) f32 (PyTorch layout).
       w_hidden: (num_hidden, num_input), w_output: (num_output, num_hidden).
       Returns (output_spikes_trace, output_values_trace), each (T, B, num_output).

       block_b: batch lanes per grid step. 128 keeps 2 parallel tiles at B=256
       (both v7x TCs busy); on single-TC v5e/v6e pass block_b=B for one step.
       matmul_dtype: jnp.bfloat16 on v6e/v7x for the native MXU path (f32
       accumulation kept, FLIF state stays f32); default f32 = reference math.
    """
    b, t, num_input = data.shape
    assert t == num_steps
    num_hidden = w_hidden.shape[0]
    num_output = w_output.shape[0]
    assert b % block_b == 0, "batch must be divisible by the batch tile"

    # Pad the output layer to a multiple of 8 sublanes (unmasked stores).
    o_pad = max(8, ((num_output + 7) // 8) * 8)

    data = jnp.asarray(data, jnp.float32)
    # Fold dt^a * Gamma(2-a) into the synapse weights once on the host.
    wh = DT_GAMMA * jnp.asarray(w_hidden, jnp.float32)          # (H, In)
    wo = DT_GAMMA * jnp.asarray(w_output, jnp.float32)          # (O, H)

    # Hidden synapse matmul hoisted out of the time recurrence and off the
    # kernel critical path: one XLA matmul over all T steps -> (T, H, B).
    ih_thb = jnp.einsum('hi,bti->thb',
                        wh.astype(matmul_dtype), data.astype(matmul_dtype),
                        preferred_element_type=jnp.float32)

    wo_pad = jnp.zeros((o_pad, num_hidden), jnp.float32).at[:num_output].set(wo)
    wo_pad = wo_pad.astype(matmul_dtype)

    coeffs = _gl_memory_coeffs(num_steps, ALPHA)
    kernel = make_snn_kernel(num_steps, block_b, coeffs)

    out_shape = (
        jax.ShapeDtypeStruct((num_steps, o_pad, b), jnp.float32),
        jax.ShapeDtypeStruct((num_steps, o_pad, b), jnp.float32),
    )

    spikes_tob, values_tob = pl.pallas_call(
        kernel,
        out_shape=out_shape,
        grid=(b // block_b,),
        in_specs=[
            pl.BlockSpec((num_steps, num_hidden, block_b), lambda i: (0, 0, i)),
            # Weights: constant index_map -> block stays resident across grid.
            pl.BlockSpec((o_pad, num_hidden), lambda i: (0, 0)),
        ],
        out_specs=[
            pl.BlockSpec((num_steps, o_pad, block_b), lambda i: (0, 0, i)),
            pl.BlockSpec((num_steps, o_pad, block_b), lambda i: (0, 0, i)),
        ],
        scratch_shapes=[
            pltpu.VMEM((num_hidden, num_steps * block_b), matmul_dtype),   # spk_h
            pltpu.VMEM((o_pad, num_steps * block_b), jnp.float32),         # i_o
            pltpu.VMEM((num_steps, num_hidden, block_b), jnp.float32),     # dv_h
            pltpu.VMEM((num_steps, o_pad, block_b), jnp.float32),          # dv_o
        ],
        compiler_params=pltpu.CompilerParams(
            dimension_semantics=("parallel",)),
    )(ih_thb, wo_pad)

    # Back to the PyTorch trace layout: (T, B, num_output).
    spikes_trace = jnp.transpose(spikes_tob[:, :num_output, :], (0, 2, 1))
    values_trace = jnp.transpose(values_tob[:, :num_output, :], (0, 2, 1))
    return spikes_trace, values_trace


# ----------------------------- pure-JAX reference ----------------------------
def snn_reference(data, w_hidden, w_output, *, num_steps):
    """Same reconstructed FLIF dynamics, plain XLA, for a correctness check."""
    data = jnp.asarray(data, jnp.float32)
    wh = DT_GAMMA * jnp.asarray(w_hidden, jnp.float32)
    wo = DT_GAMMA * jnp.asarray(w_output, jnp.float32)
    coeffs = _gl_memory_coeffs(num_steps, ALPHA)
    b = data.shape[0]

    def flif(currents):                      # (T, B, N) -> (spikes, membranes)
        n = currents.shape[-1]
        v = jnp.full((b, n), V_INIT, jnp.float32)
        dvs, spks, mems = [], [], []
        for t in range(num_steps):
            v_new = v * LEAK + currents[t]
            for k in range(t):
                v_new = v_new - dvs[k] * coeffs[t - k]
            fired = v_new > V_TH
            v_post = jnp.where(fired, V_RESET, v_new)
            dvs.append(v_post - v)
            spks.append(fired.astype(jnp.float32))
            mems.append(v_post)
            v = v_post
        return jnp.stack(spks), jnp.stack(mems)

    ih = jnp.einsum('hi,bti->tbh', wh, data,
                    preferred_element_type=jnp.float32)          # (T, B, H)
    spk_h, _ = flif(ih)
    io = jnp.einsum('oh,tbh->tbo', wo, spk_h,
                    preferred_element_type=jnp.float32)          # (T, B, O)
    return flif(io)


# --------------------------------- main --------------------------------------
if __name__ == "__main__":
    # Small shapes consistent with the module's forward. batch=256 -> two
    # 128-lane batch tiles -> 2 parallel grid steps (both v7x TensorCores busy).
    batch = 256
    num_steps = 8
    num_input = 64
    num_hidden = 32
    num_output = 10

    key = jax.random.PRNGKey(0)
    k_wh, k_wo, k_x = jax.random.split(key, 3)

    # Deterministic parameter init mirroring the PyTorch __init__:
    #   Linear default U(-1/sqrt(fan_in), 1/sqrt(fan_in)), scaled by 6 / 5, abs().
    bound_h = 1.0 / math.sqrt(num_input)
    w_hidden = jnp.abs(
        jax.random.uniform(k_wh, (num_hidden, num_input), jnp.float32,
                           minval=-bound_h, maxval=bound_h) * 6.0)
    bound_o = 1.0 / math.sqrt(num_hidden)
    w_output = jnp.abs(
        jax.random.uniform(k_wo, (num_output, num_hidden), jnp.float32,
                           minval=-bound_o, maxval=bound_o) * 5.0)

    # Rate-coded input in [0, 1): (batch, num_steps, num_input).
    data = jax.random.uniform(k_x, (batch, num_steps, num_input), jnp.float32)

    spikes_trace, values_trace = snn_forward(
        data, w_hidden, w_output, num_steps=num_steps, block_b=128)
    spikes_trace = jax.block_until_ready(spikes_trace)
    values_trace = jax.block_until_ready(values_trace)

    assert spikes_trace.shape == (num_steps, batch, num_output)
    assert values_trace.shape == (num_steps, batch, num_output)
    assert bool(jnp.all(jnp.isfinite(values_trace)))
    assert bool(jnp.all((spikes_trace == 0.0) | (spikes_trace == 1.0)))

    # Numerics check vs the pure-JAX reference. Mismatch-fraction tolerance
    # guards against rare spike flips when a membrane lands ~1e-6 from V_TH.
    ref_spk, ref_mem = snn_reference(data, w_hidden, w_output,
                                     num_steps=num_steps)
    spk_mismatch = float(jnp.mean((spikes_trace != ref_spk).astype(jnp.float32)))
    val_mismatch = float(jnp.mean(
        (jnp.abs(values_trace - ref_mem) > 1e-3).astype(jnp.float32)))
    assert spk_mismatch < 0.02, f"spike mismatch fraction {spk_mismatch}"
    assert val_mismatch < 0.02, f"membrane mismatch fraction {val_mismatch}"

    print("KERNEL_OK")
</pallas_src>

<mosaic_0001>
module attributes {stable_mosaic.version = 11 : i64} {
  func.func @kernel(%arg0: i32, %arg1: memref<8x32x128xf32, #tpu.memory_space<vmem>>, %arg2: memref<16x32xf32, #tpu.memory_space<vmem>>, %arg3: memref<8x16x128xf32, #tpu.memory_space<vmem>>, %arg4: memref<8x16x128xf32, #tpu.memory_space<vmem>>, %arg5: memref<32x1024xf32, #tpu.memory_space<vmem>>, %arg6: memref<16x1024xf32, #tpu.memory_space<vmem>>, %arg7: memref<8x32x128xf32, #tpu.memory_space<vmem>>, %arg8: memref<8x16x128xf32, #tpu.memory_space<vmem>>) attributes {dimension_semantics = [#tpu.dimension_semantics<parallel>], iteration_bounds = array<i64: 2>, scalar_prefetch = 0 : i64, scratch_operands = 4 : i64, tpu.core_type = #tpu.core_type<tc>, window_params = [{transform_indices = @transform_0, window_bounds = array<i64: 8, 32, 128>}, {pipeline_mode = #tpu.pipeline_mode<synchronous>, transform_indices = @transform_1, window_bounds = array<i64: 16, 32>}, {transform_indices = @transform_2, window_bounds = array<i64: 8, 16, 128>}, {transform_indices = @transform_3, window_bounds = array<i64: 8, 16, 128>}]} {
    %cst = arith.constant 0.000000e+00 : f32
    %0 = vector.broadcast %cst : f32 to vector<32x128xf32>
    %cst_0 = arith.constant 0.882467329 : f32
    %1 = vector.broadcast %cst_0 : f32 to vector<32x128xf32>
    %2 = arith.mulf %0, %1 : vector<32x128xf32>
    %c0 = arith.constant 0 : index
    %c0_1 = arith.constant 0 : index
    %c0_2 = arith.constant 0 : index
    %3 = vector.load %arg1[%c0, %c0_1, %c0_2] : memref<8x32x128xf32, #tpu.memory_space<vmem>>, vector<1x32x128xf32>
    %4 = vector.shape_cast %3 : vector<1x32x128xf32> to vector<32x128xf32>
    %5 = arith.addf %2, %4 : vector<32x128xf32>
    %cst_3 = arith.constant 1.000000e+00 : f32
    %6 = vector.broadcast %cst_3 : f32 to vector<32x128xf32>
    %7 = arith.cmpf ogt, %5, %6 : vector<32x128xf32>
    %cst_4 = arith.constant 0.000000e+00 : f32
    %8 = vector.broadcast %cst_4 : f32 to vector<32x128xf32>
    %9 = arith.select %7, %8, %5 : vector<32x128xi1>, vector<32x128xf32>
    %10 = arith.subf %9, %0 : vector<32x128xf32>
    %c0_5 = arith.constant 0 : index
    %c0_6 = arith.constant 0 : index
    %c0_7 = arith.constant 0 : index
    %11 = vector.load %arg7[%c0_5, %c0_6, %c0_7] : memref<8x32x128xf32, #tpu.memory_space<vmem>>, vector<1x32x128xf32>
    %12 = vector.shape_cast %11 : vector<1x32x128xf32> to vector<32x128xf32>
    %13 = vector.shape_cast %10 : vector<32x128xf32> to vector<1x32x128xf32>
    tpu.vector_store %arg7[%c0_5, %c0_6, %c0_7], %13 {strides = array<i32>} : memref<8x32x128xf32, #tpu.memory_space<vmem>>, vector<1x32x128xf32>,
    %14 = arith.extui %7 : vector<32x128xi1> to vector<32x128xi32>
    %15 = arith.sitofp %14 : vector<32x128xi32> to vector<32x128xf32>
    %c0_8 = arith.constant 0 : index
    %c0_9 = arith.constant 0 : index
    %16 = vector.load %arg5[%c0_8, %c0_9] : memref<32x1024xf32, #tpu.memory_space<vmem>>, vector<32x128xf32>
    tpu.vector_store %arg5[%c0_8, %c0_9], %15 {strides = array<i32>} : memref<32x1024xf32, #tpu.memory_space<vmem>>, vector<32x128xf32>,
    %cst_10 = arith.constant 0.882467329 : f32
    %17 = vector.broadcast %cst_10 : f32 to vector<32x128xf32>
    %18 = arith.mulf %9, %17 : vector<32x128xf32>
    %c1 = arith.constant 1 : index
    %c0_11 = arith.constant 0 : index
    %c0_12 = arith.constant 0 : index
    %19 = vector.load %arg1[%c1, %c0_11, %c0_12] : memref<8x32x128xf32, #tpu.memory_space<vmem>>, vector<1x32x128xf32>
    %20 = vector.shape_cast %19 : vector<1x32x128xf32> to vector<32x128xf32>
    %21 = arith.addf %18, %20 : vector<32x128xf32>
    %c0_13 = arith.constant 0 : index
    %c0_14 = arith.constant 0 : index
    %c0_15 = arith.constant 0 : index
    %22 = vector.load %arg7[%c0_13, %c0_14, %c0_15] : memref<8x32x128xf32, #tpu.memory_space<vmem>>, vector<1x32x128xf32>
    %23 = vector.shape_cast %22 : vector<1x32x128xf32> to vector<32x128xf32>
    %cst_16 = arith.constant 0.741101146 : f32
    %24 = vector.broadcast %cst_16 : f32 to vector<32x128xf32>
    %25 = arith.mulf %23, %24 : vector<32x128xf32>
    %26 = arith.subf %21, %25 : vector<32x128xf32>
    %cst_17 = arith.constant 1.000000e+00 : f32
    %27 = vector.broadcast %cst_17 : f32 to vector<32x128xf32>
    %28 = arith.cmpf ogt, %26, %27 : vector<32x128xf32>
    %cst_18 = arith.constant 0.000000e+00 : f32
    %29 = vector.broadcast %cst_18 : f32 to vector<32x128xf32>
    %30 = arith.select %28, %29, %26 : vector<32x128xi1>, vector<32x128xf32>
    %31 = arith.subf %30, %9 : vector<32x128xf32>
    %c1_19 = arith.constant 1 : index
    %c0_20 = arith.constant 0 : index
    %c0_21 = arith.constant 0 : index
    %32 = vector.load %arg7[%c1_19, %c0_20, %c0_21] : memref<8x32x128xf32, #tpu.memory_space<vmem>>, vector<1x32x128xf32>
    %33 = vector.shape_cast %32 : vector<1x32x128xf32> to vector<32x128xf32>
    %34 = vector.shape_cast %31 : vector<32x128xf32> to vector<1x32x128xf32>
    tpu.vector_store %arg7[%c1_19, %c0_20, %c0_21], %34 {strides = array<i32>} : memref<8x32x128xf32, #tpu.memory_space<vmem>>, vector<1x32x128xf32>,
    %35 = arith.extui %28 : vector<32x128xi1> to vector<32x128xi32>
    %36 = arith.sitofp %35 : vector<32x128xi32> to vector<32x128xf32>
    %c0_22 = arith.constant 0 : index
    %c128 = arith.constant 128 : index
    %37 = vector.load %arg5[%c0_22, %c128] : memref<32x1024xf32, #tpu.memory_space<vmem>>, vector<32x128xf32>
    tpu.vector_store %arg5[%c0_22, %c128], %36 {strides = array<i32>} : memref<32x1024xf32, #tpu.memory_space<vmem>>, vector<32x128xf32>,
    %cst_23 = arith.constant 0.882467329 : f32
    %38 = vector.broadcast %cst_23 : f32 to vector<32x128xf32>
    %39 = arith.mulf %30, %38 : vector<32x128xf32>
    %c2 = arith.constant 2 : index
    %c0_24 = arith.constant 0 : index
    %c0_25 = arith.constant 0 : index
    %40 = vector.load %arg1[%c2, %c0_24, %c0_25] : memref<8x32x128xf32, #tpu.memory_space<vmem>>, vector<1x32x128xf32>
    %41 = vector.shape_cast %40 : vector<1x32x128xf32> to vector<32x128xf32>
    %42 = arith.addf %39, %41 : vector<32x128xf32>
    %c0_26 = arith.constant 0 : index
    %c0_27 = arith.constant 0 : index
    %c0_28 = arith.constant 0 : index
    %43 = vector.load %arg7[%c0_26, %c0_27, %c0_28] : memref<8x32x128xf32, #tpu.memory_space<vmem>>, vector<1x32x128xf32>
    %44 = vector.shape_cast %43 : vector<1x32x128xf32> to vector<32x128xf32>
    %cst_29 = arith.constant 0.667123556 : f32
    %45 = vector.broadcast %cst_29 : f32 to vector<32x128xf32>
    %46 = arith.mulf %44, %45 : vector<32x128xf32>
    %47 = arith.subf %42, %46 : vector<32x128xf32>
    %c1_30 = arith.constant 1 : index
    %c0_31 = arith.constant 0 : index
    %c0_32 = arith.constant 0 : index
    %48 = vector.load %arg7[%c1_30, %c0_31, %c0_32] : memref<8x32x128xf32, #tpu.memory_space<vmem>>, vector<1x32x128xf32>
    %49 = vector.shape_cast %48 : vector<1x32x128xf32> to vector<32x128xf32>
    %cst_33 = arith.constant 0.741101146 : f32
    %50 = vector.broadcast %cst_33 : f32 to vector<32x128xf32>
    %51 = arith.mulf %49, %50 : vector<32x128xf32>
    %52 = arith.subf %47, %51 : vector<32x128xf32>
    %cst_34 = arith.constant 1.000000e+00 : f32
    %53 = vector.broadcast %cst_34 : f32 to vector<32x128xf32>
    %54 = arith.cmpf ogt, %52, %53 : vector<32x128xf32>
    %cst_35 = arith.constant 0.000000e+00 : f32
    %55 = vector.broadcast %cst_35 : f32 to vector<32x128xf32>
    %56 = arith.select %54, %55, %52 : vector<32x128xi1>, vector<32x128xf32>
    %57 = arith.subf %56, %30 : vector<32x128xf32>
    %c2_36 = arith.constant 2 : index
    %c0_37 = arith.constant 0 : index
    %c0_38 = arith.constant 0 : index
    %58 = vector.load %arg7[%c2_36, %c0_37, %c0_38] : memref<8x32x128xf32, #tpu.memory_space<vmem>>, vector<1x32x128xf32>
    %59 = vector.shape_cast %58 : vector<1x32x128xf32> to vector<32x128xf32>
    %60 = vector.shape_cast %57 : vector<32x128xf32> to vector<1x32x128xf32>
    tpu.vector_store %arg7[%c2_36, %c0_37, %c0_38], %60 {strides = array<i32>} : memref<8x32x128xf32, #tpu.memory_space<vmem>>, vector<1x32x128xf32>,
    %61 = arith.extui %54 : vector<32x128xi1> to vector<32x128xi32>
    %62 = arith.sitofp %61 : vector<32x128xi32> to vector<32x128xf32>
    %c0_39 = arith.constant 0 : index
    %c256 = arith.constant 256 : index
    %63 = vector.load %arg5[%c0_39, %c256] : memref<32x1024xf32, #tpu.memory_space<vmem>>, vector<32x128xf32>
    tpu.vector_store %arg5[%c0_39, %c256], %62 {strides = array<i32>} : memref<32x1024xf32, #tpu.memory_space<vmem>>, vector<32x128xf32>,
    %cst_40 = arith.constant 0.882467329 : f32
    %64 = vector.broadcast %cst_40 : f32 to vector<32x128xf32>
    %65 = arith.mulf %56, %64 : vector<32x128xf32>
    %c3 = arith.constant 3 : index
    %c0_41 = arith.constant 0 : index
    %c0_42 = arith.constant 0 : index
    %66 = vector.load %arg1[%c3, %c0_41, %c0_42] : memref<8x32x128xf32, #tpu.memory_space<vmem>>, vector<1x32x128xf32>
    %67 = vector.shape_cast %66 : vector<1x32x128xf32> to vector<32x128xf32>
    %68 = arith.addf %65, %67 : vector<32x128xf32>
    %c0_43 = arith.constant 0 : index
    %c0_44 = arith.constant 0 : index
    %c0_45 = arith.constant 0 : index
    %69 = vector.load %arg7[%c0_43, %c0_44, %c0_45] : memref<8x32x128xf32, #tpu.memory_space<vmem>>, vector<1x32x128xf32>
    %70 = vector.shape_cast %69 : vector<1x32x128xf32> to vector<32x128xf32>
    %cst_46 = arith.constant 0.623208463 : f32
    %71 = vector.broadcast %cst_46 : f32 to vector<32x128xf32>
    %72 = arith.mulf %70, %71 : vector<32x128xf32>
    %73 = arith.subf %68, %72 : vector<32x128xf32>
    %c1_47 = arith.constant 1 : index
    %c0_48 = arith.constant 0 : index
    %c0_49 = arith.constant 0 : index
    %74 = vector.load %arg7[%c1_47, %c0_48, %c0_49] : memref<8x32x128xf32, #tpu.memory_space<vmem>>, vector<1x32x128xf32>
    %75 = vector.shape_cast %74 : vector<1x32x128xf32> to vector<32x128xf32>
    %cst_50 = arith.constant 0.667123556 : f32
    %76 = vector.broadcast %cst_50 : f32 to vector<32x128xf32>
    %77 = arith.mulf %75, %76 : vector<32x128xf32>
    %78 = arith.subf %73, %77 : vector<32x128xf32>
    %c2_51 = arith.constant 2 : index
    %c0_52 = arith.constant 0 : index
    %c0_53 = arith.constant 0 : index
    %79 = vector.load %arg7[%c2_51, %c0_52, %c0_53] : memref<8x32x128xf32, #tpu.memory_space<vmem>>, vector<1x32x128xf32>
    %80 = vector.shape_cast %79 : vector<1x32x128xf32> to vector<32x128xf32>
    %cst_54 = arith.constant 0.741101146 : f32
    %81 = vector.broadcast %cst_54 : f32 to vector<32x128xf32>
    %82 = arith.mulf %80, %81 : vector<32x128xf32>
    %83 = arith.subf %78, %82 : vector<32x128xf32>
    %cst_55 = arith.constant 1.000000e+00 : f32
    %84 = vector.broadcast %cst_55 : f32 to vector<32x128xf32>
    %85 = arith.cmpf ogt, %83, %84 : vector<32x128xf32>
    %cst_56 = arith.constant 0.000000e+00 : f32
    %86 = vector.broadcast %cst_56 : f32 to vector<32x128xf32>
    %87 = arith.select %85, %86, %83 : vector<32x128xi1>, vector<32x128xf32>
    %88 = arith.subf %87, %56 : vector<32x128xf32>
    %c3_57 = arith.constant 3 : index
    %c0_58 = arith.constant 0 : index
    %c0_59 = arith.constant 0 : index
    %89 = vector.load %arg7[%c3_57, %c0_58, %c0_59] : memref<8x32x128xf32, #tpu.memory_space<vmem>>, vector<1x32x128xf32>
    %90 = vector.shape_cast %89 : vector<1x32x128xf32> to vector<32x128xf32>
    %91 = vector.shape_cast %88 : vector<32x128xf32> to vector<1x32x128xf32>
    tpu.vector_store %arg7[%c3_57, %c0_58, %c0_59], %91 {strides = array<i32>} : memref<8x32x128xf32, #tpu.memory_space<vmem>>, vector<1x32x128xf32>,
    %92 = arith.extui %85 : vector<32x128xi1> to vector<32x128xi32>
    %93 = arith.sitofp %92 : vector<32x128xi32> to vector<32x128xf32>
    %c0_60 = arith.constant 0 : index
    %c384 = arith.constant 384 : index
    %94 = vector.load %arg5[%c0_60, %c384] : memref<32x1024xf32, #tpu.memory_space<vmem>>, vector<32x128xf32>
    tpu.vector_store %arg5[%c0_60, %c384], %93 {strides = array<i32>} : memref<32x1024xf32, #tpu.memory_space<vmem>>, vector<32x128xf32>,
    %cst_61 = arith.constant 0.882467329 : f32
    %95 = vector.broadcast %cst_61 : f32 to vector<32x128xf32>
    %96 = arith.mulf %87, %95 : vector<32x128xf32>
    %c4 = arith.constant 4 : index
    %c0_62 = arith.constant 0 : index
    %c0_63 = arith.constant 0 : index
    %97 = vector.load %arg1[%c4, %c0_62, %c0_63] : memref<8x32x128xf32, #tpu.memory_space<vmem>>, vector<1x32x128xf32>
    %98 = vector.shape_cast %97 : vector<1x32x128xf32> to vector<32x128xf32>
    %99 = arith.addf %96, %98 : vector<32x128xf32>
    %c0_64 = arith.constant 0 : index
    %c0_65 = arith.constant 0 : index
    %c0_66 = arith.constant 0 : index
    %100 = vector.load %arg7[%c0_64, %c0_65, %c0_66] : memref<8x32x128xf32, #tpu.memory_space<vmem>>, vector<1x32x128xf32>
    %101 = vector.shape_cast %100 : vector<1x32x128xf32> to vector<32x128xf32>
    %cst_67 = arith.constant 0.592465162 : f32
    %102 = vector.broadcast %cst_67 : f32 to vector<32x128xf32>
    %103 = arith.mulf %101, %102 : vector<32x128xf32>
    %104 = arith.subf %99, %103 : vector<32x128xf32>
    %c1_68 = arith.constant 1 : index
    %c0_69 = arith.constant 0 : index
    %c0_70 = arith.constant 0 : index
    %105 = vector.load %arg7[%c1_68, %c0_69, %c0_70] : memref<8x32x128xf32, #tpu.memory_space<vmem>>, vector<1x32x128xf32>
    %106 = vector.shape_cast %105 : vector<1x32x128xf32> to vector<32x128xf32>
    %cst_71 = arith.constant 0.623208463 : f32
    %107 = vector.broadcast %cst_71 : f32 to vector<32x128xf32>
    %108 = arith.mulf %106, %107 : vector<32x128xf32>
    %109 = arith.subf %104, %108 : vector<32x128xf32>
    %c2_72 = arith.constant 2 : index
    %c0_73 = arith.constant 0 : index
    %c0_74 = arith.constant 0 : index
    %110 = vector.load %arg7[%c2_72, %c0_73, %c0_74] : memref<8x32x128xf32, #tpu.memory_space<vmem>>, vector<1x32x128xf32>
    %111 = vector.shape_cast %110 : vector<1x32x128xf32> to vector<32x128xf32>
    %cst_75 = arith.constant 0.667123556 : f32
    %112 = vector.broadcast %cst_75 : f32 to vector<32x128xf32>
    %113 = arith.mulf %111, %112 : vector<32x128xf32>
    %114 = arith.subf %109, %113 : vector<32x128xf32>
    %c3_76 = arith.constant 3 : index
    %c0_77 = arith.constant 0 : index
    %c0_78 = arith.constant 0 : index
    %115 = vector.load %arg7[%c3_76, %c0_77, %c0_78] : memref<8x32x128xf32, #tpu.memory_space<vmem>>, vector<1x32x128xf32>
    %116 = vector.shape_cast %115 : vector<1x32x128xf32> to vector<32x128xf32>
    %cst_79 = arith.constant 0.741101146 : f32
    %117 = vector.broadcast %cst_79 : f32 to vector<32x128xf32>
    %118 = arith.mulf %116, %117 : vector<32x128xf32>
    %119 = arith.subf %114, %118 : vector<32x128xf32>
    %cst_80 = arith.constant 1.000000e+00 : f32
    %120 = vector.broadcast %cst_80 : f32 to vector<32x128xf32>
    %121 = arith.cmpf ogt, %119, %120 : vector<32x128xf32>
    %cst_81 = arith.constant 0.000000e+00 : f32
    %122 = vector.broadcast %cst_81 : f32 to vector<32x128xf32>
    %123 = arith.select %121, %122, %119 : vector<32x128xi1>, vector<32x128xf32>
    %124 = arith.subf %123, %87 : vector<32x128xf32>
    %c4_82 = arith.constant 4 : index
    %c0_83 = arith.constant 0 : index
    %c0_84 = arith.constant 0 : index
    %125 = vector.load %arg7[%c4_82, %c0_83, %c0_84] : memref<8x32x128xf32, #tpu.memory_space<vmem>>, vector<1x32x128xf32>
    %126 = vector.shape_cast %125 : vector<1x32x128xf32> to vector<32x128xf32>
    %127 = vector.shape_cast %124 : vector<32x128xf32> to vector<1x32x128xf32>
    tpu.vector_store %arg7[%c4_82, %c0_83, %c0_84], %127 {strides = array<i32>} : memref<8x32x128xf32, #tpu.memory_space<vmem>>, vector<1x32x128xf32>,
    %128 = arith.extui %121 : vector<32x128xi1> to vector<32x128xi32>
    %129 = arith.sitofp %128 : vector<32x128xi32> to vector<32x128xf32>
    %c0_85 = arith.constant 0 : index
    %c512 = arith.constant 512 : index
    %130 = vector.load %arg5[%c0_85, %c512] : memref<32x1024xf32, #tpu.memory_space<vmem>>, vector<32x128xf32>
    tpu.vector_store %arg5[%c0_85, %c512], %129 {strides = array<i32>} : memref<32x1024xf32, #tpu.memory_space<vmem>>, vector<32x128xf32>,
    %cst_86 = arith.constant 0.882467329 : f32
    %131 = vector.broadcast %cst_86 : f32 to vector<32x128xf32>
    %132 = arith.mulf %123, %131 : vector<32x128xf32>
    %c5 = arith.constant 5 : index
    %c0_87 = arith.constant 0 : index
    %c0_88 = arith.constant 0 : index
    %133 = vector.load %arg1[%c5, %c0_87, %c0_88] : memref<8x32x128xf32, #tpu.memory_space<vmem>>, vector<1x32x128xf32>
    %134 = vector.shape_cast %133 : vector<1x32x128xf32> to vector<32x128xf32>
    %135 = arith.addf %132, %134 : vector<32x128xf32>
    %c0_89 = arith.constant 0 : index
    %c0_90 = arith.constant 0 : index
    %c0_91 = arith.constant 0 : index
    %136 = vector.load %arg7[%c0_89, %c0_90, %c0_91] : memref<8x32x128xf32, #tpu.memory_space<vmem>>, vector<1x32x128xf32>
    %137 = vector.shape_cast %136 : vector<1x32x128xf32> to vector<32x128xf32>
    %cst_92 = arith.constant 0.569064379 : f32
    %138 = vector.broadcast %cst_92 : f32 to vector<32x128xf32>
    %139 = arith.mulf %137, %138 : vector<32x128xf32>
    %140 = arith.subf %135, %139 : vector<32x128xf32>
    %c1_93 = arith.constant 1 : index
    %c0_94 = arith.constant 0 : index
    %c0_95 = arith.constant 0 : index
    %141 = vector.load %arg7[%c1_93, %c0_94, %c0_95] : memref<8x32x128xf32, #tpu.memory_space<vmem>>, vector<1x32x128xf32>
    %142 = vector.shape_cast %141 : vector<1x32x128xf32> to vector<32x128xf32>
    %cst_96 = arith.constant 0.592465162 : f32
    %143 = vector.broadcast %cst_96 : f32 to vector<32x128xf32>
    %144 = arith.mulf %142, %143 : vector<32x128xf32>
    %145 = arith.subf %140, %144 : vector<32x128xf32>
    %c2_97 = arith.constant 2 : index
    %c0_98 = arith.constant 0 : index
    %c0_99 = arith.constant 0 : index
    %146 = vector.load %arg7[%c2_97, %c0_98, %c0_99] : memref<8x32x128xf32, #tpu.memory_space<vmem>>, vector<1x32x128xf32>
    %147 = vector.shape_cast %146 : vector<1x32x128xf32> to vector<32x128xf32>
    %cst_100 = arith.constant 0.623208463 : f32
    %148 = vector.broadcast %cst_100 : f32 to vector<32x128xf32>
    %149 = arith.mulf %147, %148 : vector<32x128xf32>
    %150 = arith.subf %145, %149 : vector<32x128xf32>
    %c3_101 = arith.constant 3 : index
    %c0_102 = arith.constant 0 : index
    %c0_103 = arith.constant 0 : index
    %151 = vector.load %arg7[%c3_101, %c0_102, %c0_103] : memref<8x32x128xf32, #tpu.memory_space<vmem>>, vector<1x32x128xf32>
    %152 = vector.shape_cast %151 : vector<1x32x128xf32> to vector<32x128xf32>
    %cst_104 = arith.constant 0.667123556 : f32
    %153 = vector.broadcast %cst_104 : f32 to vector<32x128xf32>
    %154 = arith.mulf %152, %153 : vector<32x128xf32>
    %155 = arith.subf %150, %154 : vector<32x128xf32>
    %c4_105 = arith.constant 4 : index
    %c0_106 = arith.constant 0 : index
    %c0_107 = arith.constant 0 : index
    %156 = vector.load %arg7[%c4_105, %c0_106, %c0_107] : memref<8x32x128xf32, #tpu.memory_space<vmem>>, vector<1x32x128xf32>
    %157 = vector.shape_cast %156 : vector<1x32x128xf32> to vector<32x128xf32>
    %cst_108 = arith.constant 0.741101146 : f32
    %158 = vector.broadcast %cst_108 : f32 to vector<32x128xf32>
    %159 = arith.mulf %157, %158 : vector<32x128xf32>
    %160 = arith.subf %155, %159 : vector<32x128xf32>
    %cst_109 = arith.constant 1.000000e+00 : f32
    %161 = vector.broadcast %cst_109 : f32 to vector<32x128xf32>
    %162 = arith.cmpf ogt, %160, %161 : vector<32x128xf32>
    %cst_110 = arith.constant 0.000000e+00 : f32
    %163 = vector.broadcast %cst_110 : f32 to vector<32x128xf32>
    %164 = arith.select %162, %163, %160 : vector<32x128xi1>, vector<32x128xf32>
    %165 = arith.subf %164, %123 : vector<32x128xf32>
    %c5_111 = arith.constant 5 : index
    %c0_112 = arith.constant 0 : index
    %c0_113 = arith.constant 0 : index
    %166 = vector.load %arg7[%c5_111, %c0_112, %c0_113] : memref<8x32x128xf32, #tpu.memory_space<vmem>>, vector<1x32x128xf32>
    %167 = vector.shape_cast %166 : vector<1x32x128xf32> to vector<32x128xf32>
    %168 = vector.shape_cast %165 : vector<32x128xf32> to vector<1x32x128xf32>
    tpu.vector_store %arg7[%c5_111, %c0_112, %c0_113], %168 {strides = array<i32>} : memref<8x32x128xf32, #tpu.memory_space<vmem>>, vector<1x32x128xf32>,
    %169 = arith.extui %162 : vector<32x128xi1> to vector<32x128xi32>
    %170 = arith.sitofp %169 : vector<32x128xi32> to vector<32x128xf32>
    %c0_114 = arith.constant 0 : index
    %c640 = arith.constant 640 : index
    %171 = vector.load %arg5[%c0_114, %c640] : memref<32x1024xf32, #tpu.memory_space<vmem>>, vector<32x128xf32>
    tpu.vector_store %arg5[%c0_114, %c640], %170 {strides = array<i32>} : memref<32x1024xf32, #tpu.memory_space<vmem>>, vector<32x128xf32>,
    %cst_115 = arith.constant 0.882467329 : f32
    %172 = vector.broadcast %cst_115 : f32 to vector<32x128xf32>
    %173 = arith.mulf %164, %172 : vector<32x128xf32>
    %c6 = arith.constant 6 : index
    %c0_116 = arith.constant 0 : index
    %c0_117 = arith.constant 0 : index
    %174 = vector.load %arg1[%c6, %c0_116, %c0_117] : memref<8x32x128xf32, #tpu.memory_space<vmem>>, vector<1x32x128xf32>
    %175 = vector.shape_cast %174 : vector<1x32x128xf32> to vector<32x128xf32>
    %176 = arith.addf %173, %175 : vector<32x128xf32>
    %c0_118 = arith.constant 0 : index
    %c0_119 = arith.constant 0 : index
    %c0_120 = arith.constant 0 : index
    %177 = vector.load %arg7[%c0_118, %c0_119, %c0_120] : memref<8x32x128xf32, #tpu.memory_space<vmem>>, vector<1x32x128xf32>
    %178 = vector.shape_cast %177 : vector<1x32x128xf32> to vector<32x128xf32>
    %cst_121 = arith.constant 0.550313652 : f32
    %179 = vector.broadcast %cst_121 : f32 to vector<32x128xf32>
    %180 = arith.mulf %178, %179 : vector<32x128xf32>
    %181 = arith.subf %176, %180 : vector<32x128xf32>
    %c1_122 = arith.constant 1 : index
    %c0_123 = arith.constant 0 : index
    %c0_124 = arith.constant 0 : index
    %182 = vector.load %arg7[%c1_122, %c0_123, %c0_124] : memref<8x32x128xf32, #tpu.memory_space<vmem>>, vector<1x32x128xf32>
    %183 = vector.shape_cast %182 : vector<1x32x128xf32> to vector<32x128xf32>
    %cst_125 = arith.constant 0.569064379 : f32
    %184 = vector.broadcast %cst_125 : f32 to vector<32x128xf32>
    %185 = arith.mulf %183, %184 : vector<32x128xf32>
    %186 = arith.subf %181, %185 : vector<32x128xf32>
    %c2_126 = arith.constant 2 : index
    %c0_127 = arith.constant 0 : index
    %c0_128 = arith.constant 0 : index
    %187 = vector.load %arg7[%c2_126, %c0_127, %c0_128] : memref<8x32x128xf32, #tpu.memory_space<vmem>>, vector<1x32x128xf32>
    %188 = vector.shape_cast %187 : vector<1x32x128xf32> to vector<32x128xf32>
    %cst_129 = arith.constant 0.592465162 : f32
    %189 = vector.broadcast %cst_129 : f32 to vector<32x128xf32>
    %190 = arith.mulf %188, %189 : vector<32x128xf32>
    %191 = arith.subf %186, %190 : vector<32x128xf32>
    %c3_130 = arith.constant 3 : index
    %c0_131 = arith.constant 0 : index
    %c0_132 = arith.constant 0 : index
    %192 = vector.load %arg7[%c3_130, %c0_131, %c0_132] : memref<8x32x128xf32, #tpu.memory_space<vmem>>, vector<1x32x128xf32>
    %193 = vector.shape_cast %192 : vector<1x32x128xf32> to vector<32x128xf32>
    %cst_133 = arith.constant 0.623208463 : f32
    %194 = vector.broadcast %cst_133 : f32 to vector<32x128xf32>
    %195 = arith.mulf %193, %194 : vector<32x128xf32>
    %196 = arith.subf %191, %195 : vector<32x128xf32>
    %c4_134 = arith.constant 4 : index
    %c0_135 = arith.constant 0 : index
    %c0_136 = arith.constant 0 : index
    %197 = vector.load %arg7[%c4_134, %c0_135, %c0_136] : memref<8x32x128xf32, #tpu.memory_space<vmem>>, vector<1x32x128xf32>
    %198 = vector.shape_cast %197 : vector<1x32x128xf32> to vector<32x128xf32>
    %cst_137 = arith.constant 0.667123556 : f32
    %199 = vector.broadcast %cst_137 : f32 to vector<32x128xf32>
    %200 = arith.mulf %198, %199 : vector<32x128xf32>
    %201 = arith.subf %196, %200 : vector<32x128xf32>
    %c5_138 = arith.constant 5 : index
    %c0_139 = arith.constant 0 : index
    %c0_140 = arith.constant 0 : index
    %202 = vector.load %arg7[%c5_138, %c0_139, %c0_140] : memref<8x32x128xf32, #tpu.memory_space<vmem>>, vector<1x32x128xf32>
    %203 = vector.shape_cast %202 : vector<1x32x128xf32> to vector<32x128xf32>
    %cst_141 = arith.constant 0.741101146 : f32
    %204 = vector.broadcast %cst_141 : f32 to vector<32x128xf32>
    %205 = arith.mulf %203, %204 : vector<32x128xf32>
    %206 = arith.subf %201, %205 : vector<32x128xf32>
    %cst_142 = arith.constant 1.000000e+00 : f32
    %207 = vector.broadcast %cst_142 : f32 to vector<32x128xf32>
    %208 = arith.cmpf ogt, %206, %207 : vector<32x128xf32>
    %cst_143 = arith.constant 0.000000e+00 : f32
    %209 = vector.broadcast %cst_143 : f32 to vector<32x128xf32>
    %210 = arith.select %208, %209, %206 : vector<32x128xi1>, vector<32x128xf32>
    %211 = arith.subf %210, %164 : vector<32x128xf32>
    %c6_144 = arith.constant 6 : index
    %c0_145 = arith.constant 0 : index
    %c0_146 = arith.constant 0 : index
    %212 = vector.load %arg7[%c6_144, %c0_145, %c0_146] : memref<8x32x128xf32, #tpu.memory_space<vmem>>, vector<1x32x128xf32>
    %213 = vector.shape_cast %212 : vector<1x32x128xf32> to vector<32x128xf32>
    %214 = vector.shape_cast %211 : vector<32x128xf32> to vector<1x32x128xf32>
    tpu.vector_store %arg7[%c6_144, %c0_145, %c0_146], %214 {strides = array<i32>} : memref<8x32x128xf32, #tpu.memory_space<vmem>>, vector<1x32x128xf32>,
    %215 = arith.extui %208 : vector<32x128xi1> to vector<32x128xi32>
    %216 = arith.sitofp %215 : vector<32x128xi32> to vector<32x128xf32>
    %c0_147 = arith.constant 0 : index
    %c768 = arith.constant 768 : index
    %217 = vector.load %arg5[%c0_147, %c768] : memref<32x1024xf32, #tpu.memory_space<vmem>>, vector<32x128xf32>
    tpu.vector_store %arg5[%c0_147, %c768], %216 {strides = array<i32>} : memref<32x1024xf32, #tpu.memory_space<vmem>>, vector<32x128xf32>,
    %cst_148 = arith.constant 0.882467329 : f32
    %218 = vector.broadcast %cst_148 : f32 to vector<32x128xf32>
    %219 = arith.mulf %210, %218 : vector<32x128xf32>
    %c7 = arith.constant 7 : index
    %c0_149 = arith.constant 0 : index
    %c0_150 = arith.constant 0 : index
    %220 = vector.load %arg1[%c7, %c0_149, %c0_150] : memref<8x32x128xf32, #tpu.memory_space<vmem>>, vector<1x32x128xf32>
    %221 = vector.shape_cast %220 : vector<1x32x128xf32> to vector<32x128xf32>
    %222 = arith.addf %219, %221 : vector<32x128xf32>
    %c0_151 = arith.constant 0 : index
    %c0_152 = arith.constant 0 : index
    %c0_153 = arith.constant 0 : index
    %223 = vector.load %arg7[%c0_151, %c0_152, %c0_153] : memref<8x32x128xf32, #tpu.memory_space<vmem>>, vector<1x32x128xf32>
    %224 = vector.shape_cast %223 : vector<1x32x128xf32> to vector<32x128xf32>
    %cst_154 = arith.constant 0.53475523 : f32
    %225 = vector.broadcast %cst_154 : f32 to vector<32x128xf32>
    %226 = arith.mulf %224, %225 : vector<32x128xf32>
    %227 = arith.subf %222, %226 : vector<32x128xf32>
    %c1_155 = arith.constant 1 : index
    %c0_156 = arith.constant 0 : index
    %c0_157 = arith.constant 0 : index
    %228 = vector.load %arg7[%c1_155, %c0_156, %c0_157] : memref<8x32x128xf32, #tpu.memory_space<vmem>>, vector<1x32x128xf32>
    %229 = vector.shape_cast %228 : vector<1x32x128xf32> to vector<32x128xf32>
    %cst_158 = arith.constant 0.550313652 : f32
    %230 = vector.broadcast %cst_158 : f32 to vector<32x128xf32>
    %231 = arith.mulf %229, %230 : vector<32x128xf32>
    %232 = arith.subf %227, %231 : vector<32x128xf32>
    %c2_159 = arith.constant 2 : index
    %c0_160 = arith.constant 0 : index
    %c0_161 = arith.constant 0 : index
    %233 = vector.load %arg7[%c2_159, %c0_160, %c0_161] : memref<8x32x128xf32, #tpu.memory_space<vmem>>, vector<1x32x128xf32>
    %234 = vector.shape_cast %233 : vector<1x32x128xf32> to vector<32x128xf32>
    %cst_162 = arith.constant 0.569064379 : f32
    %235 = vector.broadcast %cst_162 : f32 to vector<32x128xf32>
    %236 = arith.mulf %234, %235 : vector<32x128xf32>
    %237 = arith.subf %232, %236 : vector<32x128xf32>
    %c3_163 = arith.constant 3 : index
    %c0_164 = arith.constant 0 : index
    %c0_165 = arith.constant 0 : index
    %238 = vector.load %arg7[%c3_163, %c0_164, %c0_165] : memref<8x32x128xf32, #tpu.memory_space<vmem>>, vector<1x32x128xf32>
    %239 = vector.shape_cast %238 : vector<1x32x128xf32> to vector<32x128xf32>
    %cst_166 = arith.constant 0.592465162 : f32
    %240 = vector.broadcast %cst_166 : f32 to vector<32x128xf32>
    %241 = arith.mulf %239, %240 : vector<32x128xf32>
    %242 = arith.subf %237, %241 : vector<32x128xf32>
    %c4_167 = arith.constant 4 : index
    %c0_168 = arith.constant 0 : index
    %c0_169 = arith.constant 0 : index
    %243 = vector.load %arg7[%c4_167, %c0_168, %c0_169] : memref<8x32x128xf32, #tpu.memory_space<vmem>>, vector<1x32x128xf32>
    %244 = vector.shape_cast %243 : vector<1x32x128xf32> to vector<32x128xf32>
    %cst_170 = arith.constant 0.623208463 : f32
    %245 = vector.broadcast %cst_170 : f32 to vector<32x128xf32>
    %246 = arith.mulf %244, %245 : vector<32x128xf32>
    %247 = arith.subf %242, %246 : vector<32x128xf32>
    %c5_171 = arith.constant 5 : index
    %c0_172 = arith.constant 0 : index
    %c0_173 = arith.constant 0 : index
    %248 = vector.load %arg7[%c5_171, %c0_172, %c0_173] : memref<8x32x128xf32, #tpu.memory_space<vmem>>, vector<1x32x128xf32>
    %249 = vector.shape_cast %248 : vector<1x32x128xf32> to vector<32x128xf32>
    %cst_174 = arith.constant 0.667123556 : f32
    %250 = vector.broadcast %cst_174 : f32 to vector<32x128xf32>
    %251 = arith.mulf %249, %250 : vector<32x128xf32>
    %252 = arith.subf %247, %251 : vector<32x128xf32>
    %c6_175 = arith.constant 6 : index
    %c0_176 = arith.constant 0 : index
    %c0_177 = arith.constant 0 : index
    %253 = vector.load %arg7[%c6_175, %c0_176, %c0_177] : memref<8x32x128xf32, #tpu.memory_space<vmem>>, vector<1x32x128xf32>
    %254 = vector.shape_cast %253 : vector<1x32x128xf32> to vector<32x128xf32>
    %cst_178 = arith.constant 0.741101146 : f32
    %255 = vector.broadcast %cst_178 : f32 to vector<32x128xf32>
    %256 = arith.mulf %254, %255 : vector<32x128xf32>
    %257 = arith.subf %252, %256 : vector<32x128xf32>
    %cst_179 = arith.constant 1.000000e+00 : f32
    %258 = vector.broadcast %cst_179 : f32 to vector<32x128xf32>
    %259 = arith.cmpf ogt, %257, %258 : vector<32x128xf32>
    %cst_180 = arith.constant 0.000000e+00 : f32
    %260 = vector.broadcast %cst_180 : f32 to vector<32x128xf32>
    %261 = arith.select %259, %260, %257 : vector<32x128xi1>, vector<32x128xf32>
    %262 = arith.subf %261, %210 : vector<32x128xf32>
    %c7_181 = arith.constant 7 : index
    %c0_182 = arith.constant 0 : index
    %c0_183 = arith.constant 0 : index
    %263 = vector.load %arg7[%c7_181, %c0_182, %c0_183] : memref<8x32x128xf32, #tpu.memory_space<vmem>>, vector<1x32x128xf32>
    %264 = vector.shape_cast %263 : vector<1x32x128xf32> to vector<32x128xf32>
    %265 = vector.shape_cast %262 : vector<32x128xf32> to vector<1x32x128xf32>
    tpu.vector_store %arg7[%c7_181, %c0_182, %c0_183], %265 {strides = array<i32>} : memref<8x32x128xf32, #tpu.memory_space<vmem>>, vector<1x32x128xf32>,
    %266 = arith.extui %259 : vector<32x128xi1> to vector<32x128xi32>
    %267 = arith.sitofp %266 : vector<32x128xi32> to vector<32x128xf32>
    %c0_184 = arith.constant 0 : index
    %c896 = arith.constant 896 : index
    %268 = vector.load %arg5[%c0_184, %c896] : memref<32x1024xf32, #tpu.memory_space<vmem>>, vector<32x128xf32>
    tpu.vector_store %arg5[%c0_184, %c896], %267 {strides = array<i32>} : memref<32x1024xf32, #tpu.memory_space<vmem>>, vector<32x128xf32>,
    %c0_185 = arith.constant 0 : index
    %c0_186 = arith.constant 0 : index
    %269 = vector.load %arg2[%c0_185, %c0_186] : memref<16x32xf32, #tpu.memory_space<vmem>>, vector<16x32xf32>
    %c0_187 = arith.constant 0 : index
    %c0_188 = arith.constant 0 : index
    %270 = vector.load %arg5[%c0_187, %c0_188] : memref<32x1024xf32, #tpu.memory_space<vmem>>, vector<32x1024xf32>
    %cst_189 = arith.constant dense<0.000000e+00> : vector<16x1024xf32>
    %271 = tpu.matmul %269, %270, %cst_189 {dimension_numbers = #tpu.dot_dimension_numbers<[1], [0], [0], [1], [0, 0, 1, 1], [], []>} : vector<16x32xf32>, vector<32x1024xf32>, vector<16x1024xf32> -> vector<16x1024xf32>
    %c0_190 = arith.constant 0 : index
    %c0_191 = arith.constant 0 : index
    %272 = vector.load %arg6[%c0_190, %c0_191] : memref<16x1024xf32, #tpu.memory_space<vmem>>, vector<16x1024xf32>
    tpu.vector_store %arg6[%c0_190, %c0_191], %271 {strides = array<i32>} : memref<16x1024xf32, #tpu.memory_space<vmem>>, vector<16x1024xf32>,
    %cst_192 = arith.constant 0.000000e+00 : f32
    %273 = vector.broadcast %cst_192 : f32 to vector<16x128xf32>
    %cst_193 = arith.constant 0.882467329 : f32
    %274 = vector.broadcast %cst_193 : f32 to vector<16x128xf32>
    %275 = arith.mulf %273, %274 : vector<16x128xf32>
    %c0_194 = arith.constant 0 : index
    %c0_195 = arith.constant 0 : index
    %276 = vector.load %arg6[%c0_194, %c0_195] : memref<16x1024xf32, #tpu.memory_space<vmem>>, vector<16x128xf32>
    %277 = arith.addf %275, %276 : vector<16x128xf32>
    %cst_196 = arith.constant 1.000000e+00 : f32
    %278 = vector.broadcast %cst_196 : f32 to vector<16x128xf32>
    %279 = arith.cmpf ogt, %277, %278 : vector<16x128xf32>
    %cst_197 = arith.constant 0.000000e+00 : f32
    %280 = vector.broadcast %cst_197 : f32 to vector<16x128xf32>
    %281 = arith.select %279, %280, %277 : vector<16x128xi1>, vector<16x128xf32>
    %282 = arith.subf %281, %273 : vector<16x128xf32>
    %c0_198 = arith.constant 0 : index
    %c0_199 = arith.constant 0 : index
    %c0_200 = arith.constant 0 : index
    %283 = vector.load %arg8[%c0_198, %c0_199, %c0_200] : memref<8x16x128xf32, #tpu.memory_space<vmem>>, vector<1x16x128xf32>
    %284 = vector.shape_cast %283 : vector<1x16x128xf32> to vector<16x128xf32>
    %285 = vector.shape_cast %282 : vector<16x128xf32> to vector<1x16x128xf32>
    tpu.vector_store %arg8[%c0_198, %c0_199, %c0_200], %285 {strides = array<i32>} : memref<8x16x128xf32, #tpu.memory_space<vmem>>, vector<1x16x128xf32>,
    %286 = arith.extui %279 : vector<16x128xi1> to vector<16x128xi32>
    %287 = arith.sitofp %286 : vector<16x128xi32> to vector<16x128xf32>
    %c0_201 = arith.constant 0 : index
    %c0_202 = arith.constant 0 : index
    %c0_203 = arith.constant 0 : index
    %288 = vector.load %arg3[%c0_201, %c0_202, %c0_203] : memref<8x16x128xf32, #tpu.memory_space<vmem>>, vector<1x16x128xf32>
    %289 = vector.shape_cast %288 : vector<1x16x128xf32> to vector<16x128xf32>
    %290 = vector.shape_cast %287 : vector<16x128xf32> to vector<1x16x128xf32>
    tpu.vector_store %arg3[%c0_201, %c0_202, %c0_203], %290 {strides = array<i32>} : memref<8x16x128xf32, #tpu.memory_space<vmem>>, vector<1x16x128xf32>,
    %c0_204 = arith.constant 0 : index
    %c0_205 = arith.constant 0 : index
    %c0_206 = arith.constant 0 : index
    %291 = vector.load %arg4[%c0_204, %c0_205, %c0_206] : memref<8x16x128xf32, #tpu.memory_space<vmem>>, vector<1x16x128xf32>
    %292 = vector.shape_cast %291 : vector<1x16x128xf32> to vector<16x128xf32>
    %293 = vector.shape_cast %281 : vector<16x128xf32> to vector<1x16x128xf32>
    tpu.vector_store %arg4[%c0_204, %c0_205, %c0_206], %293 {strides = array<i32>} : memref<8x16x128xf32, #tpu.memory_space<vmem>>, vector<1x16x128xf32>,
    %cst_207 = arith.constant 0.882467329 : f32
    %294 = vector.broadcast %cst_207 : f32 to vector<16x128xf32>
    %295 = arith.mulf %281, %294 : vector<16x128xf32>
    %c0_208 = arith.constant 0 : index
    %c128_209 = arith.constant 128 : index
    %296 = vector.load %arg6[%c0_208, %c128_209] : memref<16x1024xf32, #tpu.memory_space<vmem>>, vector<16x128xf32>
    %297 = arith.addf %295, %296 : vector<16x128xf32>
    %c0_210 = arith.constant 0 : index
    %c0_211 = arith.constant 0 : index
    %c0_212 = arith.constant 0 : index
    %298 = vector.load %arg8[%c0_210, %c0_211, %c0_212] : memref<8x16x128xf32, #tpu.memory_space<vmem>>, vector<1x16x128xf32>
    %299 = vector.shape_cast %298 : vector<1x16x128xf32> to vector<16x128xf32>
    %cst_213 = arith.constant 0.741101146 : f32
    %300 = vector.broadcast %cst_213 : f32 to vector<16x128xf32>
    %301 = arith.mulf %299, %300 : vector<16x128xf32>
    %302 = arith.subf %297, %301 : vector<16x128xf32>
    %cst_214 = arith.constant 1.000000e+00 : f32
    %303 = vector.broadcast %cst_214 : f32 to vector<16x128xf32>
    %304 = arith.cmpf ogt, %302, %303 : vector<16x128xf32>
    %cst_215 = arith.constant 0.000000e+00 : f32
    %305 = vector.broadcast %cst_215 : f32 to vector<16x128xf32>
    %306 = arith.select %304, %305, %302 : vector<16x128xi1>, vector<16x128xf32>
    %307 = arith.subf %306, %281 : vector<16x128xf32>
    %c1_216 = arith.constant 1 : index
    %c0_217 = arith.constant 0 : index
    %c0_218 = arith.constant 0 : index
    %308 = vector.load %arg8[%c1_216, %c0_217, %c0_218] : memref<8x16x128xf32, #tpu.memory_space<vmem>>, vector<1x16x128xf32>
    %309 = vector.shape_cast %308 : vector<1x16x128xf32> to vector<16x128xf32>
    %310 = vector.shape_cast %307 : vector<16x128xf32> to vector<1x16x128xf32>
    tpu.vector_store %arg8[%c1_216, %c0_217, %c0_218], %310 {strides = array<i32>} : memref<8x16x128xf32, #tpu.memory_space<vmem>>, vector<1x16x128xf32>,
    %311 = arith.extui %304 : vector<16x128xi1> to vector<16x128xi32>
    %312 = arith.sitofp %311 : vector<16x128xi32> to vector<16x128xf32>
    %c1_219 = arith.constant 1 : index
    %c0_220 = arith.constant 0 : index
    %c0_221 = arith.constant 0 : index
    %313 = vector.load %arg3[%c1_219, %c0_220, %c0_221] : memref<8x16x128xf32, #tpu.memory_space<vmem>>, vector<1x16x128xf32>
    %314 = vector.shape_cast %313 : vector<1x16x128xf32> to vector<16x128xf32>
    %315 = vector.shape_cast %312 : vector<16x128xf32> to vector<1x16x128xf32>
    tpu.vector_store %arg3[%c1_219, %c0_220, %c0_221], %315 {strides = array<i32>} : memref<8x16x128xf32, #tpu.memory_space<vmem>>, vector<1x16x128xf32>,
    %c1_222 = arith.constant 1 : index
    %c0_223 = arith.constant 0 : index
    %c0_224 = arith.constant 0 : index
    %316 = vector.load %arg4[%c1_222, %c0_223, %c0_224] : memref<8x16x128xf32, #tpu.memory_space<vmem>>, vector<1x16x128xf32>
    %317 = vector.shape_cast %316 : vector<1x16x128xf32> to vector<16x128xf32>
    %318 = vector.shape_cast %306 : vector<16x128xf32> to vector<1x16x128xf32>
    tpu.vector_store %arg4[%c1_222, %c0_223, %c0_224], %318 {strides = array<i32>} : memref<8x16x128xf32, #tpu.memory_space<vmem>>, vector<1x16x128xf32>,
    %cst_225 = arith.constant 0.882467329 : f32
    %319 = vector.broadcast %cst_225 : f32 to vector<16x128xf32>
    %320 = arith.mulf %306, %319 : vector<16x128xf32>
    %c0_226 = arith.constant 0 : index
    %c256_227 = arith.constant 256 : index
    %321 = vector.load %arg6[%c0_226, %c256_227] : memref<16x1024xf32, #tpu.memory_space<vmem>>, vector<16x128xf32>
    %322 = arith.addf %320, %321 : vector<16x128xf32>
    %c0_228 = arith.constant 0 : index
    %c0_229 = arith.constant 0 : index
    %c0_230 = arith.constant 0 : index
    %323 = vector.load %arg8[%c0_228, %c0_229, %c0_230] : memref<8x16x128xf32, #tpu.memory_space<vmem>>, vector<1x16x128xf32>
    %324 = vector.shape_cast %323 : vector<1x16x128xf32> to vector<16x128xf32>
    %cst_231 = arith.constant 0.667123556 : f32
    %325 = vector.broadcast %cst_231 : f32 to vector<16x128xf32>
    %326 = arith.mulf %324, %325 : vector<16x128xf32>
    %327 = arith.subf %322, %326 : vector<16x128xf32>
    %c1_232 = arith.constant 1 : index
    %c0_233 = arith.constant 0 : index
    %c0_234 = arith.constant 0 : index
    %328 = vector.load %arg8[%c1_232, %c0_233, %c0_234] : memref<8x16x128xf32, #tpu.memory_space<vmem>>, vector<1x16x128xf32>
    %329 = vector.shape_cast %328 : vector<1x16x128xf32> to vector<16x128xf32>
    %cst_235 = arith.constant 0.741101146 : f32
    %330 = vector.broadcast %cst_235 : f32 to vector<16x128xf32>
    %331 = arith.mulf %329, %330 : vector<16x128xf32>
    %332 = arith.subf %327, %331 : vector<16x128xf32>
    %cst_236 = arith.constant 1.000000e+00 : f32
    %333 = vector.broadcast %cst_236 : f32 to vector<16x128xf32>
    %334 = arith.cmpf ogt, %332, %333 : vector<16x128xf32>
    %cst_237 = arith.constant 0.000000e+00 : f32
    %335 = vector.broadcast %cst_237 : f32 to vector<16x128xf32>
    %336 = arith.select %334, %335, %332 : vector<16x128xi1>, vector<16x128xf32>
    %337 = arith.subf %336, %306 : vector<16x128xf32>
    %c2_238 = arith.constant 2 : index
    %c0_239 = arith.constant 0 : index
    %c0_240 = arith.constant 0 : index
    %338 = vector.load %arg8[%c2_238, %c0_239, %c0_240] : memref<8x16x128xf32, #tpu.memory_space<vmem>>, vector<1x16x128xf32>
    %339 = vector.shape_cast %338 : vector<1x16x128xf32> to vector<16x128xf32>
    %340 = vector.shape_cast %337 : vector<16x128xf32> to vector<1x16x128xf32>
    tpu.vector_store %arg8[%c2_238, %c0_239, %c0_240], %340 {strides = array<i32>} : memref<8x16x128xf32, #tpu.memory_space<vmem>>, vector<1x16x128xf32>,
    %341 = arith.extui %334 : vector<16x128xi1> to vector<16x128xi32>
    %342 = arith.sitofp %341 : vector<16x128xi32> to vector<16x128xf32>
    %c2_241 = arith.constant 2 : index
    %c0_242 = arith.constant 0 : index
    %c0_243 = arith.constant 0 : index
    %343 = vector.load %arg3[%c2_241, %c0_242, %c0_243] : memref<8x16x128xf32, #tpu.memory_space<vmem>>, vector<1x16x128xf32>
    %344 = vector.shape_cast %343 : vector<1x16x128xf32> to vector<16x128xf32>
    %345 = vector.shape_cast %342 : vector<16x128xf32> to vector<1x16x128xf32>
    tpu.vector_store %arg3[%c2_241, %c0_242, %c0_243], %345 {strides = array<i32>} : memref<8x16x128xf32, #tpu.memory_space<vmem>>, vector<1x16x128xf32>,
    %c2_244 = arith.constant 2 : index
    %c0_245 = arith.constant 0 : index
    %c0_246 = arith.constant 0 : index
    %346 = vector.load %arg4[%c2_244, %c0_245, %c0_246] : memref<8x16x128xf32, #tpu.memory_space<vmem>>, vector<1x16x128xf32>
    %347 = vector.shape_cast %346 : vector<1x16x128xf32> to vector<16x128xf32>
    %348 = vector.shape_cast %336 : vector<16x128xf32> to vector<1x16x128xf32>
    tpu.vector_store %arg4[%c2_244, %c0_245, %c0_246], %348 {strides = array<i32>} : memref<8x16x128xf32, #tpu.memory_space<vmem>>, vector<1x16x128xf32>,
    %cst_247 = arith.constant 0.882467329 : f32
    %349 = vector.broadcast %cst_247 : f32 to vector<16x128xf32>
    %350 = arith.mulf %336, %349 : vector<16x128xf32>
    %c0_248 = arith.constant 0 : index
    %c384_249 = arith.constant 384 : index
    %351 = vector.load %arg6[%c0_248, %c384_249] : memref<16x1024xf32, #tpu.memory_space<vmem>>, vector<16x128xf32>
    %352 = arith.addf %350, %351 : vector<16x128xf32>
    %c0_250 = arith.constant 0 : index
    %c0_251 = arith.constant 0 : index
    %c0_252 = arith.constant 0 : index
    %353 = vector.load %arg8[%c0_250, %c0_251, %c0_252] : memref<8x16x128xf32, #tpu.memory_space<vmem>>, vector<1x16x128xf32>
    %354 = vector.shape_cast %353 : vector<1x16x128xf32> to vector<16x128xf32>
    %cst_253 = arith.constant 0.623208463 : f32
    %355 = vector.broadcast %cst_253 : f32 to vector<16x128xf32>
    %356 = arith.mulf %354, %355 : vector<16x128xf32>
    %357 = arith.subf %352, %356 : vector<16x128xf32>
    %c1_254 = arith.constant 1 : index
    %c0_255 = arith.constant 0 : index
    %c0_256 = arith.constant 0 : index
    %358 = vector.load %arg8[%c1_254, %c0_255, %c0_256] : memref<8x16x128xf32, #tpu.memory_space<vmem>>, vector<1x16x128xf32>
    %359 = vector.shape_cast %358 : vector<1x16x128xf32> to vector<16x128xf32>
    %cst_257 = arith.constant 0.667123556 : f32
    %360 = vector.broadcast %cst_257 : f32 to vector<16x128xf32>
    %361 = arith.mulf %359, %360 : vector<16x128xf32>
    %362 = arith.subf %357, %361 : vector<16x128xf32>
    %c2_258 = arith.constant 2 : index
    %c0_259 = arith.constant 0 : index
    %c0_260 = arith.constant 0 : index
    %363 = vector.load %arg8[%c2_258, %c0_259, %c0_260] : memref<8x16x128xf32, #tpu.memory_space<vmem>>, vector<1x16x128xf32>
    %364 = vector.shape_cast %363 : vector<1x16x128xf32> to vector<16x128xf32>
    %cst_261 = arith.constant 0.741101146 : f32
    %365 = vector.broadcast %cst_261 : f32 to vector<16x128xf32>
    %366 = arith.mulf %364, %365 : vector<16x128xf32>
    %367 = arith.subf %362, %366 : vector<16x128xf32>
    %cst_262 = arith.constant 1.000000e+00 : f32
    %368 = vector.broadcast %cst_262 : f32 to vector<16x128xf32>
    %369 = arith.cmpf ogt, %367, %368 : vector<16x128xf32>
    %cst_263 = arith.constant 0.000000e+00 : f32
    %370 = vector.broadcast %cst_263 : f32 to vector<16x128xf32>
    %371 = arith.select %369, %370, %367 : vector<16x128xi1>, vector<16x128xf32>
    %372 = arith.subf %371, %336 : vector<16x128xf32>
    %c3_264 = arith.constant 3 : index
    %c0_265 = arith.constant 0 : index
    %c0_266 = arith.constant 0 : index
    %373 = vector.load %arg8[%c3_264, %c0_265, %c0_266] : memref<8x16x128xf32, #tpu.memory_space<vmem>>, vector<1x16x128xf32>
    %374 = vector.shape_cast %373 : vector<1x16x128xf32> to vector<16x128xf32>
    %375 = vector.shape_cast %372 : vector<16x128xf32> to vector<1x16x128xf32>
    tpu.vector_store %arg8[%c3_264, %c0_265, %c0_266], %375 {strides = array<i32>} : memref<8x16x128xf32, #tpu.memory_space<vmem>>, vector<1x16x128xf32>,
    %376 = arith.extui %369 : vector<16x128xi1> to vector<16x128xi32>
    %377 = arith.sitofp %376 : vector<16x128xi32> to vector<16x128xf32>
    %c3_267 = arith.constant 3 : index
    %c0_268 = arith.constant 0 : index
    %c0_269 = arith.constant 0 : index
    %378 = vector.load %arg3[%c3_267, %c0_268, %c0_269] : memref<8x16x128xf32, #tpu.memory_space<vmem>>, vector<1x16x128xf32>
    %379 = vector.shape_cast %378 : vector<1x16x128xf32> to vector<16x128xf32>
    %380 = vector.shape_cast %377 : vector<16x128xf32> to vector<1x16x128xf32>
    tpu.vector_store %arg3[%c3_267, %c0_268, %c0_269], %380 {strides = array<i32>} : memref<8x16x128xf32, #tpu.memory_space<vmem>>, vector<1x16x128xf32>,
    %c3_270 = arith.constant 3 : index
    %c0_271 = arith.constant 0 : index
    %c0_272 = arith.constant 0 : index
    %381 = vector.load %arg4[%c3_270, %c0_271, %c0_272] : memref<8x16x128xf32, #tpu.memory_space<vmem>>, vector<1x16x128xf32>
    %382 = vector.shape_cast %381 : vector<1x16x128xf32> to vector<16x128xf32>
    %383 = vector.shape_cast %371 : vector<16x128xf32> to vector<1x16x128xf32>
    tpu.vector_store %arg4[%c3_270, %c0_271, %c0_272], %383 {strides = array<i32>} : memref<8x16x128xf32, #tpu.memory_space<vmem>>, vector<1x16x128xf32>,
    %cst_273 = arith.constant 0.882467329 : f32
    %384 = vector.broadcast %cst_273 : f32 to vector<16x128xf32>
    %385 = arith.mulf %371, %384 : vector<16x128xf32>
    %c0_274 = arith.constant 0 : index
    %c512_275 = arith.constant 512 : index
    %386 = vector.load %arg6[%c0_274, %c512_275] : memref<16x1024xf32, #tpu.memory_space<vmem>>, vector<16x128xf32>
    %387 = arith.addf %385, %386 : vector<16x128xf32>
    %c0_276 = arith.constant 0 : index
    %c0_277 = arith.constant 0 : index
    %c0_278 = arith.constant 0 : index
    %388 = vector.load %arg8[%c0_276, %c0_277, %c0_278] : memref<8x16x128xf32, #tpu.memory_space<vmem>>, vector<1x16x128xf32>
    %389 = vector.shape_cast %388 : vector<1x16x128xf32> to vector<16x128xf32>
    %cst_279 = arith.constant 0.592465162 : f32
    %390 = vector.broadcast %cst_279 : f32 to vector<16x128xf32>
    %391 = arith.mulf %389, %390 : vector<16x128xf32>
    %392 = arith.subf %387, %391 : vector<16x128xf32>
    %c1_280 = arith.constant 1 : index
    %c0_281 = arith.constant 0 : index
    %c0_282 = arith.constant 0 : index
    %393 = vector.load %arg8[%c1_280, %c0_281, %c0_282] : memref<8x16x128xf32, #tpu.memory_space<vmem>>, vector<1x16x128xf32>
    %394 = vector.shape_cast %393 : vector<1x16x128xf32> to vector<16x128xf32>
    %cst_283 = arith.constant 0.623208463 : f32
    %395 = vector.broadcast %cst_283 : f32 to vector<16x128xf32>
    %396 = arith.mulf %394, %395 : vector<16x128xf32>
    %397 = arith.subf %392, %396 : vector<16x128xf32>
    %c2_284 = arith.constant 2 : index
    %c0_285 = arith.constant 0 : index
    %c0_286 = arith.constant 0 : index
    %398 = vector.load %arg8[%c2_284, %c0_285, %c0_286] : memref<8x16x128xf32, #tpu.memory_space<vmem>>, vector<1x16x128xf32>
    %399 = vector.shape_cast %398 : vector<1x16x128xf32> to vector<16x128xf32>
    %cst_287 = arith.constant 0.667123556 : f32
    %400 = vector.broadcast %cst_287 : f32 to vector<16x128xf32>
    %401 = arith.mulf %399, %400 : vector<16x128xf32>
    %402 = arith.subf %397, %401 : vector<16x128xf32>
    %c3_288 = arith.constant 3 : index
    %c0_289 = arith.constant 0 : index
    %c0_290 = arith.constant 0 : index
    %403 = vector.load %arg8[%c3_288, %c0_289, %c0_290] : memref<8x16x128xf32, #tpu.memory_space<vmem>>, vector<1x16x128xf32>
    %404 = vector.shape_cast %403 : vector<1x16x128xf32> to vector<16x128xf32>
    %cst_291 = arith.constant 0.741101146 : f32
    %405 = vector.broadcast %cst_291 : f32 to vector<16x128xf32>
    %406 = arith.mulf %404, %405 : vector<16x128xf32>
    %407 = arith.subf %402, %406 : vector<16x128xf32>
    %cst_292 = arith.constant 1.000000e+00 : f32
    %408 = vector.broadcast %cst_292 : f32 to vector<16x128xf32>
    %409 = arith.cmpf ogt, %407, %408 : vector<16x128xf32>
    %cst_293 = arith.constant 0.000000e+00 : f32
    %410 = vector.broadcast %cst_293 : f32 to vector<16x128xf32>
    %411 = arith.select %409, %410, %407 : vector<16x128xi1>, vector<16x128xf32>
    %412 = arith.subf %411, %371 : vector<16x128xf32>
    %c4_294 = arith.constant 4 : index
    %c0_295 = arith.constant 0 : index
    %c0_296 = arith.constant 0 : index
    %413 = vector.load %arg8[%c4_294, %c0_295, %c0_296] : memref<8x16x128xf32, #tpu.memory_space<vmem>>, vector<1x16x128xf32>
    %414 = vector.shape_cast %413 : vector<1x16x128xf32> to vector<16x128xf32>
    %415 = vector.shape_cast %412 : vector<16x128xf32> to vector<1x16x128xf32>
    tpu.vector_store %arg8[%c4_294, %c0_295, %c0_296], %415 {strides = array<i32>} : memref<8x16x128xf32, #tpu.memory_space<vmem>>, vector<1x16x128xf32>,
    %416 = arith.extui %409 : vector<16x128xi1> to vector<16x128xi32>
    %417 = arith.sitofp %416 : vector<16x128xi32> to vector<16x128xf32>
    %c4_297 = arith.constant 4 : index
    %c0_298 = arith.constant 0 : index
    %c0_299 = arith.constant 0 : index
    %418 = vector.load %arg3[%c4_297, %c0_298, %c0_299] : memref<8x16x128xf32, #tpu.memory_space<vmem>>, vector<1x16x128xf32>
    %419 = vector.shape_cast %418 : vector<1x16x128xf32> to vector<16x128xf32>
    %420 = vector.shape_cast %417 : vector<16x128xf32> to vector<1x16x128xf32>
    tpu.vector_store %arg3[%c4_297, %c0_298, %c0_299], %420 {strides = array<i32>} : memref<8x16x128xf32, #tpu.memory_space<vmem>>, vector<1x16x128xf32>,
    %c4_300 = arith.constant 4 : index
    %c0_301 = arith.constant 0 : index
    %c0_302 = arith.constant 0 : index
    %421 = vector.load %arg4[%c4_300, %c0_301, %c0_302] : memref<8x16x128xf32, #tpu.memory_space<vmem>>, vector<1x16x128xf32>
    %422 = vector.shape_cast %421 : vector<1x16x128xf32> to vector<16x128xf32>
    %423 = vector.shape_cast %411 : vector<16x128xf32> to vector<1x16x128xf32>
    tpu.vector_store %arg4[%c4_300, %c0_301, %c0_302], %423 {strides = array<i32>} : memref<8x16x128xf32, #tpu.memory_space<vmem>>, vector<1x16x128xf32>,
    %cst_303 = arith.constant 0.882467329 : f32
    %424 = vector.broadcast %cst_303 : f32 to vector<16x128xf32>
    %425 = arith.mulf %411, %424 : vector<16x128xf32>
    %c0_304 = arith.constant 0 : index
    %c640_305 = arith.constant 640 : index
    %426 = vector.load %arg6[%c0_304, %c640_305] : memref<16x1024xf32, #tpu.memory_space<vmem>>, vector<16x128xf32>
    %427 = arith.addf %425, %426 : vector<16x128xf32>
    %c0_306 = arith.constant 0 : index
    %c0_307 = arith.constant 0 : index
    %c0_308 = arith.constant 0 : index
    %428 = vector.load %arg8[%c0_306, %c0_307, %c0_308] : memref<8x16x128xf32, #tpu.memory_space<vmem>>, vector<1x16x128xf32>
    %429 = vector.shape_cast %428 : vector<1x16x128xf32> to vector<16x128xf32>
    %cst_309 = arith.constant 0.569064379 : f32
    %430 = vector.broadcast %cst_309 : f32 to vector<16x128xf32>
    %431 = arith.mulf %429, %430 : vector<16x128xf32>
    %432 = arith.subf %427, %431 : vector<16x128xf32>
    %c1_310 = arith.constant 1 : index
    %c0_311 = arith.constant 0 : index
    %c0_312 = arith.constant 0 : index
    %433 = vector.load %arg8[%c1_310, %c0_311, %c0_312] : memref<8x16x128xf32, #tpu.memory_space<vmem>>, vector<1x16x128xf32>
    %434 = vector.shape_cast %433 : vector<1x16x128xf32> to vector<16x128xf32>
    %cst_313 = arith.constant 0.592465162 : f32
    %435 = vector.broadcast %cst_313 : f32 to vector<16x128xf32>
    %436 = arith.mulf %434, %435 : vector<16x128xf32>
    %437 = arith.subf %432, %436 : vector<16x128xf32>
    %c2_314 = arith.constant 2 : index
    %c0_315 = arith.constant 0 : index
    %c0_316 = arith.constant 0 : index
    %438 = vector.load %arg8[%c2_314, %c0_315, %c0_316] : memref<8x16x128xf32, #tpu.memory_space<vmem>>, vector<1x16x128xf32>
    %439 = vector.shape_cast %438 : vector<1x16x128xf32> to vector<16x128xf32>
    %cst_317 = arith.constant 0.623208463 : f32
    %440 = vector.broadcast %cst_317 : f32 to vector<16x128xf32>
    %441 = arith.mulf %439, %440 : vector<16x128xf32>
    %442 = arith.subf %437, %441 : vector<16x128xf32>
    %c3_318 = arith.constant 3 : index
    %c0_319 = arith.constant 0 : index
    %c0_320 = arith.constant 0 : index
    %443 = vector.load %arg8[%c3_318, %c0_319, %c0_320] : memref<8x16x128xf32, #tpu.memory_space<vmem>>, vector<1x16x128xf32>
    %444 = vector.shape_cast %443 : vector<1x16x128xf32> to vector<16x128xf32>
    %cst_321 = arith.constant 0.667123556 : f32
    %445 = vector.broadcast %cst_321 : f32 to vector<16x128xf32>
    %446 = arith.mulf %444, %445 : vector<16x128xf32>
    %447 = arith.subf %442, %446 : vector<16x128xf32>
    %c4_322 = arith.constant 4 : index
    %c0_323 = arith.constant 0 : index
    %c0_324 = arith.constant 0 : index
    %448 = vector.load %arg8[%c4_322, %c0_323, %c0_324] : memref<8x16x128xf32, #tpu.memory_space<vmem>>, vector<1x16x128xf32>
    %449 = vector.shape_cast %448 : vector<1x16x128xf32> to vector<16x128xf32>
    %cst_325 = arith.constant 0.741101146 : f32
    %450 = vector.broadcast %cst_325 : f32 to vector<16x128xf32>
    %451 = arith.mulf %449, %450 : vector<16x128xf32>
    %452 = arith.subf %447, %451 : vector<16x128xf32>
    %cst_326 = arith.constant 1.000000e+00 : f32
    %453 = vector.broadcast %cst_326 : f32 to vector<16x128xf32>
    %454 = arith.cmpf ogt, %452, %453 : vector<16x128xf32>
    %cst_327 = arith.constant 0.000000e+00 : f32
    %455 = vector.broadcast %cst_327 : f32 to vector<16x128xf32>
    %456 = arith.select %454, %455, %452 : vector<16x128xi1>, vector<16x128xf32>
    %457 = arith.subf %456, %411 : vector<16x128xf32>
    %c5_328 = arith.constant 5 : index
    %c0_329 = arith.constant 0 : index
    %c0_330 = arith.constant 0 : index
    %458 = vector.load %arg8[%c5_328, %c0_329, %c0_330] : memref<8x16x128xf32, #tpu.memory_space<vmem>>, vector<1x16x128xf32>
    %459 = vector.shape_cast %458 : vector<1x16x128xf32> to vector<16x128xf32>
    %460 = vector.shape_cast %457 : vector<16x128xf32> to vector<1x16x128xf32>
    tpu.vector_store %arg8[%c5_328, %c0_329, %c0_330], %460 {strides = array<i32>} : memref<8x16x128xf32, #tpu.memory_space<vmem>>, vector<1x16x128xf32>,
    %461 = arith.extui %454 : vector<16x128xi1> to vector<16x128xi32>
    %462 = arith.sitofp %461 : vector<16x128xi32> to vector<16x128xf32>
    %c5_331 = arith.constant 5 : index
    %c0_332 = arith.constant 0 : index
    %c0_333 = arith.constant 0 : index
    %463 = vector.load %arg3[%c5_331, %c0_332, %c0_333] : memref<8x16x128xf32, #tpu.memory_space<vmem>>, vector<1x16x128xf32>
    %464 = vector.shape_cast %463 : vector<1x16x128xf32> to vector<16x128xf32>
    %465 = vector.shape_cast %462 : vector<16x128xf32> to vector<1x16x128xf32>
    tpu.vector_store %arg3[%c5_331, %c0_332, %c0_333], %465 {strides = array<i32>} : memref<8x16x128xf32, #tpu.memory_space<vmem>>, vector<1x16x128xf32>,
    %c5_334 = arith.constant 5 : index
    %c0_335 = arith.constant 0 : index
    %c0_336 = arith.constant 0 : index
    %466 = vector.load %arg4[%c5_334, %c0_335, %c0_336] : memref<8x16x128xf32, #tpu.memory_space<vmem>>, vector<1x16x128xf32>
    %467 = vector.shape_cast %466 : vector<1x16x128xf32> to vector<16x128xf32>
    %468 = vector.shape_cast %456 : vector<16x128xf32> to vector<1x16x128xf32>
    tpu.vector_store %arg4[%c5_334, %c0_335, %c0_336], %468 {strides = array<i32>} : memref<8x16x128xf32, #tpu.memory_space<vmem>>, vector<1x16x128xf32>,
    %cst_337 = arith.constant 0.882467329 : f32
    %469 = vector.broadcast %cst_337 : f32 to vector<16x128xf32>
    %470 = arith.mulf %456, %469 : vector<16x128xf32>
    %c0_338 = arith.constant 0 : index
    %c768_339 = arith.constant 768 : index
    %471 = vector.load %arg6[%c0_338, %c768_339] : memref<16x1024xf32, #tpu.memory_space<vmem>>, vector<16x128xf32>
    %472 = arith.addf %470, %471 : vector<16x128xf32>
    %c0_340 = arith.constant 0 : index
    %c0_341 = arith.constant 0 : index
    %c0_342 = arith.constant 0 : index
    %473 = vector.load %arg8[%c0_340, %c0_341, %c0_342] : memref<8x16x128xf32, #tpu.memory_space<vmem>>, vector<1x16x128xf32>
    %474 = vector.shape_cast %473 : vector<1x16x128xf32> to vector<16x128xf32>
    %cst_343 = arith.constant 0.550313652 : f32
    %475 = vector.broadcast %cst_343 : f32 to vector<16x128xf32>
    %476 = arith.mulf %474, %475 : vector<16x128xf32>
    %477 = arith.subf %472, %476 : vector<16x128xf32>
    %c1_344 = arith.constant 1 : index
    %c0_345 = arith.constant 0 : index
    %c0_346 = arith.constant 0 : index
    %478 = vector.load %arg8[%c1_344, %c0_345, %c0_346] : memref<8x16x128xf32, #tpu.memory_space<vmem>>, vector<1x16x128xf32>
    %479 = vector.shape_cast %478 : vector<1x16x128xf32> to vector<16x128xf32>
    %cst_347 = arith.constant 0.569064379 : f32
    %480 = vector.broadcast %cst_347 : f32 to vector<16x128xf32>
    %481 = arith.mulf %479, %480 : vector<16x128xf32>
    %482 = arith.subf %477, %481 : vector<16x128xf32>
    %c2_348 = arith.constant 2 : index
    %c0_349 = arith.constant 0 : index
    %c0_350 = arith.constant 0 : index
    %483 = vector.load %arg8[%c2_348, %c0_349, %c0_350] : memref<8x16x128xf32, #tpu.memory_space<vmem>>, vector<1x16x128xf32>
    %484 = vector.shape_cast %483 : vector<1x16x128xf32> to vector<16x128xf32>
    %cst_351 = arith.constant 0.592465162 : f32
    %485 = vector.broadcast %cst_351 : f32 to vector<16x128xf32>
    %486 = arith.mulf %484, %485 : vector<16x128xf32>
    %487 = arith.subf %482, %486 : vector<16x128xf32>
    %c3_352 = arith.constant 3 : index
    %c0_353 = arith.constant 0 : index
    %c0_354 = arith.constant 0 : index
    %488 = vector.load %arg8[%c3_352, %c0_353, %c0_354] : memref<8x16x128xf32, #tpu.memory_space<vmem>>, vector<1x16x128xf32>
    %489 = vector.shape_cast %488 : vector<1x16x128xf32> to vector<16x128xf32>
    %cst_355 = arith.constant 0.623208463 : f32
    %490 = vector.broadcast %cst_355 : f32 to vector<16x128xf32>
    %491 = arith.mulf %489, %490 : vector<16x128xf32>
    %492 = arith.subf %487, %491 : vector<16x128xf32>
    %c4_356 = arith.constant 4 : index
    %c0_357 = arith.constant 0 : index
    %c0_358 = arith.constant 0 : index
    %493 = vector.load %arg8[%c4_356, %c0_357, %c0_358] : memref<8x16x128xf32, #tpu.memory_space<vmem>>, vector<1x16x128xf32>
    %494 = vector.shape_cast %493 : vector<1x16x128xf32> to vector<16x128xf32>
    %cst_359 = arith.constant 0.667123556 : f32
    %495 = vector.broadcast %cst_359 : f32 to vector<16x128xf32>
    %496 = arith.mulf %494, %495 : vector<16x128xf32>
    %497 = arith.subf %492, %496 : vector<16x128xf32>
    %c5_360 = arith.constant 5 : index
    %c0_361 = arith.constant 0 : index
    %c0_362 = arith.constant 0 : index
    %498 = vector.load %arg8[%c5_360, %c0_361, %c0_362] : memref<8x16x128xf32, #tpu.memory_space<vmem>>, vector<1x16x128xf32>
    %499 = vector.shape_cast %498 : vector<1x16x128xf32> to vector<16x128xf32>
    %cst_363 = arith.constant 0.741101146 : f32
    %500 = vector.broadcast %cst_363 : f32 to vector<16x128xf32>
    %501 = arith.mulf %499, %500 : vector<16x128xf32>
    %502 = arith.subf %497, %501 : vector<16x128xf32>
    %cst_364 = arith.constant 1.000000e+00 : f32
    %503 = vector.broadcast %cst_364 : f32 to vector<16x128xf32>
    %504 = arith.cmpf ogt, %502, %503 : vector<16x128xf32>
    %cst_365 = arith.constant 0.000000e+00 : f32
    %505 = vector.broadcast %cst_365 : f32 to vector<16x128xf32>
    %506 = arith.select %504, %505, %502 : vector<16x128xi1>, vector<16x128xf32>
    %507 = arith.subf %506, %456 : vector<16x128xf32>
    %c6_366 = arith.constant 6 : index
    %c0_367 = arith.constant 0 : index
    %c0_368 = arith.constant 0 : index
    %508 = vector.load %arg8[%c6_366, %c0_367, %c0_368] : memref<8x16x128xf32, #tpu.memory_space<vmem>>, vector<1x16x128xf32>
    %509 = vector.shape_cast %508 : vector<1x16x128xf32> to vector<16x128xf32>
    %510 = vector.shape_cast %507 : vector<16x128xf32> to vector<1x16x128xf32>
    tpu.vector_store %arg8[%c6_366, %c0_367, %c0_368], %510 {strides = array<i32>} : memref<8x16x128xf32, #tpu.memory_space<vmem>>, vector<1x16x128xf32>,
    %511 = arith.extui %504 : vector<16x128xi1> to vector<16x128xi32>
    %512 = arith.sitofp %511 : vector<16x128xi32> to vector<16x128xf32>
    %c6_369 = arith.constant 6 : index
    %c0_370 = arith.constant 0 : index
    %c0_371 = arith.constant 0 : index
    %513 = vector.load %arg3[%c6_369, %c0_370, %c0_371] : memref<8x16x128xf32, #tpu.memory_space<vmem>>, vector<1x16x128xf32>
    %514 = vector.shape_cast %513 : vector<1x16x128xf32> to vector<16x128xf32>
    %515 = vector.shape_cast %512 : vector<16x128xf32> to vector<1x16x128xf32>
    tpu.vector_store %arg3[%c6_369, %c0_370, %c0_371], %515 {strides = array<i32>} : memref<8x16x128xf32, #tpu.memory_space<vmem>>, vector<1x16x128xf32>,
    %c6_372 = arith.constant 6 : index
    %c0_373 = arith.constant 0 : index
    %c0_374 = arith.constant 0 : index
    %516 = vector.load %arg4[%c6_372, %c0_373, %c0_374] : memref<8x16x128xf32, #tpu.memory_space<vmem>>, vector<1x16x128xf32>
    %517 = vector.shape_cast %516 : vector<1x16x128xf32> to vector<16x128xf32>
    %518 = vector.shape_cast %506 : vector<16x128xf32> to vector<1x16x128xf32>
    tpu.vector_store %arg4[%c6_372, %c0_373, %c0_374], %518 {strides = array<i32>} : memref<8x16x128xf32, #tpu.memory_space<vmem>>, vector<1x16x128xf32>,
    %cst_375 = arith.constant 0.882467329 : f32
    %519 = vector.broadcast %cst_375 : f32 to vector<16x128xf32>
    %520 = arith.mulf %506, %519 : vector<16x128xf32>
    %c0_376 = arith.constant 0 : index
    %c896_377 = arith.constant 896 : index
    %521 = vector.load %arg6[%c0_376, %c896_377] : memref<16x1024xf32, #tpu.memory_space<vmem>>, vector<16x128xf32>
    %522 = arith.addf %520, %521 : vector<16x128xf32>
    %c0_378 = arith.constant 0 : index
    %c0_379 = arith.constant 0 : index
    %c0_380 = arith.constant 0 : index
    %523 = vector.load %arg8[%c0_378, %c0_379, %c0_380] : memref<8x16x128xf32, #tpu.memory_space<vmem>>, vector<1x16x128xf32>
    %524 = vector.shape_cast %523 : vector<1x16x128xf32> to vector<16x128xf32>
    %cst_381 = arith.constant 0.53475523 : f32
    %525 = vector.broadcast %cst_381 : f32 to vector<16x128xf32>
    %526 = arith.mulf %524, %525 : vector<16x128xf32>
    %527 = arith.subf %522, %526 : vector<16x128xf32>
    %c1_382 = arith.constant 1 : index
    %c0_383 = arith.constant 0 : index
    %c0_384 = arith.constant 0 : index
    %528 = vector.load %arg8[%c1_382, %c0_383, %c0_384] : memref<8x16x128xf32, #tpu.memory_space<vmem>>, vector<1x16x128xf32>
    %529 = vector.shape_cast %528 : vector<1x16x128xf32> to vector<16x128xf32>
    %cst_385 = arith.constant 0.550313652 : f32
    %530 = vector.broadcast %cst_385 : f32 to vector<16x128xf32>
    %531 = arith.mulf %529, %530 : vector<16x128xf32>
    %532 = arith.subf %527, %531 : vector<16x128xf32>
    %c2_386 = arith.constant 2 : index
    %c0_387 = arith.constant 0 : index
    %c0_388 = arith.constant 0 : index
    %533 = vector.load %arg8[%c2_386, %c0_387, %c0_388] : memref<8x16x128xf32, #tpu.memory_space<vmem>>, vector<1x16x128xf32>
    %534 = vector.shape_cast %533 : vector<1x16x128xf32> to vector<16x128xf32>
    %cst_389 = arith.constant 0.569064379 : f32
    %535 = vector.broadcast %cst_389 : f32 to vector<16x128xf32>
    %536 = arith.mulf %534, %535 : vector<16x128xf32>
    %537 = arith.subf %532, %536 : vector<16x128xf32>
    %c3_390 = arith.constant 3 : index
    %c0_391 = arith.constant 0 : index
    %c0_392 = arith.constant 0 : index
    %538 = vector.load %arg8[%c3_390, %c0_391, %c0_392] : memref<8x16x128xf32, #tpu.memory_space<vmem>>, vector<1x16x128xf32>
    %539 = vector.shape_cast %538 : vector<1x16x128xf32> to vector<16x128xf32>
    %cst_393 = arith.constant 0.592465162 : f32
    %540 = vector.broadcast %cst_393 : f32 to vector<16x128xf32>
    %541 = arith.mulf %539, %540 : vector<16x128xf32>
    %542 = arith.subf %537, %541 : vector<16x128xf32>
    %c4_394 = arith.constant 4 : index
    %c0_395 = arith.constant 0 : index
    %c0_396 = arith.constant 0 : index
    %543 = vector.load %arg8[%c4_394, %c0_395, %c0_396] : memref<8x16x128xf32, #tpu.memory_space<vmem>>, vector<1x16x128xf32>
    %544 = vector.shape_cast %543 : vector<1x16x128xf32> to vector<16x128xf32>
    %cst_397 = arith.constant 0.623208463 : f32
    %545 = vector.broadcast %cst_397 : f32 to vector<16x128xf32>
    %546 = arith.mulf %544, %545 : vector<16x128xf32>
    %547 = arith.subf %542, %546 : vector<16x128xf32>
    %c5_398 = arith.constant 5 : index
    %c0_399 = arith.constant 0 : index
    %c0_400 = arith.constant 0 : index
    %548 = vector.load %arg8[%c5_398, %c0_399, %c0_400] : memref<8x16x128xf32, #tpu.memory_space<vmem>>, vector<1x16x128xf32>
    %549 = vector.shape_cast %548 : vector<1x16x128xf32> to vector<16x128xf32>
    %cst_401 = arith.constant 0.667123556 : f32
    %550 = vector.broadcast %cst_401 : f32 to vector<16x128xf32>
    %551 = arith.mulf %549, %550 : vector<16x128xf32>
    %552 = arith.subf %547, %551 : vector<16x128xf32>
    %c6_402 = arith.constant 6 : index
    %c0_403 = arith.constant 0 : index
    %c0_404 = arith.constant 0 : index
    %553 = vector.load %arg8[%c6_402, %c0_403, %c0_404] : memref<8x16x128xf32, #tpu.memory_space<vmem>>, vector<1x16x128xf32>
    %554 = vector.shape_cast %553 : vector<1x16x128xf32> to vector<16x128xf32>
    %cst_405 = arith.constant 0.741101146 : f32
    %555 = vector.broadcast %cst_405 : f32 to vector<16x128xf32>
    %556 = arith.mulf %554, %555 : vector<16x128xf32>
    %557 = arith.subf %552, %556 : vector<16x128xf32>
    %cst_406 = arith.constant 1.000000e+00 : f32
    %558 = vector.broadcast %cst_406 : f32 to vector<16x128xf32>
    %559 = arith.cmpf ogt, %557, %558 : vector<16x128xf32>
    %cst_407 = arith.constant 0.000000e+00 : f32
    %560 = vector.broadcast %cst_407 : f32 to vector<16x128xf32>
    %561 = arith.select %559, %560, %557 : vector<16x128xi1>, vector<16x128xf32>
    %562 = arith.subf %561, %506 : vector<16x128xf32>
    %c7_408 = arith.constant 7 : index
    %c0_409 = arith.constant 0 : index
    %c0_410 = arith.constant 0 : index
    %563 = vector.load %arg8[%c7_408, %c0_409, %c0_410] : memref<8x16x128xf32, #tpu.memory_space<vmem>>, vector<1x16x128xf32>
    %564 = vector.shape_cast %563 : vector<1x16x128xf32> to vector<16x128xf32>
    %565 = vector.shape_cast %562 : vector<16x128xf32> to vector<1x16x128xf32>
    tpu.vector_store %arg8[%c7_408, %c0_409, %c0_410], %565 {strides = array<i32>} : memref<8x16x128xf32, #tpu.memory_space<vmem>>, vector<1x16x128xf32>,
    %566 = arith.extui %559 : vector<16x128xi1> to vector<16x128xi32>
    %567 = arith.sitofp %566 : vector<16x128xi32> to vector<16x128xf32>
    %c7_411 = arith.constant 7 : index
    %c0_412 = arith.constant 0 : index
    %c0_413 = arith.constant 0 : index
    %568 = vector.load %arg3[%c7_411, %c0_412, %c0_413] : memref<8x16x128xf32, #tpu.memory_space<vmem>>, vector<1x16x128xf32>
    %569 = vector.shape_cast %568 : vector<1x16x128xf32> to vector<16x128xf32>
    %570 = vector.shape_cast %567 : vector<16x128xf32> to vector<1x16x128xf32>
    tpu.vector_store %arg3[%c7_411, %c0_412, %c0_413], %570 {strides = array<i32>} : memref<8x16x128xf32, #tpu.memory_space<vmem>>, vector<1x16x128xf32>,
    %c7_414 = arith.constant 7 : index
    %c0_415 = arith.constant 0 : index
    %c0_416 = arith.constant 0 : index
    %571 = vector.load %arg4[%c7_414, %c0_415, %c0_416] : memref<8x16x128xf32, #tpu.memory_space<vmem>>, vector<1x16x128xf32>
    %572 = vector.shape_cast %571 : vector<1x16x128xf32> to vector<16x128xf32>
    %573 = vector.shape_cast %561 : vector<16x128xf32> to vector<1x16x128xf32>
    tpu.vector_store %arg4[%c7_414, %c0_415, %c0_416], %573 {strides = array<i32>} : memref<8x16x128xf32, #tpu.memory_space<vmem>>, vector<1x16x128xf32>,
    return
  }
  func.func @transform_0(%arg0: i32) -> (i32, i32, i32) {
    %c0_i32 = arith.constant 0 : i32
    %c0_i32_0 = arith.constant 0 : i32
    %c0_i32_1 = arith.constant 0 : i32
    return %c0_i32, %c0_i32_0, %arg0 : i32, i32, i32
  }
  func.func @transform_1(%arg0: i32) -> (i32, i32) {
    %c0_i32 = arith.constant 0 : i32
    %c0_i32_0 = arith.constant 0 : i32
    %c0_i32_1 = arith.constant 0 : i32
    return %c0_i32, %c0_i32_0 : i32, i32
  }
  func.func @transform_2(%arg0: i32) -> (i32, i32, i32) {
    %c0_i32 = arith.constant 0 : i32
    %c0_i32_0 = arith.constant 0 : i32
    %c0_i32_1 = arith.constant 0 : i32
    return %c0_i32, %c0_i32_0, %arg0 : i32, i32, i32
  }
  func.func @transform_3(%arg0: i32) -> (i32, i32, i32) {
    %c0_i32 = arith.constant 0 : i32
    %c0_i32_0 = arith.constant 0 : i32
    %c0_i32_1 = arith.constant 0 : i32
    return %c0_i32, %c0_i32_0, %arg0 : i32, i32, i32
  }
}

</mosaic_0001>

<llo_original>
// kernel: tpu_custom_call.1
$region0: #{tpu_custom_call.1}
  #allocation0 [shape = 'u32[]', space=smem, size = 0x4, offset = 0x4, fixed_abs, tag = 'smem constant byte address 0x4 - core index']
  #allocation1 [shape = 'u32[144,128]{1,0:T(1,128)}', space=vmem, size = 0x12000, scoped, tag = 'internal scratch']
  #allocation2 [shape = 'f32[32,1024]{1,0:T(8,128)}', space=vmem, size = 0x20000, scoped, tag = 'scratch operand']
  #allocation3 [shape = 'f32[16,1024]{1,0:T(8,128)}', space=vmem, size = 0x10000, scoped, tag = 'scratch operand']
  #allocation4 [shape = 'f32[8,32,128]{2,1,0:T(8,128)}', space=vmem, size = 0x20000, scoped, tag = 'scratch operand']
  #allocation5 [shape = 'f32[8,16,128]{2,1,0:T(8,128)}', space=vmem, size = 0x10000, scoped, tag = 'scratch operand']
  %s0 = inlined_call_operand.hbm [shape: f32[8,32,256], index: 0, kind: input, shape index: {}]
  %s1 = inlined_call_operand.hbm [shape: f32[16,32], index: 1, kind: input, shape index: {}]
  %s2 = inlined_call_operand.hbm [shape: f32[8,16,256], index: 2, kind: output, shape index: {0}]
  %s3 = inlined_call_operand.hbm [shape: f32[8,16,256], index: 3, kind: output, shape index: {1}]
  %4 = xla_tuple %s2, %s3
  %s5 = sld [smem:[#allocation0]]
  $region57: #{tpu_custom_call.1} parent=0
    _
  %s7 = ssub.s32 1, %s5
  %s8 = scalar_select 0, %s7, %s5
  $region1: #{tpu_custom_call.1} parent=0
    #allocation6 [shape = 'u8[262144]{0}', space=vmem, size = 0x40000, scoped, tag = 'input window, operand 0']
    #allocation7 [shape = 's32[2]{0}', space=sflag, size = 0x8, scoped, tag = 'scoped memory for tpu_custom_call.1']
    #allocation8 [shape = 's32[2]{0}', space=sflag, size = 0x8, scoped, tag = 'scoped memory for tpu_custom_call.1']
    #allocation9 [shape = 'u8[8192]{0}', space=vmem, size = 0x2000, scoped, tag = 'input window, operand 1, single buffered']
    #allocation10 [shape = 's32[1]{0}', space=sflag, size = 0x4, scoped, tag = 'scoped memory for tpu_custom_call.1']
    #allocation11 [shape = 'u8[131072]{0}', space=vmem, size = 0x20000, scoped, tag = 'output window, operand 0']
    #allocation12 [shape = 'u8[131072]{0}', space=vmem, size = 0x20000, scoped, tag = 'output window, operand 1']
    #allocation13 [shape = 's32[2]{0}', space=sflag, size = 0x8, scoped, tag = 'scoped memory for tpu_custom_call.1']
    %9 = vsyncpa [#allocation7], 0
    %s10 = scalar_lea.sflag [#allocation7], 1
    %11 = vsyncpa %s10, 0
    %12 = vsyncpa [#allocation10], 0
    %13 = vsyncpa [#allocation8], 0
    %s14 = scalar_lea.sflag [#allocation8], 1
    %15 = vsyncpa %s14, 0
    %16 = vsyncpa [#allocation13], 0
    %s17 = scalar_lea.sflag [#allocation13], 1
    %18 = vsyncpa %s17, 0
    loop: start=0, step=1, limit=4
    $region2: #{tpu_custom_call.1} parent=1 // loop_pre_header
      _
    $region3: #{tpu_custom_call.1} parent=1 // loop_header
      %s20 = sphi 0, %s24
      %p21 = scmp.ge.s32.totalorder %s20, 4
      %s30 = sphi 0, %s32
      %s33 = sphi 0, %s30
      %s34 = sphi 0, %s33
      %s50 = sphi 0, %s34
      %s54 = sphi 0, %s54
      %s56 = sphi 0, %s54
      %s57 = sphi 0, %s56
      %s71 = sphi 0, %s57
      %s77 = sphi 0, %s79
      %s80 = sphi 0, %s77
      %s81 = sphi 0, %s80
      %s97 = sphi 0, %s81
      %s103 = sphi 0, %s105
      %s106 = sphi 0, %s103
      %s107 = sphi 0, %s106
      %s123 = sphi 0, %s107
    $region4: #{tpu_custom_call.1} parent=1 // loop_header_branch
      %23 = sbr.rel (%p21) target = $region8
    $region5: #{tpu_custom_call.1} parent=1 // loop_body
      %s25 = ssub.s32 %s20, 1
      %s26 = ssub.s32 %s20, 2
      %s27 = sadd.s32 %s20, 1
      %s28 = ssub.s32 %s20, %s27
      %p29 = scmp.eq.s32.totalorder %s28, 0
      %s31 = sadd.s32 %s30, 1
      %s32 = scalar_select %p29, %s30, %s31
      %p35 = pneg %p29
      %p36 = scmp.eq.s32.totalorder %s20, 1
      %p37 = por %p35, %p36
      %p38 = scmp.ne.s32.totalorder %s30, %s33
      %p39 = scmp.eq.s32.totalorder %s20, 0
      %p40 = por %p38, %p39
      %p41 = scmp.ne.s32.totalorder %s30, %s33
      %p42 = scmp.eq.s32.totalorder %s25, 1
      %p43 = por %p41, %p42
      %p44 = scmp.ne.s32.totalorder %s33, %s34
      %p45 = scmp.eq.s32.totalorder %s25, 0
      %p46 = por %p44, %p45
      %p47 = scmp.ne.s32.totalorder %s33, %s34
      %p48 = scmp.eq.s32.totalorder %s26, 1
      %p49 = por %p47, %p48
      %p51 = scmp.ne.s32.totalorder %s34, %s50
      %p52 = scmp.eq.s32.totalorder %s26, 0
      %p53 = por %p51, %p52
      %s55 = sadd.s32 %s54, 1
      %p58 = scmp.eq.s32.totalorder %s20, 1
      %p59 = scmp.ne.s32.totalorder %s54, %s56
      %p60 = scmp.eq.s32.totalorder %s20, 0
      %p61 = por %p59, %p60
      %p62 = scmp.ne.s32.totalorder %s54, %s56
      %p63 = scmp.eq.s32.totalorder %s25, 1
      %p64 = por %p62, %p63
      %p65 = scmp.ne.s32.totalorder %s56, %s57
      %p66 = scmp.eq.s32.totalorder %s25, 0
      %p67 = por %p65, %p66
      %p68 = scmp.ne.s32.totalorder %s56, %s57
      %p69 = scmp.eq.s32.totalorder %s26, 1
      %p70 = por %p68, %p69
      %p72 = scmp.ne.s32.totalorder %s57, %s71
      %p73 = scmp.eq.s32.totalorder %s26, 0
      %p74 = por %p72, %p73
      %s75 = ssub.s32 %s20, %s27
      %p76 = scmp.eq.s32.totalorder %s75, 0
      %s78 = sadd.s32 %s77, 1
      %s79 = scalar_select %p76, %s77, %s78
      %p82 = pneg %p76
      %p83 = scmp.eq.s32.totalorder %s20, 1
      %p84 = por %p82, %p83
      %p85 = scmp.ne.s32.totalorder %s77, %s80
      %p86 = scmp.eq.s32.totalorder %s20, 0
      %p87 = por %p85, %p86
      %p88 = scmp.ne.s32.totalorder %s77, %s80
      %p89 = scmp.eq.s32.totalorder %s25, 1
      %p90 = por %p88, %p89
      %p91 = scmp.ne.s32.totalorder %s80, %s81
      %p92 = scmp.eq.s32.totalorder %s25, 0
      %p93 = por %p91, %p92
      %p94 = scmp.ne.s32.totalorder %s80, %s81
      %p95 = scmp.eq.s32.totalorder %s26, 1
      %p96 = por %p94, %p95
      %p98 = scmp.ne.s32.totalorder %s81, %s97
      %p99 = scmp.eq.s32.totalorder %s26, 0
      %p100 = por %p98, %p99
      %s101 = ssub.s32 %s20, %s27
      %p102 = scmp.eq.s32.totalorder %s101, 0
      %s104 = sadd.s32 %s103, 1
      %s105 = scalar_select %p102, %s103, %s104
      %p108 = pneg %p102
      %p109 = scmp.eq.s32.totalorder %s20, 1
      %p110 = por %p108, %p109
      %p111 = scmp.ne.s32.totalorder %s103, %s106
      %p112 = scmp.eq.s32.totalorder %s20, 0
      %p113 = por %p111, %p112
      %p114 = scmp.ne.s32.totalorder %s103, %s106
      %p115 = scmp.eq.s32.totalorder %s25, 1
      %p116 = por %p114, %p115
      %p117 = scmp.ne.s32.totalorder %s106, %s107
      %p118 = scmp.eq.s32.totalorder %s25, 0
      %p119 = por %p117, %p118
      %p120 = scmp.ne.s32.totalorder %s106, %s107
      %p121 = scmp.eq.s32.totalorder %s26, 1
      %p122 = por %p120, %p121
      %p124 = scmp.ne.s32.totalorder %s107, %s123
      %p125 = scmp.eq.s32.totalorder %s26, 0
      %p126 = por %p124, %p125
      %p127 = scmp.le.s32.totalorder 1, %s20
      %p128 = scmp.lt.s32.totalorder %s20, 3
      %p129 = pnand %p127, %p128
      %p130 = pneg %p129
      // Predicated region
      $region9: #{tpu_custom_call.1} parent=5 // pred_check
        _
      $region10: #{tpu_custom_call.1} parent=5 // pred_check_branch
        %132 = sbr.rel (%p129) target = $region12
      $region11: #{tpu_custom_call.1} parent=5 // pred_region
        %s133 = ssub.s32 %s20, 1
        // Predicated region
        $region13: #{tpu_custom_call.1} parent=11 // pred_check
          %p134 = pneg %p67
        $region14: #{tpu_custom_call.1} parent=11 // pred_check_branch
          %136 = sbr.rel (%p134) target = $region16
        $region15: #{tpu_custom_call.1} parent=11 // pred_region
          %s138 = ssub.s32 256, 256
          %139 = vsyncadd [#allocation10], %s138
          %s140 = sshll.u32 [#allocation9], 4
          %s141 = int_to_ptr.vmem [resolvable:$true] %s140
          %146 = dma.hbm_to_vmem [thread:$0]  %s1, 256, %s141, [#allocation10], 128, 128, 8
        $region16: #{tpu_custom_call.1} parent=11 // pred_fallthru
          _
      $region12: #{tpu_custom_call.1} parent=5 // pred_fallthru
        _
      %p147 = scmp.lt.s32.totalorder %s20, 2
      // Predicated region
      $region17: #{tpu_custom_call.1} parent=5 // pred_check
        %p148 = pneg %p147
      $region18: #{tpu_custom_call.1} parent=5 // pred_check_branch
        %150 = sbr.rel (%p148) target = $region20
      $region19: #{tpu_custom_call.1} parent=5 // pred_region
        // Predicated region
        $region21: #{tpu_custom_call.1} parent=19 // pred_check
          %p151 = pneg %p40
        $region22: #{tpu_custom_call.1} parent=19 // pred_check_branch
          %153 = sbr.rel (%p151) target = $region24
        $region23: #{tpu_custom_call.1} parent=19 // pred_region
          %s154 = sand.u32 %s30, 1
          %s155 = scalar_lea.sflag [#allocation7], %s154
          %s156 = sand.u32 %s30, 1
          %s157 = smul.addr %s156, 256
          %s158 = scalar_lea.vmem [#allocation6], %s157
          %s160 = ssub.s32 4096, 4096
          %161 = vsyncadd %s155, %s160
          %s162 = smul.addr %s20, 128
          %s163 = scalar_lea.hbm %s0, %s162
          %s164 = sshll.u32 %s158, 4
          %s165 = int_to_ptr.vmem [resolvable:$true] %s164
          %170 = dma.hbm_to_vmem [thread:$0]  %s163, 4096, %s165, %s155, 256, 128, 8
        $region24: #{tpu_custom_call.1} parent=19 // pred_fallthru
          _
      $region20: #{tpu_custom_call.1} parent=5 // pred_fallthru
        _
      %p171 = scmp.le.s32.totalorder 1, %s20
      %p172 = scmp.lt.s32.totalorder %s20, 3
      %p173 = pnand %p171, %p172
      %p174 = pneg %p173
      // Predicated region
      $region25: #{tpu_custom_call.1} parent=5 // pred_check
        _
      $region26: #{tpu_custom_call.1} parent=5 // pred_check_branch
        %176 = sbr.rel (%p173) target = $region28
      $region27: #{tpu_custom_call.1} parent=5 // pred_region
        %s177 = ssub.s32 %s20, 1
        %s178 = sand.u32 %s33, 1
        %s179 = scalar_lea.sflag [#allocation7], %s178
        %s180 = sand.u32 %s33, 1
        %s181 = smul.addr %s180, 256
        %s182 = scalar_lea.vmem [#allocation6], %s181
        // Predicated region
        $region29: #{tpu_custom_call.1} parent=27 // pred_check
          %p183 = pneg %p46
        $region30: #{tpu_custom_call.1} parent=27 // pred_check_branch
          %185 = sbr.rel (%p183) target = $region32
        $region31: #{tpu_custom_call.1} parent=27 // pred_region
          %186 = dma.done %s179, 4096
        $region32: #{tpu_custom_call.1} parent=27 // pred_fallthru
          _
        // Predicated region
        $region33: #{tpu_custom_call.1} parent=27 // pred_check
          %p187 = pneg %p67
        $region34: #{tpu_custom_call.1} parent=27 // pred_check_branch
          %189 = sbr.rel (%p187) target = $region36
        $region35: #{tpu_custom_call.1} parent=27 // pred_region
          %190 = dma.done [#allocation10], 256
        $region36: #{tpu_custom_call.1} parent=27 // pred_fallthru
          _
        %s191 = sand.u32 %s33, 1
        %s192 = scalar_lea.sflag [#allocation7], %s191
        %s193 = sand.u32 %s33, 1
        %s194 = smul.addr %s193, 256
        %s195 = scalar_lea.vmem [#allocation6], %s194
        %p196 = pneg %p46
        %p197 = pneg %p43
        %p198 = pneg %p67
        %p199 = pneg %p64
        %p200 = pneg %p93
        %p201 = pneg %p90
        %s202 = sand.u32 %s80, 1
        %s203 = scalar_lea.sflag [#allocation8], %s202
        %s204 = sand.u32 %s80, 1
        %s205 = smul.addr %s204, 128
        %s206 = scalar_lea.vmem [#allocation11], %s205
        %p207 = pneg %p119
        %p208 = pneg %p116
        %s209 = sand.u32 %s106, 1
        %s210 = scalar_lea.sflag [#allocation13], %s209
        %s211 = sand.u32 %s106, 1
        %s212 = smul.addr %s211, 128
        %s213 = scalar_lea.vmem [#allocation12], %s212
        %v214 = vld [vmem:[%s182] sm:$0xff]
        %v215 = vld [vmem:[%s182 + $0x8] sm:$0xff]
        %v216 = vld [vmem:[%s182 + $0x10] sm:$0xff]
        %v217 = vld [vmem:[%s182 + $0x18] sm:$0xff]
        %v218 = vadd.f32 %v214, 0.0
        %v219 = vadd.f32 %v215, 0.0
        %v220 = vadd.f32 %v216, 0.0
        %v221 = vadd.f32 %v217, 0.0
        %vm222 = vcmp.gt.f32.partialorder %v218, 1.0
        %vm223 = vcmp.gt.f32.partialorder %v219, 1.0
        %vm224 = vcmp.gt.f32.partialorder %v220, 1.0
        %vm225 = vcmp.gt.f32.partialorder %v221, 1.0
        %v226 = vsel %vm222, 0.0, %v218
        %v227 = vsel %vm223, 0.0, %v219
        %v228 = vsel %vm224, 0.0, %v220
        %v229 = vsel %vm225, 0.0, %v221
        %230 = vst [vmem:[#allocation4] sm:$0xff] %v226
        %231 = vst [vmem:[#allocation4 + $0x8] sm:$0xff] %v227
        %232 = vst [vmem:[#allocation4 + $0x10] sm:$0xff] %v228
        %233 = vst [vmem:[#allocation4 + $0x18] sm:$0xff] %v229
        %v234 = vsel %vm222, 1, 0
        %v235 = vsel %vm223, 1, 0
        %v236 = vsel %vm224, 1, 0
        %v237 = vsel %vm225, 1, 0
        %v238 = vcvt.s32.f32 %v234
        %v239 = vcvt.s32.f32 %v235
        %v240 = vcvt.s32.f32 %v236
        %v241 = vcvt.s32.f32 %v237
        %242 = vst [vmem:[#allocation2] sm:$0xff] %v238
        %243 = vst [vmem:[#allocation2 + $0x40] sm:$0xff] %v239
        %244 = vst [vmem:[#allocation2 + $0x80] sm:$0xff] %v240
        %245 = vst [vmem:[#allocation2 + $0xc0] sm:$0xff] %v241
        %v246 = vmul.f32 %v226, 0.8824673
        %v247 = vmul.f32 %v227, 0.8824673
        %v248 = vmul.f32 %v228, 0.8824673
        %v249 = vmul.f32 %v229, 0.8824673
        %s250 = scalar_lea.vmem %s182, 32 [#allocation6]
        %v251 = vld [vmem:[%s250] sm:$0xff]
        %v252 = vld [vmem:[%s250 + $0x8] sm:$0xff]
        %v253 = vld [vmem:[%s250 + $0x10] sm:$0xff]
        %v254 = vld [vmem:[%s250 + $0x18] sm:$0xff]
        %v255 = vadd.f32 %v246, %v251
        %v256 = vadd.f32 %v247, %v252
        %v257 = vadd.f32 %v248, %v253
        %v258 = vadd.f32 %v249, %v254
        %v259 = vld [vmem:[#allocation4] sm:$0xff]
        %v260 = vld [vmem:[#allocation4 + $0x8] sm:$0xff]
        %v261 = vld [vmem:[#allocation4 + $0x10] sm:$0xff]
        %v262 = vld [vmem:[#allocation4 + $0x18] sm:$0xff]
        %v263 = vmul.f32 %v259, 0.74110115
        %v264 = vmul.f32 %v260, 0.74110115
        %v265 = vmul.f32 %v261, 0.74110115
        %v266 = vmul.f32 %v262, 0.74110115
        %v267 = vsub.f32 %v255, %v263
        %v268 = vsub.f32 %v256, %v264
        %v269 = vsub.f32 %v257, %v265
        %v270 = vsub.f32 %v258, %v266
        %vm271 = vcmp.gt.f32.partialorder %v267, 1.0
        %vm272 = vcmp.gt.f32.partialorder %v268, 1.0
        %vm273 = vcmp.gt.f32.partialorder %v269, 1.0
        %vm274 = vcmp.gt.f32.partialorder %v270, 1.0
        %v275 = vsel %vm271, 0.0, %v267
        %v276 = vsel %vm272, 0.0, %v268
        %v277 = vsel %vm273, 0.0, %v269
        %v278 = vsel %vm274, 0.0, %v270
        %v279 = vsub.f32 %v275, %v226
        %v280 = vsub.f32 %v276, %v227
        %v281 = vsub.f32 %v277, %v228
        %v282 = vsub.f32 %v278, %v229
        %s283 = scalar_lea.vmem [#allocation4], 32
        %284 = vst [vmem:[%s283] sm:$0xff] %v279
        %285 = vst [vmem:[%s283 + $0x8] sm:$0xff] %v280
        %286 = vst [vmem:[%s283 + $0x10] sm:$0xff] %v281
        %287 = vst [vmem:[%s283 + $0x18] sm:$0xff] %v282
        %v288 = vsel %vm271, 1, 0
        %v289 = vsel %vm272, 1, 0
        %v290 = vsel %vm273, 1, 0
        %v291 = vsel %vm274, 1, 0
        %v292 = vcvt.s32.f32 %v288
        %v293 = vcvt.s32.f32 %v289
        %v294 = vcvt.s32.f32 %v290
        %v295 = vcvt.s32.f32 %v291
        %296 = vst [vmem:[#allocation2 + $0x8] sm:$0xff] %v292
        %297 = vst [vmem:[#allocation2 + $0x48] sm:$0xff] %v293
        %298 = vst [vmem:[#allocation2 + $0x88] sm:$0xff] %v294
        %299 = vst [vmem:[#allocation2 + $0xc8] sm:$0xff] %v295
        %v300 = vmul.f32 %v275, 0.8824673
        %v301 = vmul.f32 %v276, 0.8824673
        %v302 = vmul.f32 %v277, 0.8824673
        %v303 = vmul.f32 %v278, 0.8824673
        %s304 = scalar_lea.vmem %s182, 64 [#allocation6]
        %v305 = vld [vmem:[%s304] sm:$0xff]
        %v306 = vld [vmem:[%s304 + $0x8] sm:$0xff]
        %v307 = vld [vmem:[%s304 + $0x10] sm:$0xff]
        %v308 = vld [vmem:[%s304 + $0x18] sm:$0xff]
        %v309 = vadd.f32 %v300, %v305
        %v310 = vadd.f32 %v301, %v306
        %v311 = vadd.f32 %v302, %v307
        %v312 = vadd.f32 %v303, %v308
        %v313 = vld [vmem:[#allocation4] sm:$0xff]
        %v314 = vld [vmem:[#allocation4 + $0x8] sm:$0xff]
        %v315 = vld [vmem:[#allocation4 + $0x10] sm:$0xff]
        %v316 = vld [vmem:[#allocation4 + $0x18] sm:$0xff]
        %v317 = vmul.f32 %v313, 0.66712356
        %v318 = vmul.f32 %v314, 0.66712356
        %v319 = vmul.f32 %v315, 0.66712356
        %v320 = vmul.f32 %v316, 0.66712356
        %v321 = vsub.f32 %v309, %v317
        %v322 = vsub.f32 %v310, %v318
        %v323 = vsub.f32 %v311, %v319
        %v324 = vsub.f32 %v312, %v320
        %v325 = vld [vmem:[%s283] sm:$0xff]
        %v326 = vld [vmem:[%s283 + $0x8] sm:$0xff]
        %v327 = vld [vmem:[%s283 + $0x10] sm:$0xff]
        %v328 = vld [vmem:[%s283 + $0x18] sm:$0xff]
        %v329 = vmul.f32 %v325, 0.74110115
        %v330 = vmul.f32 %v326, 0.74110115
        %v331 = vmul.f32 %v327, 0.74110115
        %v332 = vmul.f32 %v328, 0.74110115
        %v333 = vsub.f32 %v321, %v329
        %v334 = vsub.f32 %v322, %v330
        %v335 = vsub.f32 %v323, %v331
        %v336 = vsub.f32 %v324, %v332
        %vm337 = vcmp.gt.f32.partialorder %v333, 1.0
        %vm338 = vcmp.gt.f32.partialorder %v334, 1.0
        %vm339 = vcmp.gt.f32.partialorder %v335, 1.0
        %vm340 = vcmp.gt.f32.partialorder %v336, 1.0
        %v341 = vsel %vm337, 0.0, %v333
        %v342 = vsel %vm338, 0.0, %v334
        %v343 = vsel %vm339, 0.0, %v335
        %v344 = vsel %vm340, 0.0, %v336
        %v345 = vsub.f32 %v341, %v275
        %v346 = vsub.f32 %v342, %v276
        %v347 = vsub.f32 %v343, %v277
        %v348 = vsub.f32 %v344, %v278
        %s349 = scalar_lea.vmem [#allocation4], 64
        %350 = vst [vmem:[%s349] sm:$0xff] %v345
        %351 = vst [vmem:[%s349 + $0x8] sm:$0xff] %v346
        %352 = vst [vmem:[%s349 + $0x10] sm:$0xff] %v347
        %353 = vst [vmem:[%s349 + $0x18] sm:$0xff] %v348
        %v354 = vsel %vm337, 1, 0
        %v355 = vsel %vm338, 1, 0
        %v356 = vsel %vm339, 1, 0
        %v357 = vsel %vm340, 1, 0
        %v358 = vcvt.s32.f32 %v354
        %v359 = vcvt.s32.f32 %v355
        %v360 = vcvt.s32.f32 %v356
        %v361 = vcvt.s32.f32 %v357
        %362 = vst [vmem:[#allocation2 + $0x10] sm:$0xff] %v358
        %363 = vst [vmem:[#allocation2 + $0x50] sm:$0xff] %v359
        %364 = vst [vmem:[#allocation2 + $0x90] sm:$0xff] %v360
        %365 = vst [vmem:[#allocation2 + $0xd0] sm:$0xff] %v361
        %v366 = vmul.f32 %v341, 0.8824673
        %v367 = vmul.f32 %v342, 0.8824673
        %v368 = vmul.f32 %v343, 0.8824673
        %v369 = vmul.f32 %v344, 0.8824673
        %s370 = scalar_lea.vmem %s182, 96 [#allocation6]
        %v371 = vld [vmem:[%s370] sm:$0xff]
        %v372 = vld [vmem:[%s370 + $0x8] sm:$0xff]
        %v373 = vld [vmem:[%s370 + $0x10] sm:$0xff]
        %v374 = vld [vmem:[%s370 + $0x18] sm:$0xff]
        %v375 = vadd.f32 %v366, %v371
        %v376 = vadd.f32 %v367, %v372
        %v377 = vadd.f32 %v368, %v373
        %v378 = vadd.f32 %v369, %v374
        %v379 = vld [vmem:[#allocation4] sm:$0xff]
        %v380 = vld [vmem:[#allocation4 + $0x8] sm:$0xff]
        %v381 = vld [vmem:[#allocation4 + $0x10] sm:$0xff]
        %v382 = vld [vmem:[#allocation4 + $0x18] sm:$0xff]
        %v383 = vmul.f32 %v379, 0.62320846
        %v384 = vmul.f32 %v380, 0.62320846
        %v385 = vmul.f32 %v381, 0.62320846
        %v386 = vmul.f32 %v382, 0.62320846
        %v387 = vsub.f32 %v375, %v383
        %v388 = vsub.f32 %v376, %v384
        %v389 = vsub.f32 %v377, %v385
        %v390 = vsub.f32 %v378, %v386
        %v391 = vld [vmem:[%s283] sm:$0xff]
        %v392 = vld [vmem:[%s283 + $0x8] sm:$0xff]
        %v393 = vld [vmem:[%s283 + $0x10] sm:$0xff]
        %v394 = vld [vmem:[%s283 + $0x18] sm:$0xff]
        %v395 = vmul.f32 %v391, 0.66712356
        %v396 = vmul.f32 %v392, 0.66712356
        %v397 = vmul.f32 %v393, 0.66712356
        %v398 = vmul.f32 %v394, 0.66712356
        %v399 = vsub.f32 %v387, %v395
        %v400 = vsub.f32 %v388, %v396
        %v401 = vsub.f32 %v389, %v397
        %v402 = vsub.f32 %v390, %v398
        %v403 = vld [vmem:[%s349] sm:$0xff]
        %v404 = vld [vmem:[%s349 + $0x8] sm:$0xff]
        %v405 = vld [vmem:[%s349 + $0x10] sm:$0xff]
        %v406 = vld [vmem:[%s349 + $0x18] sm:$0xff]
        %v407 = vmul.f32 %v403, 0.74110115
        %v408 = vmul.f32 %v404, 0.74110115
        %v409 = vmul.f32 %v405, 0.74110115
        %v410 = vmul.f32 %v406, 0.74110115
        %v411 = vsub.f32 %v399, %v407
        %v412 = vsub.f32 %v400, %v408
        %v413 = vsub.f32 %v401, %v409
        %v414 = vsub.f32 %v402, %v410
        %vm415 = vcmp.gt.f32.partialorder %v411, 1.0
        %vm416 = vcmp.gt.f32.partialorder %v412, 1.0
        %vm417 = vcmp.gt.f32.partialorder %v413, 1.0
        %vm418 = vcmp.gt.f32.partialorder %v414, 1.0
        %v419 = vsel %vm415, 0.0, %v411
        %v420 = vsel %vm416, 0.0, %v412
        %v421 = vsel %vm417, 0.0, %v413
        %v422 = vsel %vm418, 0.0, %v414
        %v423 = vsub.f32 %v419, %v341
        %v424 = vsub.f32 %v420, %v342
        %v425 = vsub.f32 %v421, %v343
        %v426 = vsub.f32 %v422, %v344
        %s427 = scalar_lea.vmem [#allocation4], 96
        %428 = vst [vmem:[%s427] sm:$0xff] %v423
        %429 = vst [vmem:[%s427 + $0x8] sm:$0xff] %v424
        %430 = vst [vmem:[%s427 + $0x10] sm:$0xff] %v425
        %431 = vst [vmem:[%s427 + $0x18] sm:$0xff] %v426
        %v432 = vsel %vm415, 1, 0
        %v433 = vsel %vm416, 1, 0
        %v434 = vsel %vm417, 1, 0
        %v435 = vsel %vm418, 1, 0
        %v436 = vcvt.s32.f32 %v432
        %v437 = vcvt.s32.f32 %v433
        %v438 = vcvt.s32.f32 %v434
        %v439 = vcvt.s32.f32 %v435
        %440 = vst [vmem:[#allocation2 + $0x18] sm:$0xff] %v436
        %441 = vst [vmem:[#allocation2 + $0x58] sm:$0xff] %v437
        %442 = vst [vmem:[#allocation2 + $0x98] sm:$0xff] %v438
        %443 = vst [vmem:[#allocation2 + $0xd8] sm:$0xff] %v439
        %v444 = vmul.f32 %v419, 0.8824673
        %v445 = vmul.f32 %v420, 0.8824673
        %v446 = vmul.f32 %v421, 0.8824673
        %v447 = vmul.f32 %v422, 0.8824673
        %s448 = scalar_lea.vmem %s182, 128 [#allocation6]
        %v449 = vld [vmem:[%s448] sm:$0xff]
        %v450 = vld [vmem:[%s448 + $0x8] sm:$0xff]
        %v451 = vld [vmem:[%s448 + $0x10] sm:$0xff]
        %v452 = vld [vmem:[%s448 + $0x18] sm:$0xff]
        %v453 = vadd.f32 %v444, %v449
        %v454 = vadd.f32 %v445, %v450
        %v455 = vadd.f32 %v446, %v451
        %v456 = vadd.f32 %v447, %v452
        %v457 = vld [vmem:[#allocation4] sm:$0xff]
        %v458 = vld [vmem:[#allocation4 + $0x8] sm:$0xff]
        %v459 = vld [vmem:[#allocation4 + $0x10] sm:$0xff]
        %v460 = vld [vmem:[#allocation4 + $0x18] sm:$0xff]
        %v461 = vmul.f32 %v457, 0.59246516
        %v462 = vmul.f32 %v458, 0.59246516
        %v463 = vmul.f32 %v459, 0.59246516
        %v464 = vmul.f32 %v460, 0.59246516
        %v465 = vsub.f32 %v453, %v461
        %v466 = vsub.f32 %v454, %v462
        %v467 = vsub.f32 %v455, %v463
        %v468 = vsub.f32 %v456, %v464
        %v469 = vld [vmem:[%s283] sm:$0xff]
        %v470 = vld [vmem:[%s283 + $0x8] sm:$0xff]
        %v471 = vld [vmem:[%s283 + $0x10] sm:$0xff]
        %v472 = vld [vmem:[%s283 + $0x18] sm:$0xff]
        %v473 = vmul.f32 %v469, 0.62320846
        %v474 = vmul.f32 %v470, 0.62320846
        %v475 = vmul.f32 %v471, 0.62320846
        %v476 = vmul.f32 %v472, 0.62320846
        %v477 = vsub.f32 %v465, %v473
        %v478 = vsub.f32 %v466, %v474
        %v479 = vsub.f32 %v467, %v475
        %v480 = vsub.f32 %v468, %v476
        %v481 = vld [vmem:[%s349] sm:$0xff]
        %v482 = vld [vmem:[%s349 + $0x8] sm:$0xff]
        %v483 = vld [vmem:[%s349 + $0x10] sm:$0xff]
        %v484 = vld [vmem:[%s349 + $0x18] sm:$0xff]
        %v485 = vmul.f32 %v481, 0.66712356
        %v486 = vmul.f32 %v482, 0.66712356
        %v487 = vmul.f32 %v483, 0.66712356
        %v488 = vmul.f32 %v484, 0.66712356
        %v489 = vsub.f32 %v477, %v485
        %v490 = vsub.f32 %v478, %v486
        %v491 = vsub.f32 %v479, %v487
        %v492 = vsub.f32 %v480, %v488
        %v493 = vld [vmem:[%s427] sm:$0xff]
        %v494 = vld [vmem:[%s427 + $0x8] sm:$0xff]
        %v495 = vld [vmem:[%s427 + $0x10] sm:$0xff]
        %v496 = vld [vmem:[%s427 + $0x18] sm:$0xff]
        %v497 = vmul.f32 %v493, 0.74110115
        %v498 = vmul.f32 %v494, 0.74110115
        %v499 = vmul.f32 %v495, 0.74110115
        %v500 = vmul.f32 %v496, 0.74110115
        %v501 = vsub.f32 %v489, %v497
        %v502 = vsub.f32 %v490, %v498
        %v503 = vsub.f32 %v491, %v499
        %v504 = vsub.f32 %v492, %v500
        %vm505 = vcmp.gt.f32.partialorder %v501, 1.0
        %vm506 = vcmp.gt.f32.partialorder %v502, 1.0
        %vm507 = vcmp.gt.f32.partialorder %v503, 1.0
        %vm508 = vcmp.gt.f32.partialorder %v504, 1.0
        %v509 = vsel %vm505, 0.0, %v501
        %v510 = vsel %vm506, 0.0, %v502
        %v511 = vsel %vm507, 0.0, %v503
        %v512 = vsel %vm508, 0.0, %v504
        %v513 = vsub.f32 %v509, %v419
        %v514 = vsub.f32 %v510, %v420
        %v515 = vsub.f32 %v511, %v421
        %v516 = vsub.f32 %v512, %v422
        %s517 = scalar_lea.vmem [#allocation4], 128
        %518 = vst [vmem:[%s517] sm:$0xff] %v513
        %519 = vst [vmem:[%s517 + $0x8] sm:$0xff] %v514
        %520 = vst [vmem:[%s517 + $0x10] sm:$0xff] %v515
        %521 = vst [vmem:[%s517 + $0x18] sm:$0xff] %v516
        %v522 = vsel %vm505, 1, 0
        %v523 = vsel %vm506, 1, 0
        %v524 = vsel %vm507, 1, 0
        %v525 = vsel %vm508, 1, 0
        %v526 = vcvt.s32.f32 %v522
        %v527 = vcvt.s32.f32 %v523
        %v528 = vcvt.s32.f32 %v524
        %v529 = vcvt.s32.f32 %v525
        %530 = vst [vmem:[#allocation2 + $0x20] sm:$0xff] %v526
        %531 = vst [vmem:[#allocation2 + $0x60] sm:$0xff] %v527
        %532 = vst [vmem:[#allocation2 + $0xa0] sm:$0xff] %v528
        %533 = vst [vmem:[#allocation2 + $0xe0] sm:$0xff] %v529
        %v534 = vmul.f32 %v509, 0.8824673
        %v535 = vmul.f32 %v510, 0.8824673
        %v536 = vmul.f32 %v511, 0.8824673
        %v537 = vmul.f32 %v512, 0.8824673
        %s538 = scalar_lea.vmem %s182, 160 [#allocation6]
        %v539 = vld [vmem:[%s538] sm:$0xff]
        %v540 = vld [vmem:[%s538 + $0x8] sm:$0xff]
        %v541 = vld [vmem:[%s538 + $0x10] sm:$0xff]
        %v542 = vld [vmem:[%s538 + $0x18] sm:$0xff]
        %v543 = vadd.f32 %v534, %v539
        %v544 = vadd.f32 %v535, %v540
        %v545 = vadd.f32 %v536, %v541
        %v546 = vadd.f32 %v537, %v542
        %v547 = vld [vmem:[#allocation4] sm:$0xff]
        %v548 = vld [vmem:[#allocation4 + $0x8] sm:$0xff]
        %v549 = vld [vmem:[#allocation4 + $0x10] sm:$0xff]
        %v550 = vld [vmem:[#allocation4 + $0x18] sm:$0xff]
        %v551 = vmul.f32 %v547, 0.5690644
        %v552 = vmul.f32 %v548, 0.5690644
        %v553 = vmul.f32 %v549, 0.5690644
        %v554 = vmul.f32 %v550, 0.5690644
        %v555 = vsub.f32 %v543, %v551
        %v556 = vsub.f32 %v544, %v552
        %v557 = vsub.f32 %v545, %v553
        %v558 = vsub.f32 %v546, %v554
        %v559 = vld [vmem:[%s283] sm:$0xff]
        %v560 = vld [vmem:[%s283 + $0x8] sm:$0xff]
        %v561 = vld [vmem:[%s283 + $0x10] sm:$0xff]
        %v562 = vld [vmem:[%s283 + $0x18] sm:$0xff]
        %v563 = vmul.f32 %v559, 0.59246516
        %v564 = vmul.f32 %v560, 0.59246516
        %v565 = vmul.f32 %v561, 0.59246516
        %v566 = vmul.f32 %v562, 0.59246516
        %v567 = vsub.f32 %v555, %v563
        %v568 = vsub.f32 %v556, %v564
        %v569 = vsub.f32 %v557, %v565
        %v570 = vsub.f32 %v558, %v566
        %v571 = vld [vmem:[%s349] sm:$0xff]
        %v572 = vld [vmem:[%s349 + $0x8] sm:$0xff]
        %v573 = vld [vmem:[%s349 + $0x10] sm:$0xff]
        %v574 = vld [vmem:[%s349 + $0x18] sm:$0xff]
        %v575 = vmul.f32 %v571, 0.62320846
        %v576 = vmul.f32 %v572, 0.62320846
        %v577 = vmul.f32 %v573, 0.62320846
        %v578 = vmul.f32 %v574, 0.62320846
        %v579 = vsub.f32 %v567, %v575
        %v580 = vsub.f32 %v568, %v576
        %v581 = vsub.f32 %v569, %v577
        %v582 = vsub.f32 %v570, %v578
        %v583 = vld [vmem:[%s427] sm:$0xff]
        %v584 = vld [vmem:[%s427 + $0x8] sm:$0xff]
        %v585 = vld [vmem:[%s427 + $0x10] sm:$0xff]
        %v586 = vld [vmem:[%s427 + $0x18] sm:$0xff]
        %v587 = vmul.f32 %v583, 0.66712356
        %v588 = vmul.f32 %v584, 0.66712356
        %v589 = vmul.f32 %v585, 0.66712356
        %v590 = vmul.f32 %v586, 0.66712356
        %v591 = vsub.f32 %v579, %v587
        %v592 = vsub.f32 %v580, %v588
        %v593 = vsub.f32 %v581, %v589
        %v594 = vsub.f32 %v582, %v590
        %v595 = vld [vmem:[%s517] sm:$0xff]
        %v596 = vld [vmem:[%s517 + $0x8] sm:$0xff]
        %v597 = vld [vmem:[%s517 + $0x10] sm:$0xff]
        %v598 = vld [vmem:[%s517 + $0x18] sm:$0xff]
        %v599 = vmul.f32 %v595, 0.74110115
        %v600 = vmul.f32 %v596, 0.74110115
        %v601 = vmul.f32 %v597, 0.74110115
        %v602 = vmul.f32 %v598, 0.74110115
        %v603 = vsub.f32 %v591, %v599
        %v604 = vsub.f32 %v592, %v600
        %v605 = vsub.f32 %v593, %v601
        %v606 = vsub.f32 %v594, %v602
        %vm607 = vcmp.gt.f32.partialorder %v603, 1.0
        %vm608 = vcmp.gt.f32.partialorder %v604, 1.0
        %vm609 = vcmp.gt.f32.partialorder %v605, 1.0
        %vm610 = vcmp.gt.f32.partialorder %v606, 1.0
        %v611 = vsel %vm607, 0.0, %v603
        %v612 = vsel %vm608, 0.0, %v604
        %v613 = vsel %vm609, 0.0, %v605
        %v614 = vsel %vm610, 0.0, %v606
        %v615 = vsub.f32 %v611, %v509
        %v616 = vsub.f32 %v612, %v510
        %v617 = vsub.f32 %v613, %v511
        %v618 = vsub.f32 %v614, %v512
        %s619 = scalar_lea.vmem [#allocation4], 160
        %620 = vst [vmem:[%s619] sm:$0xff] %v615
        %621 = vst [vmem:[%s619 + $0x8] sm:$0xff] %v616
        %622 = vst [vmem:[%s619 + $0x10] sm:$0xff] %v617
        %623 = vst [vmem:[%s619 + $0x18] sm:$0xff] %v618
        %v624 = vsel %vm607, 1, 0
        %v625 = vsel %vm608, 1, 0
        %v626 = vsel %vm609, 1, 0
        %v627 = vsel %vm610, 1, 0
        %v628 = vcvt.s32.f32 %v624
        %v629 = vcvt.s32.f32 %v625
        %v630 = vcvt.s32.f32 %v626
        %v631 = vcvt.s32.f32 %v627
        %632 = vst [vmem:[#allocation2 + $0x28] sm:$0xff] %v628
        %633 = vst [vmem:[#allocation2 + $0x68] sm:$0xff] %v629
        %634 = vst [vmem:[#allocation2 + $0xa8] sm:$0xff] %v630
        %635 = vst [vmem:[#allocation2 + $0xe8] sm:$0xff] %v631
        %v636 = vmul.f32 %v611, 0.8824673
        %v637 = vmul.f32 %v612, 0.8824673
        %v638 = vmul.f32 %v613, 0.8824673
        %v639 = vmul.f32 %v614, 0.8824673
        %s640 = scalar_lea.vmem %s182, 192 [#allocation6]
        %v641 = vld [vmem:[%s640] sm:$0xff]
        %v642 = vld [vmem:[%s640 + $0x8] sm:$0xff]
        %v643 = vld [vmem:[%s640 + $0x10] sm:$0xff]
        %v644 = vld [vmem:[%s640 + $0x18] sm:$0xff]
        %v645 = vadd.f32 %v636, %v641
        %v646 = vadd.f32 %v637, %v642
        %v647 = vadd.f32 %v638, %v643
        %v648 = vadd.f32 %v639, %v644
        %v649 = vld [vmem:[#allocation4] sm:$0xff]
        %v650 = vld [vmem:[#allocation4 + $0x8] sm:$0xff]
        %v651 = vld [vmem:[#allocation4 + $0x10] sm:$0xff]
        %v652 = vld [vmem:[#allocation4 + $0x18] sm:$0xff]
        %v653 = vmul.f32 %v649, 0.55031365
        %v654 = vmul.f32 %v650, 0.55031365
        %v655 = vmul.f32 %v651, 0.55031365
        %v656 = vmul.f32 %v652, 0.55031365
        %v657 = vsub.f32 %v645, %v653
        %v658 = vsub.f32 %v646, %v654
        %v659 = vsub.f32 %v647, %v655
        %v660 = vsub.f32 %v648, %v656
        %v661 = vld [vmem:[%s283] sm:$0xff]
        %v662 = vld [vmem:[%s283 + $0x8] sm:$0xff]
        %v663 = vld [vmem:[%s283 + $0x10] sm:$0xff]
        %v664 = vld [vmem:[%s283 + $0x18] sm:$0xff]
        %v665 = vmul.f32 %v661, 0.5690644
        %v666 = vmul.f32 %v662, 0.5690644
        %v667 = vmul.f32 %v663, 0.5690644
        %v668 = vmul.f32 %v664, 0.5690644
        %v669 = vsub.f32 %v657, %v665
        %v670 = vsub.f32 %v658, %v666
        %v671 = vsub.f32 %v659, %v667
        %v672 = vsub.f32 %v660, %v668
        %v673 = vld [vmem:[%s349] sm:$0xff]
        %v674 = vld [vmem:[%s349 + $0x8] sm:$0xff]
        %v675 = vld [vmem:[%s349 + $0x10] sm:$0xff]
        %v676 = vld [vmem:[%s349 + $0x18] sm:$0xff]
        %v677 = vmul.f32 %v673, 0.59246516
        %v678 = vmul.f32 %v674, 0.59246516
        %v679 = vmul.f32 %v675, 0.59246516
        %v680 = vmul.f32 %v676, 0.59246516
        %v681 = vsub.f32 %v669, %v677
        %v682 = vsub.f32 %v670, %v678
        %v683 = vsub.f32 %v671, %v679
        %v684 = vsub.f32 %v672, %v680
        %v685 = vld [vmem:[%s427] sm:$0xff]
        %v686 = vld [vmem:[%s427 + $0x8] sm:$0xff]
        %v687 = vld [vmem:[%s427 + $0x10] sm:$0xff]
        %v688 = vld [vmem:[%s427 + $0x18] sm:$0xff]
        %v689 = vmul.f32 %v685, 0.62320846
        %v690 = vmul.f32 %v686, 0.62320846
        %v691 = vmul.f32 %v687, 0.62320846
        %v692 = vmul.f32 %v688, 0.62320846
        %v693 = vsub.f32 %v681, %v689
        %v694 = vsub.f32 %v682, %v690
        %v695 = vsub.f32 %v683, %v691
        %v696 = vsub.f32 %v684, %v692
        %v697 = vld [vmem:[%s517] sm:$0xff]
        %v698 = vld [vmem:[%s517 + $0x8] sm:$0xff]
        %v699 = vld [vmem:[%s517 + $0x10] sm:$0xff]
        %v700 = vld [vmem:[%s517 + $0x18] sm:$0xff]
        %v701 = vmul.f32 %v697, 0.66712356
        %v702 = vmul.f32 %v698, 0.66712356
        %v703 = vmul.f32 %v699, 0.66712356
        %v704 = vmul.f32 %v700, 0.66712356
        %v705 = vsub.f32 %v693, %v701
        %v706 = vsub.f32 %v694, %v702
        %v707 = vsub.f32 %v695, %v703
        %v708 = vsub.f32 %v696, %v704
        %v709 = vld [vmem:[%s619] sm:$0xff]
        %v710 = vld [vmem:[%s619 + $0x8] sm:$0xff]
        %v711 = vld [vmem:[%s619 + $0x10] sm:$0xff]
        %v712 = vld [vmem:[%s619 + $0x18] sm:$0xff]
        %v713 = vmul.f32 %v709, 0.74110115
        %v714 = vmul.f32 %v710, 0.74110115
        %v715 = vmul.f32 %v711, 0.74110115
        %v716 = vmul.f32 %v712, 0.74110115
        %v717 = vsub.f32 %v705, %v713
        %v718 = vsub.f32 %v706, %v714
        %v719 = vsub.f32 %v707, %v715
        %v720 = vsub.f32 %v708, %v716
        %vm721 = vcmp.gt.f32.partialorder %v717, 1.0
        %vm722 = vcmp.gt.f32.partialorder %v718, 1.0
        %vm723 = vcmp.gt.f32.partialorder %v719, 1.0
        %vm724 = vcmp.gt.f32.partialorder %v720, 1.0
        %v725 = vsel %vm721, 0.0, %v717
        %v726 = vsel %vm722, 0.0, %v718
        %v727 = vsel %vm723, 0.0, %v719
        %v728 = vsel %vm724, 0.0, %v720
        %v729 = vsub.f32 %v725, %v611
        %v730 = vsub.f32 %v726, %v612
        %v731 = vsub.f32 %v727, %v613
        %v732 = vsub.f32 %v728, %v614
        %s733 = scalar_lea.vmem [#allocation4], 192
        %734 = vst [vmem:[%s733] sm:$0xff] %v729
        %735 = vst [vmem:[%s733 + $0x8] sm:$0xff] %v730
        %736 = vst [vmem:[%s733 + $0x10] sm:$0xff] %v731
        %737 = vst [vmem:[%s733 + $0x18] sm:$0xff] %v732
        %v738 = vsel %vm721, 1, 0
        %v739 = vsel %vm722, 1, 0
        %v740 = vsel %vm723, 1, 0
        %v741 = vsel %vm724, 1, 0
        %v742 = vcvt.s32.f32 %v738
        %v743 = vcvt.s32.f32 %v739
        %v744 = vcvt.s32.f32 %v740
        %v745 = vcvt.s32.f32 %v741
        %746 = vst [vmem:[#allocation2 + $0x30] sm:$0xff] %v742
        %747 = vst [vmem:[#allocation2 + $0x70] sm:$0xff] %v743
        %748 = vst [vmem:[#allocation2 + $0xb0] sm:$0xff] %v744
        %749 = vst [vmem:[#allocation2 + $0xf0] sm:$0xff] %v745
        %v750 = vmul.f32 %v725, 0.8824673
        %v751 = vmul.f32 %v726, 0.8824673
        %v752 = vmul.f32 %v727, 0.8824673
        %v753 = vmul.f32 %v728, 0.8824673
        %s754 = scalar_lea.vmem %s182, 224 [#allocation6]
        %v755 = vld [vmem:[%s754] sm:$0xff]
        %v756 = vld [vmem:[%s754 + $0x8] sm:$0xff]
        %v757 = vld [vmem:[%s754 + $0x10] sm:$0xff]
        %v758 = vld [vmem:[%s754 + $0x18] sm:$0xff]
        %v759 = vadd.f32 %v750, %v755
        %v760 = vadd.f32 %v751, %v756
        %v761 = vadd.f32 %v752, %v757
        %v762 = vadd.f32 %v753, %v758
        %v763 = vld [vmem:[#allocation4] sm:$0xff]
        %v764 = vld [vmem:[#allocation4 + $0x8] sm:$0xff]
        %v765 = vld [vmem:[#allocation4 + $0x10] sm:$0xff]
        %v766 = vld [vmem:[#allocation4 + $0x18] sm:$0xff]
        %v767 = vmul.f32 %v763, 0.53475523
        %v768 = vmul.f32 %v764, 0.53475523
        %v769 = vmul.f32 %v765, 0.53475523
        %v770 = vmul.f32 %v766, 0.53475523
        %v771 = vsub.f32 %v759, %v767
        %v772 = vsub.f32 %v760, %v768
        %v773 = vsub.f32 %v761, %v769
        %v774 = vsub.f32 %v762, %v770
        %v775 = vld [vmem:[%s283] sm:$0xff]
        %v776 = vld [vmem:[%s283 + $0x8] sm:$0xff]
        %v777 = vld [vmem:[%s283 + $0x10] sm:$0xff]
        %v778 = vld [vmem:[%s283 + $0x18] sm:$0xff]
        %v779 = vmul.f32 %v775, 0.55031365
        %v780 = vmul.f32 %v776, 0.55031365
        %v781 = vmul.f32 %v777, 0.55031365
        %v782 = vmul.f32 %v778, 0.55031365
        %v783 = vsub.f32 %v771, %v779
        %v784 = vsub.f32 %v772, %v780
        %v785 = vsub.f32 %v773, %v781
        %v786 = vsub.f32 %v774, %v782
        %v787 = vld [vmem:[%s349] sm:$0xff]
        %v788 = vld [vmem:[%s349 + $0x8] sm:$0xff]
        %v789 = vld [vmem:[%s349 + $0x10] sm:$0xff]
        %v790 = vld [vmem:[%s349 + $0x18] sm:$0xff]
        %v791 = vmul.f32 %v787, 0.5690644
        %v792 = vmul.f32 %v788, 0.5690644
        %v793 = vmul.f32 %v789, 0.5690644
        %v794 = vmul.f32 %v790, 0.5690644
        %v795 = vsub.f32 %v783, %v791
        %v796 = vsub.f32 %v784, %v792
        %v797 = vsub.f32 %v785, %v793
        %v798 = vsub.f32 %v786, %v794
        %v799 = vld [vmem:[%s427] sm:$0xff]
        %v800 = vld [vmem:[%s427 + $0x8] sm:$0xff]
        %v801 = vld [vmem:[%s427 + $0x10] sm:$0xff]
        %v802 = vld [vmem:[%s427 + $0x18] sm:$0xff]
        %v803 = vmul.f32 %v799, 0.59246516
        %v804 = vmul.f32 %v800, 0.59246516
        %v805 = vmul.f32 %v801, 0.59246516
        %v806 = vmul.f32 %v802, 0.59246516
        %v807 = vsub.f32 %v795, %v803
        %v808 = vsub.f32 %v796, %v804
        %v809 = vsub.f32 %v797, %v805
        %v810 = vsub.f32 %v798, %v806
        %v811 = vld [vmem:[%s517] sm:$0xff]
        %v812 = vld [vmem:[%s517 + $0x8] sm:$0xff]
        %v813 = vld [vmem:[%s517 + $0x10] sm:$0xff]
        %v814 = vld [vmem:[%s517 + $0x18] sm:$0xff]
        %v815 = vmul.f32 %v811, 0.62320846
        %v816 = vmul.f32 %v812, 0.62320846
        %v817 = vmul.f32 %v813, 0.62320846
        %v818 = vmul.f32 %v814, 0.62320846
        %v819 = vsub.f32 %v807, %v815
        %v820 = vsub.f32 %v808, %v816
        %v821 = vsub.f32 %v809, %v817
        %v822 = vsub.f32 %v810, %v818
        %v823 = vld [vmem:[%s619] sm:$0xff]
        %v824 = vld [vmem:[%s619 + $0x8] sm:$0xff]
        %v825 = vld [vmem:[%s619 + $0x10] sm:$0xff]
        %v826 = vld [vmem:[%s619 + $0x18] sm:$0xff]
        %v827 = vmul.f32 %v823, 0.66712356
        %v828 = vmul.f32 %v824, 0.66712356
        %v829 = vmul.f32 %v825, 0.66712356
        %v830 = vmul.f32 %v826, 0.66712356
        %v831 = vsub.f32 %v819, %v827
        %v832 = vsub.f32 %v820, %v828
        %v833 = vsub.f32 %v821, %v829
        %v834 = vsub.f32 %v822, %v830
        %v835 = vld [vmem:[%s733] sm:$0xff]
        %v836 = vld [vmem:[%s733 + $0x8] sm:$0xff]
        %v837 = vld [vmem:[%s733 + $0x10] sm:$0xff]
        %v838 = vld [vmem:[%s733 + $0x18] sm:$0xff]
        %v839 = vmul.f32 %v835, 0.74110115
        %v840 = vmul.f32 %v836, 0.74110115
        %v841 = vmul.f32 %v837, 0.74110115
        %v842 = vmul.f32 %v838, 0.74110115
        %v843 = vsub.f32 %v831, %v839
        %v844 = vsub.f32 %v832, %v840
        %v845 = vsub.f32 %v833, %v841
        %v846 = vsub.f32 %v834, %v842
        %vm847 = vcmp.gt.f32.partialorder %v843, 1.0
        %vm848 = vcmp.gt.f32.partialorder %v844, 1.0
        %vm849 = vcmp.gt.f32.partialorder %v845, 1.0
        %vm850 = vcmp.gt.f32.partialorder %v846, 1.0
        %v851 = vsel %vm847, 0.0, %v843
        %v852 = vsel %vm848, 0.0, %v844
        %v853 = vsel %vm849, 0.0, %v845
        %v854 = vsel %vm850, 0.0, %v846
        %v855 = vsub.f32 %v851, %v725
        %v856 = vsub.f32 %v852, %v726
        %v857 = vsub.f32 %v853, %v727
        %v858 = vsub.f32 %v854, %v728
        %s859 = scalar_lea.vmem [#allocation4], 224
        %860 = vst [vmem:[%s859] sm:$0xff] %v855
        %861 = vst [vmem:[%s859 + $0x8] sm:$0xff] %v856
        %862 = vst [vmem:[%s859 + $0x10] sm:$0xff] %v857
        %863 = vst [vmem:[%s859 + $0x18] sm:$0xff] %v858
        %v864 = vsel %vm847, 1, 0
        %v865 = vsel %vm848, 1, 0
        %v866 = vsel %vm849, 1, 0
        %v867 = vsel %vm850, 1, 0
        %v868 = vcvt.s32.f32 %v864
        %v869 = vcvt.s32.f32 %v865
        %v870 = vcvt.s32.f32 %v866
        %v871 = vcvt.s32.f32 %v867
        %872 = vst [vmem:[#allocation2 + $0x38] sm:$0xff] %v868
        %873 = vst [vmem:[#allocation2 + $0x78] sm:$0xff] %v869
        %874 = vst [vmem:[#allocation2 + $0xb8] sm:$0xff] %v870
        %875 = vst [vmem:[#allocation2 + $0xf8] sm:$0xff] %v871
        %v876 = vld [vmem:[#allocation9] sm:$0xff]
        %v877 = vld [vmem:[#allocation9 + $0x8] sm:$0xff]
        %v878 = vld [vmem:[#allocation2] sm:$0xff]
        %v879 = vld [vmem:[#allocation2 + $0x8] sm:$0xff]
        %v880 = vld [vmem:[#allocation2 + $0x10] sm:$0xff]
        %v881 = vld [vmem:[#allocation2 + $0x18] sm:$0xff]
        %v882 = vld [vmem:[#allocation2 + $0x20] sm:$0xff]
        %v883 = vld [vmem:[#allocation2 + $0x28] sm:$0xff]
        %v884 = vld [vmem:[#allocation2 + $0x30] sm:$0xff]
        %v885 = vld [vmem:[#allocation2 + $0x38] sm:$0xff]
        %v886 = vld [vmem:[#allocation2 + $0x40] sm:$0xff]
        %v887 = vld [vmem:[#allocation2 + $0x48] sm:$0xff]
        %v888 = vld [vmem:[#allocation2 + $0x50] sm:$0xff]
        %v889 = vld [vmem:[#allocation2 + $0x58] sm:$0xff]
        %v890 = vld [vmem:[#allocation2 + $0x60] sm:$0xff]
        %v891 = vld [vmem:[#allocation2 + $0x68] sm:$0xff]
        %v892 = vld [vmem:[#allocation2 + $0x70] sm:$0xff]
        %v893 = vld [vmem:[#allocation2 + $0x78] sm:$0xff]
        %v894 = vld [vmem:[#allocation2 + $0x80] sm:$0xff]
        %v895 = vld [vmem:[#allocation2 + $0x88] sm:$0xff]
        %v896 = vld [vmem:[#allocation2 + $0x90] sm:$0xff]
        %v897 = vld [vmem:[#allocation2 + $0x98] sm:$0xff]
        %v898 = vld [vmem:[#allocation2 + $0xa0] sm:$0xff]
        %v899 = vld [vmem:[#allocation2 + $0xa8] sm:$0xff]
        %v900 = vld [vmem:[#allocation2 + $0xb0] sm:$0xff]
        %v901 = vld [vmem:[#allocation2 + $0xb8] sm:$0xff]
        %v902 = vld [vmem:[#allocation2 + $0xc0] sm:$0xff]
        %v903 = vld [vmem:[#allocation2 + $0xc8] sm:$0xff]
        %v904 = vld [vmem:[#allocation2 + $0xd0] sm:$0xff]
        %v905 = vld [vmem:[#allocation2 + $0xd8] sm:$0xff]
        %v906 = vld [vmem:[#allocation2 + $0xe0] sm:$0xff]
        %v907 = vld [vmem:[#allocation2 + $0xe8] sm:$0xff]
        %v908 = vld [vmem:[#allocation2 + $0xf0] sm:$0xff]
        %v909 = vld [vmem:[#allocation2 + $0xf8] sm:$0xff]
        %vm910 = vcmask 261120
        %v912 = vsel %vm910, %v876, 0
        %v915 = vsel %vm910, %v877, 0
        %917 = vmatprep.subr.mxu0 0.0
        %918 = vmatpush1.msra.mxu0 0.0
        %919 = vmatprep.subr.mxu0 0.0
        %920 = vmatpush1.msra.mxu0 0.0
        %921 = vmatprep.subr.mxu0 0.0
        %922 = vmatpush1.msra.mxu0 0.0
        %923 = vmatprep.subr.mxu0 0.0
        %924 = vmatpush1.msra.mxu0 0.0
        %925 = vmatprep.subr.mxu0 0.0
        %926 = vmatpush1.msra.mxu0 0.0
        %927 = vmatprep.subr.mxu0 0.0
        %928 = vmatpush1.msra.mxu0 0.0
        %929 = vmatprep.subr.mxu0 0.0
        %930 = vmatpush1.msra.mxu0 0.0
        %931 = vmatprep.subr.mxu0 0.0
        %932 = vmatpush1.msra.mxu0 0.0
        %933 = vmatprep.subr.mxu0 0.0
        %934 = vmatpush1.msra.mxu0 0.0
        %935 = vmatprep.subr.mxu0 0.0
        %936 = vmatpush1.msra.mxu0 0.0
        %937 = vmatprep.subr.mxu0 0.0
        %938 = vmatpush1.msra.mxu0 0.0
        %939 = vmatprep.subr.mxu0 0.0
        %940 = vmatpush1.msra.mxu0 0.0
        %941 = vmatprep.subr.mxu0 %v903
        %942 = vmatpush1.msra.mxu0 %v902
        %943 = vmatprep.subr.mxu0 %v895
        %944 = vmatpush1.msra.mxu0 %v894
        %945 = vmatprep.subr.mxu0 %v887
        %946 = vmatpush1.msra.mxu0 %v886
        %947 = vmatprep.subr.mxu0 %v879
        %948 = vmatpush1.msra.mxu0 %v878
        %949 = vmatprep.subr.mxu0 0.0
        %950 = vmatpush2.msra.mxu0 0.0
        %951 = vmatprep.subr.mxu0 0.0
        %952 = vmatpush2.msra.mxu0 0.0
        %953 = vmatprep.subr.mxu0 0.0
        %954 = vmatpush2.msra.mxu0 0.0
        %955 = vmatprep.subr.mxu0 0.0
        %956 = vmatpush2.msra.mxu0 0.0
        %957 = vmatprep.subr.mxu0 0.0
        %958 = vmatpush2.msra.mxu0 0.0
        %959 = vmatprep.subr.mxu0 0.0
        %960 = vmatpush2.msra.mxu0 0.0
        %961 = vmatprep.subr.mxu0 0.0
        %962 = vmatpush2.msra.mxu0 0.0
        %963 = vmatprep.subr.mxu0 0.0
        %964 = vmatpush2.msra.mxu0 0.0
        %965 = vmatprep.subr.mxu0 0.0
        %966 = vmatpush2.msra.mxu0 0.0
        %967 = vmatprep.subr.mxu0 0.0
        %968 = vmatpush2.msra.mxu0 0.0
        %969 = vmatprep.subr.mxu0 0.0
        %970 = vmatpush2.msra.mxu0 0.0
        %971 = vmatprep.subr.mxu0 0.0
        %972 = vmatpush2.msra.mxu0 0.0
        %973 = vmatprep.subr.mxu0 0.0
        %974 = vmatpush2.msra.mxu0 0.0
        %975 = vmatprep.subr.mxu0 0.0
        %976 = vmatpush2.msra.mxu0 0.0
        %977 = vmatprep.subr.mxu0 0.0
        %978 = vmatpush2.msra.mxu0 0.0
        %979 = vmatprep.subr.mxu0 0.0
        %980 = vmatpush2.msra.mxu0 0.0
        %981 = vmatprep.mubr.f32.mxu0 0.0
        %982 = vmatmul.mubr.f32.gmra.mxu0 %v912
        %v983 = vpop.f32.mrf.mxu0
        %v984 = vadd.f32 0.0, %v983
        %v985 = vpop.f32.mrf.mxu0
        %v986 = vadd.f32 0.0, %v985
        %987 = vmatprep.mubr.f32.mxu0 0.0
        %988 = vmatmul.mubr.f32.gmra.mxu0 %v915
        %v989 = vpop.f32.mrf.mxu0
        %v990 = vadd.f32 0.0, %v989
        %v991 = vpop.f32.mrf.mxu0
        %v992 = vadd.f32 0.0, %v991
        %993 = vdwg.mxu0
        %994 = vmatprep.subr.mxu0 0.0
        %995 = vmatpush1.msra.mxu0 0.0
        %996 = vmatprep.subr.mxu0 0.0
        %997 = vmatpush1.msra.mxu0 0.0
        %998 = vmatprep.subr.mxu0 0.0
        %999 = vmatpush1.msra.mxu0 0.0
        %1000 = vmatprep.subr.mxu0 0.0
        %1001 = vmatpush1.msra.mxu0 0.0
        %1002 = vmatprep.subr.mxu0 0.0
        %1003 = vmatpush1.msra.mxu0 0.0
        %1004 = vmatprep.subr.mxu0 0.0
        %1005 = vmatpush1.msra.mxu0 0.0
        %1006 = vmatprep.subr.mxu0 0.0
        %1007 = vmatpush1.msra.mxu0 0.0
        %1008 = vmatprep.subr.mxu0 0.0
        %1009 = vmatpush1.msra.mxu0 0.0
        %1010 = vmatprep.subr.mxu0 0.0
        %1011 = vmatpush1.msra.mxu0 0.0
        %1012 = vmatprep.subr.mxu0 0.0
        %1013 = vmatpush1.msra.mxu0 0.0
        %1014 = vmatprep.subr.mxu0 0.0
        %1015 = vmatpush1.msra.mxu0 0.0
        %1016 = vmatprep.subr.mxu0 0.0
        %1017 = vmatpush1.msra.mxu0 0.0
        %1018 = vmatprep.subr.mxu0 %v905
        %1019 = vmatpush1.msra.mxu0 %v904
        %1020 = vmatprep.subr.mxu0 %v897
        %1021 = vmatpush1.msra.mxu0 %v896
        %1022 = vmatprep.subr.mxu0 %v889
        %1023 = vmatpush1.msra.mxu0 %v888
        %1024 = vmatprep.subr.mxu0 %v881
        %1025 = vmatpush1.msra.mxu0 %v880
        %1026 = vmatprep.subr.mxu0 0.0
        %1027 = vmatpush2.msra.mxu0 0.0
        %1028 = vmatprep.subr.mxu0 0.0
        %1029 = vmatpush2.msra.mxu0 0.0
        %1030 = vmatprep.subr.mxu0 0.0
        %1031 = vmatpush2.msra.mxu0 0.0
        %1032 = vmatprep.subr.mxu0 0.0
        %1033 = vmatpush2.msra.mxu0 0.0
        %1034 = vmatprep.subr.mxu0 0.0
        %1035 = vmatpush2.msra.mxu0 0.0
        %1036 = vmatprep.subr.mxu0 0.0
        %1037 = vmatpush2.msra.mxu0 0.0
        %1038 = vmatprep.subr.mxu0 0.0
        %1039 = vmatpush2.msra.mxu0 0.0
        %1040 = vmatprep.subr.mxu0 0.0
        %1041 = vmatpush2.msra.mxu0 0.0
        %1042 = vmatprep.subr.mxu0 0.0
        %1043 = vmatpush2.msra.mxu0 0.0
        %1044 = vmatprep.subr.mxu0 0.0
        %1045 = vmatpush2.msra.mxu0 0.0
        %1046 = vmatprep.subr.mxu0 0.0
        %1047 = vmatpush2.msra.mxu0 0.0
        %1048 = vmatprep.subr.mxu0 0.0
        %1049 = vmatpush2.msra.mxu0 0.0
        %1050 = vmatprep.subr.mxu0 0.0
        %1051 = vmatpush2.msra.mxu0 0.0
        %1052 = vmatprep.subr.mxu0 0.0
        %1053 = vmatpush2.msra.mxu0 0.0
        %1054 = vmatprep.subr.mxu0 0.0
        %1055 = vmatpush2.msra.mxu0 0.0
        %1056 = vmatprep.subr.mxu0 0.0
        %1057 = vmatpush2.msra.mxu0 0.0
        %1058 = vmatprep.mubr.f32.mxu0 0.0
        %1059 = vmatmul.mubr.f32.gmra.mxu0 %v912
        %v1060 = vpop.f32.mrf.mxu0
        %v1061 = vadd.f32 0.0, %v1060
        %v1062 = vpop.f32.mrf.mxu0
        %v1063 = vadd.f32 0.0, %v1062
        %1064 = vmatprep.mubr.f32.mxu0 0.0
        %1065 = vmatmul.mubr.f32.gmra.mxu0 %v915
        %v1066 = vpop.f32.mrf.mxu0
        %v1067 = vadd.f32 0.0, %v1066
        %v1068 = vpop.f32.mrf.mxu0
        %v1069 = vadd.f32 0.0, %v1068
        %1070 = vdwg.mxu0
        %1071 = vmatprep.subr.mxu0 0.0
        %1072 = vmatpush1.msra.mxu0 0.0
        %1073 = vmatprep.subr.mxu0 0.0
        %1074 = vmatpush1.msra.mxu0 0.0
        %1075 = vmatprep.subr.mxu0 0.0
        %1076 = vmatpush1.msra.mxu0 0.0
        %1077 = vmatprep.subr.mxu0 0.0
        %1078 = vmatpush1.msra.mxu0 0.0
        %1079 = vmatprep.subr.mxu0 0.0
        %1080 = vmatpush1.msra.mxu0 0.0
        %1081 = vmatprep.subr.mxu0 0.0
        %1082 = vmatpush1.msra.mxu0 0.0
        %1083 = vmatprep.subr.mxu0 0.0
        %1084 = vmatpush1.msra.mxu0 0.0
        %1085 = vmatprep.subr.mxu0 0.0
        %1086 = vmatpush1.msra.mxu0 0.0
        %1087 = vmatprep.subr.mxu0 0.0
        %1088 = vmatpush1.msra.mxu0 0.0
        %1089 = vmatprep.subr.mxu0 0.0
        %1090 = vmatpush1.msra.mxu0 0.0
        %1091 = vmatprep.subr.mxu0 0.0
        %1092 = vmatpush1.msra.mxu0 0.0
        %1093 = vmatprep.subr.mxu0 0.0
        %1094 = vmatpush1.msra.mxu0 0.0
        %1095 = vmatprep.subr.mxu0 %v907
        %1096 = vmatpush1.msra.mxu0 %v906
        %1097 = vmatprep.subr.mxu0 %v899
        %1098 = vmatpush1.msra.mxu0 %v898
        %1099 = vmatprep.subr.mxu0 %v891
        %1100 = vmatpush1.msra.mxu0 %v890
        %1101 = vmatprep.subr.mxu0 %v883
        %1102 = vmatpush1.msra.mxu0 %v882
        %1103 = vmatprep.subr.mxu0 0.0
        %1104 = vmatpush2.msra.mxu0 0.0
        %1105 = vmatprep.subr.mxu0 0.0
        %1106 = vmatpush2.msra.mxu0 0.0
        %1107 = vmatprep.subr.mxu0 0.0
        %1108 = vmatpush2.msra.mxu0 0.0
        %1109 = vmatprep.subr.mxu0 0.0
        %1110 = vmatpush2.msra.mxu0 0.0
        %1111 = vmatprep.subr.mxu0 0.0
        %1112 = vmatpush2.msra.mxu0 0.0
        %1113 = vmatprep.subr.mxu0 0.0
        %1114 = vmatpush2.msra.mxu0 0.0
        %1115 = vmatprep.subr.mxu0 0.0
        %1116 = vmatpush2.msra.mxu0 0.0
        %1117 = vmatprep.subr.mxu0 0.0
        %1118 = vmatpush2.msra.mxu0 0.0
        %1119 = vmatprep.subr.mxu0 0.0
        %1120 = vmatpush2.msra.mxu0 0.0
        %1121 = vmatprep.subr.mxu0 0.0
        %1122 = vmatpush2.msra.mxu0 0.0
        %1123 = vmatprep.subr.mxu0 0.0
        %1124 = vmatpush2.msra.mxu0 0.0
        %1125 = vmatprep.subr.mxu0 0.0
        %1126 = vmatpush2.msra.mxu0 0.0
        %1127 = vmatprep.subr.mxu0 0.0
        %1128 = vmatpush2.msra.mxu0 0.0
        %1129 = vmatprep.subr.mxu0 0.0
        %1130 = vmatpush2.msra.mxu0 0.0
        %1131 = vmatprep.subr.mxu0 0.0
        %1132 = vmatpush2.msra.mxu0 0.0
        %1133 = vmatprep.subr.mxu0 0.0
        %1134 = vmatpush2.msra.mxu0 0.0
        %1135 = vmatprep.mubr.f32.mxu0 0.0
        %1136 = vmatmul.mubr.f32.gmra.mxu0 %v912
        %v1137 = vpop.f32.mrf.mxu0
        %v1138 = vadd.f32 0.0, %v1137
        %v1139 = vpop.f32.mrf.mxu0
        %v1140 = vadd.f32 0.0, %v1139
        %1141 = vmatprep.mubr.f32.mxu0 0.0
        %1142 = vmatmul.mubr.f32.gmra.mxu0 %v915
        %v1143 = vpop.f32.mrf.mxu0
        %v1144 = vadd.f32 0.0, %v1143
        %v1145 = vpop.f32.mrf.mxu0
        %v1146 = vadd.f32 0.0, %v1145
        %1147 = vdwg.mxu0
        %1148 = vmatprep.subr.mxu0 0.0
        %1149 = vmatpush1.msra.mxu0 0.0
        %1150 = vmatprep.subr.mxu0 0.0
        %1151 = vmatpush1.msra.mxu0 0.0
        %1152 = vmatprep.subr.mxu0 0.0
        %1153 = vmatpush1.msra.mxu0 0.0
        %1154 = vmatprep.subr.mxu0 0.0
        %1155 = vmatpush1.msra.mxu0 0.0
        %1156 = vmatprep.subr.mxu0 0.0
        %1157 = vmatpush1.msra.mxu0 0.0
        %1158 = vmatprep.subr.mxu0 0.0
        %1159 = vmatpush1.msra.mxu0 0.0
        %1160 = vmatprep.subr.mxu0 0.0
        %1161 = vmatpush1.msra.mxu0 0.0
        %1162 = vmatprep.subr.mxu0 0.0
        %1163 = vmatpush1.msra.mxu0 0.0
        %1164 = vmatprep.subr.mxu0 0.0
        %1165 = vmatpush1.msra.mxu0 0.0
        %1166 = vmatprep.subr.mxu0 0.0
        %1167 = vmatpush1.msra.mxu0 0.0
        %1168 = vmatprep.subr.mxu0 0.0
        %1169 = vmatpush1.msra.mxu0 0.0
        %1170 = vmatprep.subr.mxu0 0.0
        %1171 = vmatpush1.msra.mxu0 0.0
        %1172 = vmatprep.subr.mxu0 %v909
        %1173 = vmatpush1.msra.mxu0 %v908
        %1174 = vmatprep.subr.mxu0 %v901
        %1175 = vmatpush1.msra.mxu0 %v900
        %1176 = vmatprep.subr.mxu0 %v893
        %1177 = vmatpush1.msra.mxu0 %v892
        %1178 = vmatprep.subr.mxu0 %v885
        %1179 = vmatpush1.msra.mxu0 %v884
        %1180 = vmatprep.subr.mxu0 0.0
        %1181 = vmatpush2.msra.mxu0 0.0
        %1182 = vmatprep.subr.mxu0 0.0
        %1183 = vmatpush2.msra.mxu0 0.0
        %1184 = vmatprep.subr.mxu0 0.0
        %1185 = vmatpush2.msra.mxu0 0.0
        %1186 = vmatprep.subr.mxu0 0.0
        %1187 = vmatpush2.msra.mxu0 0.0
        %1188 = vmatprep.subr.mxu0 0.0
        %1189 = vmatpush2.msra.mxu0 0.0
        %1190 = vmatprep.subr.mxu0 0.0
        %1191 = vmatpush2.msra.mxu0 0.0
        %1192 = vmatprep.subr.mxu0 0.0
        %1193 = vmatpush2.msra.mxu0 0.0
        %1194 = vmatprep.subr.mxu0 0.0
        %1195 = vmatpush2.msra.mxu0 0.0
        %1196 = vmatprep.subr.mxu0 0.0
        %1197 = vmatpush2.msra.mxu0 0.0
        %1198 = vmatprep.subr.mxu0 0.0
        %1199 = vmatpush2.msra.mxu0 0.0
        %1200 = vmatprep.subr.mxu0 0.0
        %1201 = vmatpush2.msra.mxu0 0.0
        %1202 = vmatprep.subr.mxu0 0.0
        %1203 = vmatpush2.msra.mxu0 0.0
        %1204 = vmatprep.subr.mxu0 0.0
        %1205 = vmatpush2.msra.mxu0 0.0
        %1206 = vmatprep.subr.mxu0 0.0
        %1207 = vmatpush2.msra.mxu0 0.0
        %1208 = vmatprep.subr.mxu0 0.0
        %1209 = vmatpush2.msra.mxu0 0.0
        %1210 = vmatprep.subr.mxu0 0.0
        %1211 = vmatpush2.msra.mxu0 0.0
        %1212 = vmatprep.mubr.f32.mxu0 0.0
        %1213 = vmatmul.mubr.f32.gmra.mxu0 %v912
        %v1214 = vpop.f32.mrf.mxu0
        %v1215 = vadd.f32 0.0, %v1214
        %v1216 = vpop.f32.mrf.mxu0
        %v1217 = vadd.f32 0.0, %v1216
        %1218 = vmatprep.mubr.f32.mxu0 0.0
        %1219 = vmatmul.mubr.f32.gmra.mxu0 %v915
        %v1220 = vpop.f32.mrf.mxu0
        %v1221 = vadd.f32 0.0, %v1220
        %v1222 = vpop.f32.mrf.mxu0
        %v1223 = vadd.f32 0.0, %v1222
        %1224 = vdwg.mxu0
        %1225 = vst [vmem:[#allocation3] sm:$0xff] %v984
        %1226 = vst [vmem:[#allocation3 + $0x8] sm:$0xff] %v986
        %1227 = vst [vmem:[#allocation3 + $0x10] sm:$0xff] %v1061
        %1228 = vst [vmem:[#allocation3 + $0x18] sm:$0xff] %v1063
        %1229 = vst [vmem:[#allocation3 + $0x20] sm:$0xff] %v1138
        %1230 = vst [vmem:[#allocation3 + $0x28] sm:$0xff] %v1140
        %1231 = vst [vmem:[#allocation3 + $0x30] sm:$0xff] %v1215
        %1232 = vst [vmem:[#allocation3 + $0x38] sm:$0xff] %v1217
        %1233 = vst [vmem:[#allocation3 + $0x40] sm:$0xff] %v990
        %1234 = vst [vmem:[#allocation3 + $0x48] sm:$0xff] %v992
        %1235 = vst [vmem:[#allocation3 + $0x50] sm:$0xff] %v1067
        %1236 = vst [vmem:[#allocation3 + $0x58] sm:$0xff] %v1069
        %1237 = vst [vmem:[#allocation3 + $0x60] sm:$0xff] %v1144
        %1238 = vst [vmem:[#allocation3 + $0x68] sm:$0xff] %v1146
        %1239 = vst [vmem:[#allocation3 + $0x70] sm:$0xff] %v1221
        %1240 = vst [vmem:[#allocation3 + $0x78] sm:$0xff] %v1223
        %v1241 = vld [vmem:[#allocation3] sm:$0xff]
        %v1242 = vld [vmem:[#allocation3 + $0x40] sm:$0xff]
        %v1243 = vadd.f32 %v1241, 0.0
        %v1244 = vadd.f32 %v1242, 0.0
        %vm1245 = vcmp.gt.f32.partialorder %v1243, 1.0
        %vm1246 = vcmp.gt.f32.partialorder %v1244, 1.0
        %v1247 = vsel %vm1245, 0.0, %v1243
        %v1248 = vsel %vm1246, 0.0, %v1244
        %1249 = vst [vmem:[#allocation5] sm:$0xff] %v1247
        %1250 = vst [vmem:[#allocation5 + $0x8] sm:$0xff] %v1248
        %v1251 = vsel %vm1245, 1, 0
        %v1252 = vsel %vm1246, 1, 0
        %v1253 = vcvt.s32.f32 %v1251
        %v1254 = vcvt.s32.f32 %v1252
        %1255 = vst [vmem:[%s206] sm:$0xff] %v1253
        %1256 = vst [vmem:[%s206 + $0x8] sm:$0xff] %v1254
        %1257 = vst [vmem:[%s213] sm:$0xff] %v1247
        %1258 = vst [vmem:[%s213 + $0x8] sm:$0xff] %v1248
        %v1259 = vmul.f32 %v1247, 0.8824673
        %v1260 = vmul.f32 %v1248, 0.8824673
        %v1261 = vld [vmem:[#allocation3 + $0x8] sm:$0xff]
        %v1262 = vld [vmem:[#allocation3 + $0x48] sm:$0xff]
        %v1263 = vadd.f32 %v1259, %v1261
        %v1264 = vadd.f32 %v1260, %v1262
        %v1265 = vld [vmem:[#allocation5] sm:$0xff]
        %v1266 = vld [vmem:[#allocation5 + $0x8] sm:$0xff]
        %v1267 = vmul.f32 %v1265, 0.74110115
        %v1268 = vmul.f32 %v1266, 0.74110115
        %v1269 = vsub.f32 %v1263, %v1267
        %v1270 = vsub.f32 %v1264, %v1268
        %vm1271 = vcmp.gt.f32.partialorder %v1269, 1.0
        %vm1272 = vcmp.gt.f32.partialorder %v1270, 1.0
        %v1273 = vsel %vm1271, 0.0, %v1269
        %v1274 = vsel %vm1272, 0.0, %v1270
        %v1275 = vsub.f32 %v1273, %v1247
        %v1276 = vsub.f32 %v1274, %v1248
        %s1277 = scalar_lea.vmem [#allocation5], 16
        %1278 = vst [vmem:[%s1277] sm:$0xff] %v1275
        %1279 = vst [vmem:[%s1277 + $0x8] sm:$0xff] %v1276
        %v1280 = vsel %vm1271, 1, 0
        %v1281 = vsel %vm1272, 1, 0
        %v1282 = vcvt.s32.f32 %v1280
        %v1283 = vcvt.s32.f32 %v1281
        %s1284 = scalar_lea.vmem %s206, 16 [#allocation11]
        %1285 = vst [vmem:[%s1284] sm:$0xff] %v1282
        %1286 = vst [vmem:[%s1284 + $0x8] sm:$0xff] %v1283
        %s1287 = scalar_lea.vmem %s213, 16 [#allocation12]
        %1288 = vst [vmem:[%s1287] sm:$0xff] %v1273
        %1289 = vst [vmem:[%s1287 + $0x8] sm:$0xff] %v1274
        %v1290 = vmul.f32 %v1273, 0.8824673
        %v1291 = vmul.f32 %v1274, 0.8824673
        %v1292 = vld [vmem:[#allocation3 + $0x10] sm:$0xff]
        %v1293 = vld [vmem:[#allocation3 + $0x50] sm:$0xff]
        %v1294 = vadd.f32 %v1290, %v1292
        %v1295 = vadd.f32 %v1291, %v1293
        %v1296 = vld [vmem:[#allocation5] sm:$0xff]
        %v1297 = vld [vmem:[#allocation5 + $0x8] sm:$0xff]
        %v1298 = vmul.f32 %v1296, 0.66712356
        %v1299 = vmul.f32 %v1297, 0.66712356
        %v1300 = vsub.f32 %v1294, %v1298
        %v1301 = vsub.f32 %v1295, %v1299
        %v1302 = vld [vmem:[%s1277] sm:$0xff]
        %v1303 = vld [vmem:[%s1277 + $0x8] sm:$0xff]
        %v1304 = vmul.f32 %v1302, 0.74110115
        %v1305 = vmul.f32 %v1303, 0.74110115
        %v1306 = vsub.f32 %v1300, %v1304
        %v1307 = vsub.f32 %v1301, %v1305
        %vm1308 = vcmp.gt.f32.partialorder %v1306, 1.0
        %vm1309 = vcmp.gt.f32.partialorder %v1307, 1.0
        %v1310 = vsel %vm1308, 0.0, %v1306
        %v1311 = vsel %vm1309, 0.0, %v1307
        %v1312 = vsub.f32 %v1310, %v1273
        %v1313 = vsub.f32 %v1311, %v1274
        %s1314 = scalar_lea.vmem [#allocation5], 32
        %1315 = vst [vmem:[%s1314] sm:$0xff] %v1312
        %1316 = vst [vmem:[%s1314 + $0x8] sm:$0xff] %v1313
        %v1317 = vsel %vm1308, 1, 0
        %v1318 = vsel %vm1309, 1, 0
        %v1319 = vcvt.s32.f32 %v1317
        %v1320 = vcvt.s32.f32 %v1318
        %s1321 = scalar_lea.vmem %s206, 32 [#allocation11]
        %1322 = vst [vmem:[%s1321] sm:$0xff] %v1319
        %1323 = vst [vmem:[%s1321 + $0x8] sm:$0xff] %v1320
        %s1324 = scalar_lea.vmem %s213, 32 [#allocation12]
        %1325 = vst [vmem:[%s1324] sm:$0xff] %v1310
        %1326 = vst [vmem:[%s1324 + $0x8] sm:$0xff] %v1311
        %v1327 = vmul.f32 %v1310, 0.8824673
        %v1328 = vmul.f32 %v1311, 0.8824673
        %v1329 = vld [vmem:[#allocation3 + $0x18] sm:$0xff]
        %v1330 = vld [vmem:[#allocation3 + $0x58] sm:$0xff]
        %v1331 = vadd.f32 %v1327, %v1329
        %v1332 = vadd.f32 %v1328, %v1330
        %v1333 = vld [vmem:[#allocation5] sm:$0xff]
        %v1334 = vld [vmem:[#allocation5 + $0x8] sm:$0xff]
        %v1335 = vmul.f32 %v1333, 0.62320846
        %v1336 = vmul.f32 %v1334, 0.62320846
        %v1337 = vsub.f32 %v1331, %v1335
        %v1338 = vsub.f32 %v1332, %v1336
        %v1339 = vld [vmem:[%s1277] sm:$0xff]
        %v1340 = vld [vmem:[%s1277 + $0x8] sm:$0xff]
        %v1341 = vmul.f32 %v1339, 0.66712356
        %v1342 = vmul.f32 %v1340, 0.66712356
        %v1343 = vsub.f32 %v1337, %v1341
        %v1344 = vsub.f32 %v1338, %v1342
        %v1345 = vld [vmem:[%s1314] sm:$0xff]
        %v1346 = vld [vmem:[%s1314 + $0x8] sm:$0xff]
        %v1347 = vmul.f32 %v1345, 0.74110115
        %v1348 = vmul.f32 %v1346, 0.74110115
        %v1349 = vsub.f32 %v1343, %v1347
        %v1350 = vsub.f32 %v1344, %v1348
        %vm1351 = vcmp.gt.f32.partialorder %v1349, 1.0
        %vm1352 = vcmp.gt.f32.partialorder %v1350, 1.0
        %v1353 = vsel %vm1351, 0.0, %v1349
        %v1354 = vsel %vm1352, 0.0, %v1350
        %v1355 = vsub.f32 %v1353, %v1310
        %v1356 = vsub.f32 %v1354, %v1311
        %s1357 = scalar_lea.vmem [#allocation5], 48
        %1358 = vst [vmem:[%s1357] sm:$0xff] %v1355
        %1359 = vst [vmem:[%s1357 + $0x8] sm:$0xff] %v1356
        %v1360 = vsel %vm1351, 1, 0
        %v1361 = vsel %vm1352, 1, 0
        %v1362 = vcvt.s32.f32 %v1360
        %v1363 = vcvt.s32.f32 %v1361
        %s1364 = scalar_lea.vmem %s206, 48 [#allocation11]
        %1365 = vst [vmem:[%s1364] sm:$0xff] %v1362
        %1366 = vst [vmem:[%s1364 + $0x8] sm:$0xff] %v1363
        %s1367 = scalar_lea.vmem %s213, 48 [#allocation12]
        %1368 = vst [vmem:[%s1367] sm:$0xff] %v1353
        %1369 = vst [vmem:[%s1367 + $0x8] sm:$0xff] %v1354
        %v1370 = vmul.f32 %v1353, 0.8824673
        %v1371 = vmul.f32 %v1354, 0.8824673
        %v1372 = vld [vmem:[#allocation3 + $0x20] sm:$0xff]
        %v1373 = vld [vmem:[#allocation3 + $0x60] sm:$0xff]
        %v1374 = vadd.f32 %v1370, %v1372
        %v1375 = vadd.f32 %v1371, %v1373
        %v1376 = vld [vmem:[#allocation5] sm:$0xff]
        %v1377 = vld [vmem:[#allocation5 + $0x8] sm:$0xff]
        %v1378 = vmul.f32 %v1376, 0.59246516
        %v1379 = vmul.f32 %v1377, 0.59246516
        %v1380 = vsub.f32 %v1374, %v1378
        %v1381 = vsub.f32 %v1375, %v1379
        %v1382 = vld [vmem:[%s1277] sm:$0xff]
        %v1383 = vld [vmem:[%s1277 + $0x8] sm:$0xff]
        %v1384 = vmul.f32 %v1382, 0.62320846
        %v1385 = vmul.f32 %v1383, 0.62320846
        %v1386 = vsub.f32 %v1380, %v1384
        %v1387 = vsub.f32 %v1381, %v1385
        %v1388 = vld [vmem:[%s1314] sm:$0xff]
        %v1389 = vld [vmem:[%s1314 + $0x8] sm:$0xff]
        %v1390 = vmul.f32 %v1388, 0.66712356
        %v1391 = vmul.f32 %v1389, 0.66712356
        %v1392 = vsub.f32 %v1386, %v1390
        %v1393 = vsub.f32 %v1387, %v1391
        %v1394 = vld [vmem:[%s1357] sm:$0xff]
        %v1395 = vld [vmem:[%s1357 + $0x8] sm:$0xff]
        %v1396 = vmul.f32 %v1394, 0.74110115
        %v1397 = vmul.f32 %v1395, 0.74110115
        %v1398 = vsub.f32 %v1392, %v1396
        %v1399 = vsub.f32 %v1393, %v1397
        %vm1400 = vcmp.gt.f32.partialorder %v1398, 1.0
        %vm1401 = vcmp.gt.f32.partialorder %v1399, 1.0
        %v1402 = vsel %vm1400, 0.0, %v1398
        %v1403 = vsel %vm1401, 0.0, %v1399
        %v1404 = vsub.f32 %v1402, %v1353
        %v1405 = vsub.f32 %v1403, %v1354
        %s1406 = scalar_lea.vmem [#allocation5], 64
        %1407 = vst [vmem:[%s1406] sm:$0xff] %v1404
        %1408 = vst [vmem:[%s1406 + $0x8] sm:$0xff] %v1405
        %v1409 = vsel %vm1400, 1, 0
        %v1410 = vsel %vm1401, 1, 0
        %v1411 = vcvt.s32.f32 %v1409
        %v1412 = vcvt.s32.f32 %v1410
        %s1413 = scalar_lea.vmem %s206, 64 [#allocation11]
        %1414 = vst [vmem:[%s1413] sm:$0xff] %v1411
        %1415 = vst [vmem:[%s1413 + $0x8] sm:$0xff] %v1412
        %s1416 = scalar_lea.vmem %s213, 64 [#allocation12]
        %1417 = vst [vmem:[%s1416] sm:$0xff] %v1402
        %1418 = vst [vmem:[%s1416 + $0x8] sm:$0xff] %v1403
        %v1419 = vmul.f32 %v1402, 0.8824673
        %v1420 = vmul.f32 %v1403, 0.8824673
        %v1421 = vld [vmem:[#allocation3 + $0x28] sm:$0xff]
        %v1422 = vld [vmem:[#allocation3 + $0x68] sm:$0xff]
        %v1423 = vadd.f32 %v1419, %v1421
        %v1424 = vadd.f32 %v1420, %v1422
        %v1425 = vld [vmem:[#allocation5] sm:$0xff]
        %v1426 = vld [vmem:[#allocation5 + $0x8] sm:$0xff]
        %v1427 = vmul.f32 %v1425, 0.5690644
        %v1428 = vmul.f32 %v1426, 0.5690644
        %v1429 = vsub.f32 %v1423, %v1427
        %v1430 = vsub.f32 %v1424, %v1428
        %v1431 = vld [vmem:[%s1277] sm:$0xff]
        %v1432 = vld [vmem:[%s1277 + $0x8] sm:$0xff]
        %v1433 = vmul.f32 %v1431, 0.59246516
        %v1434 = vmul.f32 %v1432, 0.59246516
        %v1435 = vsub.f32 %v1429, %v1433
        %v1436 = vsub.f32 %v1430, %v1434
        %v1437 = vld [vmem:[%s1314] sm:$0xff]
        %v1438 = vld [vmem:[%s1314 + $0x8] sm:$0xff]
        %v1439 = vmul.f32 %v1437, 0.62320846
        %v1440 = vmul.f32 %v1438, 0.62320846
        %v1441 = vsub.f32 %v1435, %v1439
        %v1442 = vsub.f32 %v1436, %v1440
        %v1443 = vld [vmem:[%s1357] sm:$0xff]
        %v1444 = vld [vmem:[%s1357 + $0x8] sm:$0xff]
        %v1445 = vmul.f32 %v1443, 0.66712356
        %v1446 = vmul.f32 %v1444, 0.66712356
        %v1447 = vsub.f32 %v1441, %v1445
        %v1448 = vsub.f32 %v1442, %v1446
        %v1449 = vld [vmem:[%s1406] sm:$0xff]
        %v1450 = vld [vmem:[%s1406 + $0x8] sm:$0xff]
        %v1451 = vmul.f32 %v1449, 0.74110115
        %v1452 = vmul.f32 %v1450, 0.74110115
        %v1453 = vsub.f32 %v1447, %v1451
        %v1454 = vsub.f32 %v1448, %v1452
        %vm1455 = vcmp.gt.f32.partialorder %v1453, 1.0
        %vm1456 = vcmp.gt.f32.partialorder %v1454, 1.0
        %v1457 = vsel %vm1455, 0.0, %v1453
        %v1458 = vsel %vm1456, 0.0, %v1454
        %v1459 = vsub.f32 %v1457, %v1402
        %v1460 = vsub.f32 %v1458, %v1403
        %s1461 = scalar_lea.vmem [#allocation5], 80
        %1462 = vst [vmem:[%s1461] sm:$0xff] %v1459
        %1463 = vst [vmem:[%s1461 + $0x8] sm:$0xff] %v1460
        %v1464 = vsel %vm1455, 1, 0
        %v1465 = vsel %vm1456, 1, 0
        %v1466 = vcvt.s32.f32 %v1464
        %v1467 = vcvt.s32.f32 %v1465
        %s1468 = scalar_lea.vmem %s206, 80 [#allocation11]
        %1469 = vst [vmem:[%s1468] sm:$0xff] %v1466
        %1470 = vst [vmem:[%s1468 + $0x8] sm:$0xff] %v1467
        %s1471 = scalar_lea.vmem %s213, 80 [#allocation12]
        %1472 = vst [vmem:[%s1471] sm:$0xff] %v1457
        %1473 = vst [vmem:[%s1471 + $0x8] sm:$0xff] %v1458
        %v1474 = vmul.f32 %v1457, 0.8824673
        %v1475 = vmul.f32 %v1458, 0.8824673
        %v1476 = vld [vmem:[#allocation3 + $0x30] sm:$0xff]
        %v1477 = vld [vmem:[#allocation3 + $0x70] sm:$0xff]
        %v1478 = vadd.f32 %v1474, %v1476
        %v1479 = vadd.f32 %v1475, %v1477
        %v1480 = vld [vmem:[#allocation5] sm:$0xff]
        %v1481 = vld [vmem:[#allocation5 + $0x8] sm:$0xff]
        %v1482 = vmul.f32 %v1480, 0.55031365
        %v1483 = vmul.f32 %v1481, 0.55031365
        %v1484 = vsub.f32 %v1478, %v1482
        %v1485 = vsub.f32 %v1479, %v1483
        %v1486 = vld [vmem:[%s1277] sm:$0xff]
        %v1487 = vld [vmem:[%s1277 + $0x8] sm:$0xff]
        %v1488 = vmul.f32 %v1486, 0.5690644
        %v1489 = vmul.f32 %v1487, 0.5690644
        %v1490 = vsub.f32 %v1484, %v1488
        %v1491 = vsub.f32 %v1485, %v1489
        %v1492 = vld [vmem:[%s1314] sm:$0xff]
        %v1493 = vld [vmem:[%s1314 + $0x8] sm:$0xff]
        %v1494 = vmul.f32 %v1492, 0.59246516
        %v1495 = vmul.f32 %v1493, 0.59246516
        %v1496 = vsub.f32 %v1490, %v1494
        %v1497 = vsub.f32 %v1491, %v1495
        %v1498 = vld [vmem:[%s1357] sm:$0xff]
        %v1499 = vld [vmem:[%s1357 + $0x8] sm:$0xff]
        %v1500 = vmul.f32 %v1498, 0.62320846
        %v1501 = vmul.f32 %v1499, 0.62320846
        %v1502 = vsub.f32 %v1496, %v1500
        %v1503 = vsub.f32 %v1497, %v1501
        %v1504 = vld [vmem:[%s1406] sm:$0xff]
        %v1505 = vld [vmem:[%s1406 + $0x8] sm:$0xff]
        %v1506 = vmul.f32 %v1504, 0.66712356
        %v1507 = vmul.f32 %v1505, 0.66712356
        %v1508 = vsub.f32 %v1502, %v1506
        %v1509 = vsub.f32 %v1503, %v1507
        %v1510 = vld [vmem:[%s1461] sm:$0xff]
        %v1511 = vld [vmem:[%s1461 + $0x8] sm:$0xff]
        %v1512 = vmul.f32 %v1510, 0.74110115
        %v1513 = vmul.f32 %v1511, 0.74110115
        %v1514 = vsub.f32 %v1508, %v1512
        %v1515 = vsub.f32 %v1509, %v1513
        %vm1516 = vcmp.gt.f32.partialorder %v1514, 1.0
        %vm1517 = vcmp.gt.f32.partialorder %v1515, 1.0
        %v1518 = vsel %vm1516, 0.0, %v1514
        %v1519 = vsel %vm1517, 0.0, %v1515
        %v1520 = vsub.f32 %v1518, %v1457
        %v1521 = vsub.f32 %v1519, %v1458
        %s1522 = scalar_lea.vmem [#allocation5], 96
        %1523 = vst [vmem:[%s1522] sm:$0xff] %v1520
        %1524 = vst [vmem:[%s1522 + $0x8] sm:$0xff] %v1521
        %v1525 = vsel %vm1516, 1, 0
        %v1526 = vsel %vm1517, 1, 0
        %v1527 = vcvt.s32.f32 %v1525
        %v1528 = vcvt.s32.f32 %v1526
        %s1529 = scalar_lea.vmem %s206, 96 [#allocation11]
        %1530 = vst [vmem:[%s1529] sm:$0xff] %v1527
        %1531 = vst [vmem:[%s1529 + $0x8] sm:$0xff] %v1528
        %s1532 = scalar_lea.vmem %s213, 96 [#allocation12]
        %1533 = vst [vmem:[%s1532] sm:$0xff] %v1518
        %1534 = vst [vmem:[%s1532 + $0x8] sm:$0xff] %v1519
        %v1535 = vmul.f32 %v1518, 0.8824673
        %v1536 = vmul.f32 %v1519, 0.8824673
        %v1537 = vld [vmem:[#allocation3 + $0x38] sm:$0xff]
        %v1538 = vld [vmem:[#allocation3 + $0x78] sm:$0xff]
        %v1539 = vadd.f32 %v1535, %v1537
        %v1540 = vadd.f32 %v1536, %v1538
        %v1541 = vld [vmem:[#allocation5] sm:$0xff]
        %v1542 = vld [vmem:[#allocation5 + $0x8] sm:$0xff]
        %v1543 = vmul.f32 %v1541, 0.53475523
        %v1544 = vmul.f32 %v1542, 0.53475523
        %v1545 = vsub.f32 %v1539, %v1543
        %v1546 = vsub.f32 %v1540, %v1544
        %v1547 = vld [vmem:[%s1277] sm:$0xff]
        %v1548 = vld [vmem:[%s1277 + $0x8] sm:$0xff]
        %v1549 = vmul.f32 %v1547, 0.55031365
        %v1550 = vmul.f32 %v1548, 0.55031365
        %v1551 = vsub.f32 %v1545, %v1549
        %v1552 = vsub.f32 %v1546, %v1550
        %v1553 = vld [vmem:[%s1314] sm:$0xff]
        %v1554 = vld [vmem:[%s1314 + $0x8] sm:$0xff]
        %v1555 = vmul.f32 %v1553, 0.5690644
        %v1556 = vmul.f32 %v1554, 0.5690644
        %v1557 = vsub.f32 %v1551, %v1555
        %v1558 = vsub.f32 %v1552, %v1556
        %v1559 = vld [vmem:[%s1357] sm:$0xff]
        %v1560 = vld [vmem:[%s1357 + $0x8] sm:$0xff]
        %v1561 = vmul.f32 %v1559, 0.59246516
        %v1562 = vmul.f32 %v1560, 0.59246516
        %v1563 = vsub.f32 %v1557, %v1561
        %v1564 = vsub.f32 %v1558, %v1562
        %v1565 = vld [vmem:[%s1406] sm:$0xff]
        %v1566 = vld [vmem:[%s1406 + $0x8] sm:$0xff]
        %v1567 = vmul.f32 %v1565, 0.62320846
        %v1568 = vmul.f32 %v1566, 0.62320846
        %v1569 = vsub.f32 %v1563, %v1567
        %v1570 = vsub.f32 %v1564, %v1568
        %v1571 = vld [vmem:[%s1461] sm:$0xff]
        %v1572 = vld [vmem:[%s1461 + $0x8] sm:$0xff]
        %v1573 = vmul.f32 %v1571, 0.66712356
        %v1574 = vmul.f32 %v1572, 0.66712356
        %v1575 = vsub.f32 %v1569, %v1573
        %v1576 = vsub.f32 %v1570, %v1574
        %v1577 = vld [vmem:[%s1522] sm:$0xff]
        %v1578 = vld [vmem:[%s1522 + $0x8] sm:$0xff]
        %v1579 = vmul.f32 %v1577, 0.74110115
        %v1580 = vmul.f32 %v1578, 0.74110115
        %v1581 = vsub.f32 %v1575, %v1579
        %v1582 = vsub.f32 %v1576, %v1580
        %vm1583 = vcmp.gt.f32.partialorder %v1581, 1.0
        %vm1584 = vcmp.gt.f32.partialorder %v1582, 1.0
        %v1585 = vsel %vm1583, 0.0, %v1581
        %v1586 = vsel %vm1584, 0.0, %v1582
        %v1587 = vsub.f32 %v1585, %v1518
        %v1588 = vsub.f32 %v1586, %v1519
        %s1589 = scalar_lea.vmem [#allocation5], 112
        %1590 = vst [vmem:[%s1589] sm:$0xff] %v1587
        %1591 = vst [vmem:[%s1589 + $0x8] sm:$0xff] %v1588
        %v1592 = vsel %vm1583, 1, 0
        %v1593 = vsel %vm1584, 1, 0
        %v1594 = vcvt.s32.f32 %v1592
        %v1595 = vcvt.s32.f32 %v1593
        %s1596 = scalar_lea.vmem %s206, 112 [#allocation11]
        %1597 = vst [vmem:[%s1596] sm:$0xff] %v1594
        %1598 = vst [vmem:[%s1596 + $0x8] sm:$0xff] %v1595
        %s1599 = scalar_lea.vmem %s213, 112 [#allocation12]
        %1600 = vst [vmem:[%s1599] sm:$0xff] %v1585
        %1601 = vst [vmem:[%s1599 + $0x8] sm:$0xff] %v1586
        %s1602 = sand.u32 %s80, 1
        %s1603 = scalar_lea.sflag [#allocation8], %s1602
        %s1604 = sand.u32 %s80, 1
        %s1605 = smul.addr %s1604, 128
        %s1606 = scalar_lea.vmem [#allocation11], %s1605
        %s1607 = sand.u32 %s106, 1
        %s1608 = scalar_lea.sflag [#allocation13], %s1607
        %s1609 = sand.u32 %s106, 1
        %s1610 = smul.addr %s1609, 128
        %s1611 = scalar_lea.vmem [#allocation12], %s1610
        // Predicated region
        $region37: #{tpu_custom_call.1} parent=27 // pred_check
          %p1612 = pneg %p90
        $region38: #{tpu_custom_call.1} parent=27 // pred_check_branch
          %1614 = sbr.rel (%p1612) target = $region40
        $region39: #{tpu_custom_call.1} parent=27 // pred_region
          %s1616 = ssub.s32 2048, 2048
          %1617 = vsyncadd %s1603, %s1616
          %s1618 = smul.addr %s25, 128
          %s1619 = scalar_lea.hbm %s2, %s1618
          %s1620 = sshll.u32 %s1606, 4
          %s1621 = int_to_ptr.vmem [resolvable:$true] %s1620
          %1626 = dma.vmem_to_hbm [thread:$0]  %s1621, 2048, %s1619, %s1603, 128, 256, 8
        $region40: #{tpu_custom_call.1} parent=27 // pred_fallthru
          _
        // Predicated region
        $region41: #{tpu_custom_call.1} parent=27 // pred_check
          %p1627 = pneg %p116
        $region42: #{tpu_custom_call.1} parent=27 // pred_check_branch
          %1629 = sbr.rel (%p1627) target = $region44
        $region43: #{tpu_custom_call.1} parent=27 // pred_region
          %s1631 = ssub.s32 2048, 2048
          %1632 = vsyncadd %s1608, %s1631
          %s1633 = smul.addr %s25, 128
          %s1634 = scalar_lea.hbm %s3, %s1633
          %s1635 = sshll.u32 %s1611, 4
          %s1636 = int_to_ptr.vmem [resolvable:$true] %s1635
          %1641 = dma.vmem_to_hbm [thread:$0]  %s1636, 2048, %s1634, %s1608, 128, 256, 8
        $region44: #{tpu_custom_call.1} parent=27 // pred_fallthru
          _
      $region28: #{tpu_custom_call.1} parent=5 // pred_fallthru
        _
      %p1642 = scmp.le.s32.totalorder 2, %s20
      // Predicated region
      $region45: #{tpu_custom_call.1} parent=5 // pred_check
        %p1643 = pneg %p1642
      $region46: #{tpu_custom_call.1} parent=5 // pred_check_branch
        %1645 = sbr.rel (%p1643) target = $region48
      $region47: #{tpu_custom_call.1} parent=5 // pred_region
        %s1646 = ssub.s32 %s20, 2
        // Predicated region
        $region49: #{tpu_custom_call.1} parent=47 // pred_check
          %p1647 = pneg %p96
        $region50: #{tpu_custom_call.1} parent=47 // pred_check_branch
          %1649 = sbr.rel (%p1647) target = $region52
        $region51: #{tpu_custom_call.1} parent=47 // pred_region
          %s1650 = sand.u32 %s81, 1
          %s1651 = scalar_lea.sflag [#allocation8], %s1650
          %s1652 = sand.u32 %s81, 1
          %s1653 = smul.addr %s1652, 128
          %s1654 = scalar_lea.vmem [#allocation11], %s1653
          %1655 = dma.done %s1651, 2048
        $region52: #{tpu_custom_call.1} parent=47 // pred_fallthru
          _
        // Predicated region
        $region53: #{tpu_custom_call.1} parent=47 // pred_check
          %p1656 = pneg %p122
        $region54: #{tpu_custom_call.1} parent=47 // pred_check_branch
          %1658 = sbr.rel (%p1656) target = $region56
        $region55: #{tpu_custom_call.1} parent=47 // pred_region
          %s1659 = sand.u32 %s107, 1
          %s1660 = scalar_lea.sflag [#allocation13], %s1659
          %s1661 = sand.u32 %s107, 1
          %s1662 = smul.addr %s1661, 128
          %s1663 = scalar_lea.vmem [#allocation12], %s1662
          %1664 = dma.done %s1660, 2048
        $region56: #{tpu_custom_call.1} parent=47 // pred_fallthru
          _
      $region48: #{tpu_custom_call.1} parent=5 // pred_fallthru
        _
    $region6: #{tpu_custom_call.1} parent=1 // loop_footer
      %s24 = sadd.s32 1, %s20
    $region7: #{tpu_custom_call.1} parent=1 // loop_footer_branch
      %19 = sbr.rel target = $region3
    $region8: #{tpu_custom_call.1} parent=1 // loop_exit
      _
    %1665 = vsyncpa [#allocation7], 1
    %s1666 = scalar_lea.sflag [#allocation7], 1
    %1667 = vsyncpa %s1666, 1
    %1668 = vsyncpa [#allocation10], 1
    %1669 = vsyncpa [#allocation8], 1
    %s1670 = scalar_lea.sflag [#allocation8], 1
    %1671 = vsyncpa %s1670, 1
    %1672 = vsyncpa [#allocation13], 1
    %s1673 = scalar_lea.sflag [#allocation13], 1
    %1674 = vsyncpa %s1673, 1

</llo_original>
